<compile_context>
chip_gen: v5e
topology: v5e:2x2
jax: 0.10.0
libtpu: 0.0.40
codegen_flags: <defaults>
</compile_context>

<pallas_src>
import jax
import jax.numpy as jnp
import numpy as np
from jax import lax
from jax.experimental import pallas as pl
from jax.experimental.pallas import tpu as pltpu

# ----------------------------- model config ---------------------------------
VOCAB = 20
INPUT_SIZE = 16        # embedding dim / GRU input size
HIDDEN_SIZE = 32       # total hidden size (split across directions)
NUM_LAYERS = 2
BIDIRECTIONAL = True
NUM_DIR = 2 if BIDIRECTIONAL else 1
H = HIDDEN_SIZE // NUM_DIR      # per-direction hidden size (16)
D2 = NUM_DIR * H                # live hidden width (fwd|rev concat) = 32

HP = 128                        # lane width of one gate block (r / z / n)
GW = 3 * HP                     # r|z|n gate blocks, each 128 lanes wide
KW = D2                         # K (row) width of packed W_ih / layer inputs
VOCAB_PAD = 32                  # padded vocab for the one-hot embedding matmul
assert INPUT_SIZE <= KW, "layer-0 input features must fit the packed K width"
assert VOCAB <= VOCAB_PAD


# --------------------------- fused encoder kernel ----------------------------
def make_encoder_kernel(T, B):
    """One pallas_call for the whole encoder (embedding + all layers/dirs)."""

    def kernel(tok_ref, emb_ref, m_ref, h0_ref,
               wih_ref, bih_ref, whh_ref, bhh_ref,
               out_ref, hn_ref,
               gi_scr, x1_scr):
        # lane masks, computed once per kernel
        lane32 = lax.broadcasted_iota(jnp.int32, (B, D2), 1)
        fwd32 = lane32 < H                       # fwd hidden lanes [0, H)
        rev32 = jnp.logical_not(fwd32)           # rev hidden lanes [H, 2H)
        lane_gw = lax.broadcasted_iota(jnp.int32, (B, GW), 1)
        # fwd sub-block of every 128-lane gate block
        gate_fwd = jnp.bitwise_and(lane_gw, HP - 1) < H

        # ---- fused embedding lookup: one-hot matmul against padded table ----
        vocab_iota = lax.broadcasted_iota(jnp.int32, (T * B, VOCAB_PAD), 1)
        one_hot = jnp.where(vocab_iota == tok_ref[...], 1.0, 0.0)   # (T*B, 32)
        x_val = jnp.dot(one_hot, emb_ref[...],
                        preferred_element_type=jnp.float32)         # (T*B, KW)

        for layer in range(NUM_LAYERS):
            # -- hoisted input projection: one matmul for all T time steps ----
            gi_scr[...] = (jnp.dot(x_val, wih_ref[layer],
                                   preferred_element_type=jnp.float32)
                           + bih_ref[layer])
            # loop-invariant recurrent weights / bias hoisted out of the sweep
            whh_l = whh_ref[layer]                                  # (D2, GW)
            bhh_l = jnp.broadcast_to(bhh_ref[layer], (B, GW))       # (B, GW)
            dst = out_ref if layer == NUM_LAYERS - 1 else x1_scr

            # -- serial recurrence; fwd + rev batched on the lane axis.
            #    hc lanes [0,H) = fwd hidden, [H,2H) = rev hidden.
            #    sweep step s: fwd processes time s, rev processes time T-1-s.
            def step(s, hc):
                row_f = pl.multiple_of(s * B, B)              # rows of time s
                row_r = pl.multiple_of((T - 1 - s) * B, B)    # rows of time T-1-s
                gi_f = gi_scr[pl.ds(row_f, B), :]             # (B, GW), time s
                gi_r = gi_scr[pl.ds(row_r, B), :]             # (B, GW), time T-1-s
                # fwd gate lanes read X[s], rev gate lanes read X[T-1-s]
                gi = jnp.where(gate_fwd, gi_f, gi_r)
                gh = jnp.dot(hc, whh_l,
                             preferred_element_type=jnp.float32) + bhh_l
                r = jax.nn.sigmoid(gi[:, 0:D2] + gh[:, 0:D2])
                z = jax.nn.sigmoid(gi[:, HP:HP + D2] + gh[:, HP:HP + D2])
                n = jnp.tanh(gi[:, 2 * HP:2 * HP + D2]
                             + r * gh[:, 2 * HP:2 * HP + D2])
                h_new = (1.0 - z) * n + z * hc                # (B, D2)
                m = m_ref[pl.ds(row_f, B), :]                 # (B, D2) validity
                out_row = m * h_new                           # zeros at padded steps
                # fwd half belongs to physical time s, rev half to time T-1-s;
                # the two masked stores cover all D2 lanes of every row exactly
                # once per layer (no realign pass, nothing left uninitialized).
                pltpu.store(dst.at[pl.ds(row_f, B), :], out_row, mask=fwd32)
                pltpu.store(dst.at[pl.ds(row_r, B), :], out_row, mask=rev32)
                return hc + m * (h_new - hc)                  # freeze past length

            hc_fin = lax.fori_loop(0, T, step, h0_ref[layer],
                                   unroll=min(T, 8))
            hn_ref[layer] = hc_fin
            if layer != NUM_LAYERS - 1:
                x_val = x1_scr[...]

    # advisory cost estimate so XLA can schedule surrounding ops
    flops = 2 * T * B * VOCAB_PAD * KW
    flops += NUM_LAYERS * (2 * T * B * KW * GW      # hoisted GI matmul
                           + 2 * T * B * D2 * GW    # recurrent matmuls
                           + 20 * T * B * D2)       # gate elementwise
    transcendentals = NUM_LAYERS * 3 * T * B * D2
    bytes_accessed = 4 * (T * B + VOCAB_PAD * KW + T * B * D2
                          + 2 * NUM_LAYERS * B * D2
                          + NUM_LAYERS * (KW * GW + D2 * GW + 2 * GW)
                          + T * B * D2)

    vspec = pl.BlockSpec(memory_space=pltpu.MemorySpace.VMEM)
    return pl.pallas_call(
        kernel,
        out_shape=(jax.ShapeDtypeStruct((T * B, D2), jnp.float32),
                   jax.ShapeDtypeStruct((NUM_LAYERS, B, D2), jnp.float32)),
        in_specs=[vspec] * 8,
        out_specs=(vspec, vspec),
        scratch_shapes=[pltpu.VMEM((T * B, GW), jnp.float32),   # GI per layer
                        pltpu.VMEM((T * B, D2), jnp.float32)],  # next-layer input
        cost_estimate=pl.CostEstimate(flops=flops,
                                      transcendentals=transcendentals,
                                      bytes_accessed=bytes_accessed),
    )


# --------------------------- weight / input packing ---------------------------
def _pack_gru_weights(params):
    """Pack PyTorch-layout per-direction weights into lane-padded, direction-
    batched matrices: gate g occupies lanes [g*128, g*128+128); within a gate
    block, direction d occupies lanes [d*H, (d+1)*H).  K (row) width is only
    32 (the live input / hidden features), not 128."""
    emb_pad = jnp.zeros((VOCAB_PAD, KW), jnp.float32)
    emb_pad = emb_pad.at[:VOCAB, :INPUT_SIZE].set(params["embedding"])

    wih_all, bih_all, whh_all, bhh_all = [], [], [], []
    for layer in range(NUM_LAYERS):
        wih = jnp.zeros((KW, GW), jnp.float32)
        whh = jnp.zeros((D2, GW), jnp.float32)
        bih = jnp.zeros((1, GW), jnp.float32)
        bhh = jnp.zeros((1, GW), jnp.float32)
        for d in range(NUM_DIR):
            p = params["gru"][(layer, d)]
            in_sz = p["w_ih"].shape[1]          # E for layer 0, 2H afterwards
            for g in range(3):
                col = g * HP + d * H
                wih = wih.at[:in_sz, col:col + H].set(
                    p["w_ih"][g * H:(g + 1) * H, :].T)
                whh = whh.at[d * H:(d + 1) * H, col:col + H].set(
                    p["w_hh"][g * H:(g + 1) * H, :].T)
                bih = bih.at[0, col:col + H].set(p["b_ih"][g * H:(g + 1) * H])
                bhh = bhh.at[0, col:col + H].set(p["b_hh"][g * H:(g + 1) * H])
        wih_all.append(wih)
        whh_all.append(whh)
        bih_all.append(bih)
        bhh_all.append(bhh)                      # (1, GW): broadcast in-kernel
    return (emb_pad, jnp.stack(wih_all), jnp.stack(bih_all),
            jnp.stack(whh_all), jnp.stack(bhh_all))


# ------------------------------ Encoder forward ------------------------------
def encoder_forward(params, tokens, lengths, h0=None):
    """Mirrors Encoder.forward: returns (hn, output)."""
    T, B = tokens.shape
    emb_pad, wih_all, bih_all, whh_all, bhh_all = _pack_gru_weights(params)

    # per-sweep-step validity masks (pack/pad_packed semantics):
    # row s, fwd lanes [0,H): s < len ; rev lanes [H,2H): (T-1-s) < len.
    t_ar = jnp.arange(T, dtype=jnp.int32)[:, None]                 # (T,1)
    len_i = lengths.astype(jnp.int32)[None, :]                     # (1,B)
    m_fwd = (t_ar < len_i).astype(jnp.float32)                     # (T,B)
    m_rev = ((T - 1 - t_ar) < len_i).astype(jnp.float32)           # (T,B)
    lane = jnp.arange(D2)[None, None, :]
    if NUM_DIR == 2:
        mask = jnp.where(lane < H, m_fwd[:, :, None], m_rev[:, :, None])
    else:
        mask = jnp.broadcast_to(m_fwd[:, :, None], (T, B, D2))
    mask = mask.reshape(T * B, D2)

    # initial hidden state packed as (layers, B, 2H): fwd lanes | rev lanes
    h0p = jnp.zeros((NUM_LAYERS, B, D2), jnp.float32)
    if h0 is not None:
        for layer in range(NUM_LAYERS):
            for d in range(NUM_DIR):
                h0p = h0p.at[layer, :, d * H:(d + 1) * H].set(
                    h0[layer * NUM_DIR + d])

    tok2d = tokens.astype(jnp.int32).reshape(T * B, 1)

    out_flat, hn_pad = make_encoder_kernel(T, B)(
        tok2d, emb_pad, mask, h0p, wih_all, bih_all, whh_all, bhh_all)

    output = out_flat.reshape(T, B, D2)
    hn = jnp.stack([hn_pad[layer, :, d * H:(d + 1) * H]
                    for layer in range(NUM_LAYERS) for d in range(NUM_DIR)],
                   axis=0)
    return hn, output


# ------------------------------ pure-JAX reference ---------------------------
def _gru_layer_ref(x, lengths, w_ih, w_hh, b_ih, b_hh, h0, reverse):
    T, B, _ = x.shape
    Hh = w_hh.shape[1]
    h = h0
    out = jnp.zeros((T, B, Hh), jnp.float32)
    order = range(T - 1, -1, -1) if reverse else range(T)
    for ta in order:
        xt = x[ta]
        gi = xt @ w_ih.T + b_ih
        gh = h @ w_hh.T + b_hh
        r = jax.nn.sigmoid(gi[:, :Hh] + gh[:, :Hh])
        z = jax.nn.sigmoid(gi[:, Hh:2 * Hh] + gh[:, Hh:2 * Hh])
        n = jnp.tanh(gi[:, 2 * Hh:] + r * gh[:, 2 * Hh:])
        h_new = (1.0 - z) * n + z * h
        msk = (ta < lengths)[:, None]
        h = jnp.where(msk, h_new, h)
        out = out.at[ta].set(jnp.where(msk, h_new, 0.0))
    return out, h


def encoder_ref(params, tokens, lengths, h0=None):
    T, B = tokens.shape
    embed = params["embedding"][tokens]
    if h0 is None:
        h0 = jnp.zeros((NUM_LAYERS * NUM_DIR, B, H), jnp.float32)
    layer_in = embed
    hns = []
    for layer in range(NUM_LAYERS):
        dir_outs = []
        for d in range(NUM_DIR):
            p = params["gru"][(layer, d)]
            out, hn = _gru_layer_ref(layer_in, lengths, p["w_ih"], p["w_hh"],
                                     p["b_ih"], p["b_hh"],
                                     h0[layer * NUM_DIR + d], reverse=(d == 1))
            dir_outs.append(out)
            hns.append(hn)
        layer_in = (jnp.concatenate(dir_outs, axis=-1)
                    if NUM_DIR == 2 else dir_outs[0])
    return jnp.stack(hns, axis=0), layer_in


# ------------------------------ parameter init --------------------------------
def init_params(key):
    k = 1.0 / np.sqrt(H)
    keys = jax.random.split(key, 1 + NUM_LAYERS * NUM_DIR * 4)
    params = {"embedding": jax.random.normal(keys[0], (VOCAB, INPUT_SIZE),
                                             jnp.float32) * 0.1,
              "gru": {}}
    ki = 1
    for layer in range(NUM_LAYERS):
        in_sz = INPUT_SIZE if layer == 0 else H * NUM_DIR
        for d in range(NUM_DIR):
            params["gru"][(layer, d)] = {
                "w_ih": jax.random.uniform(keys[ki + 0], (3 * H, in_sz),
                                           jnp.float32, -k, k),
                "w_hh": jax.random.uniform(keys[ki + 1], (3 * H, H),
                                           jnp.float32, -k, k),
                "b_ih": jax.random.uniform(keys[ki + 2], (3 * H,),
                                           jnp.float32, -k, k),
                "b_hh": jax.random.uniform(keys[ki + 3], (3 * H,),
                                           jnp.float32, -k, k),
            }
            ki += 4
    return params


# ----------------------------------- main -------------------------------------
if __name__ == "__main__":
    key = jax.random.PRNGKey(0)
    pkey, tkey, hkey = jax.random.split(key, 3)
    params = init_params(pkey)

    T, B = 8, 8
    tokens = jax.random.randint(tkey, (T, B), 0, VOCAB, dtype=jnp.int32)
    # pack_padded_sequence (enforce_sorted=True) requires descending lengths.
    lengths = jnp.array([8, 8, 7, 6, 5, 4, 3, 2], dtype=jnp.int32)

    fwd = jax.jit(encoder_forward)

    # --- default (h0 = None) path ---
    hn, output = fwd(params, tokens, lengths)
    hn = jax.block_until_ready(hn)
    output = jax.block_until_ready(output)

    hn_r, out_r = encoder_ref(params, tokens, lengths)
    np.testing.assert_allclose(np.asarray(hn), np.asarray(hn_r),
                               rtol=1e-4, atol=1e-4)
    np.testing.assert_allclose(np.asarray(output), np.asarray(out_r),
                               rtol=1e-4, atol=1e-4)

    # --- explicit h0 path ---
    h0 = jax.random.normal(hkey, (NUM_LAYERS * NUM_DIR, B, H),
                           jnp.float32) * 0.1
    hn2, output2 = fwd(params, tokens, lengths, h0)
    hn2 = jax.block_until_ready(hn2)
    output2 = jax.block_until_ready(output2)
    hn2_r, out2_r = encoder_ref(params, tokens, lengths, h0)
    np.testing.assert_allclose(np.asarray(hn2), np.asarray(hn2_r),
                               rtol=1e-4, atol=1e-4)
    np.testing.assert_allclose(np.asarray(output2), np.asarray(out2_r),
                               rtol=1e-4, atol=1e-4)

    assert hn.shape == (NUM_LAYERS * NUM_DIR, B, H)
    assert output.shape == (T, B, NUM_DIR * H)
    print("KERNEL_OK")
</pallas_src>

<mosaic_0001>
module attributes {stable_mosaic.version = 11 : i64} {
  func.func @kernel(%arg0: memref<64x1xi32, #tpu.memory_space<vmem>>, %arg1: memref<32x32xf32, #tpu.memory_space<vmem>>, %arg2: memref<64x32xf32, #tpu.memory_space<vmem>>, %arg3: memref<2x8x32xf32, #tpu.memory_space<vmem>>, %arg4: memref<2x32x384xf32, #tpu.memory_space<vmem>>, %arg5: memref<2x1x384xf32, #tpu.memory_space<vmem>>, %arg6: memref<2x32x384xf32, #tpu.memory_space<vmem>>, %arg7: memref<2x1x384xf32, #tpu.memory_space<vmem>>, %arg8: memref<64x32xf32, #tpu.memory_space<vmem>>, %arg9: memref<2x8x32xf32, #tpu.memory_space<vmem>>, %arg10: memref<64x384xf32, #tpu.memory_space<vmem>>, %arg11: memref<64x32xf32, #tpu.memory_space<vmem>>) attributes {dimension_semantics = [], scalar_prefetch = 0 : i64, scratch_operands = 2 : i64, tpu.core_type = #tpu.core_type<tc>} {
    %0 = tpu.iota {dimensions = array<i32: 1>} : vector<8x32xi32>
    %c16_i32 = arith.constant 16 : i32
    %1 = vector.broadcast %c16_i32 : i32 to vector<8x32xi32>
    %2 = arith.cmpi slt, %0, %1 : vector<8x32xi32>
    %cst = arith.constant dense<true> : vector<8x32xi1>
    %3 = arith.xori %2, %cst : vector<8x32xi1>
    %4 = tpu.iota {dimensions = array<i32: 1>} : vector<8x384xi32>
    %c127_i32 = arith.constant 127 : i32
    %5 = vector.broadcast %c127_i32 : i32 to vector<8x384xi32>
    %6 = arith.andi %4, %5 : vector<8x384xi32>
    %c16_i32_0 = arith.constant 16 : i32
    %7 = vector.broadcast %c16_i32_0 : i32 to vector<8x384xi32>
    %8 = arith.cmpi slt, %6, %7 : vector<8x384xi32>
    %9 = tpu.iota {dimensions = array<i32: 1>} : vector<64x32xi32>
    %c0 = arith.constant 0 : index
    %c0_1 = arith.constant 0 : index
    %10 = vector.load %arg0[%c0, %c0_1] : memref<64x1xi32, #tpu.memory_space<vmem>>, vector<64x1xi32>
    %11 = vector.broadcast %10 : vector<64x1xi32> to vector<64x32xi32>
    %12 = arith.cmpi eq, %9, %11 : vector<64x32xi32>
    %cst_2 = arith.constant 1.000000e+00 : f32
    %cst_3 = arith.constant 0.000000e+00 : f32
    %13 = vector.broadcast %cst_2 : f32 to vector<64x32xf32>
    %14 = vector.broadcast %cst_3 : f32 to vector<64x32xf32>
    %15 = arith.select %12, %13, %14 : vector<64x32xi1>, vector<64x32xf32>
    %c0_4 = arith.constant 0 : index
    %c0_5 = arith.constant 0 : index
    %16 = vector.load %arg1[%c0_4, %c0_5] : memref<32x32xf32, #tpu.memory_space<vmem>>, vector<32x32xf32>
    %cst_6 = arith.constant dense<0.000000e+00> : vector<64x32xf32>
    %17 = tpu.matmul %15, %16, %cst_6 {dimension_numbers = #tpu.dot_dimension_numbers<[1], [0], [0], [1], [0, 0, 1, 1], [], []>} : vector<64x32xf32>, vector<32x32xf32>, vector<64x32xf32> -> vector<64x32xf32>
    %c0_7 = arith.constant 0 : index
    %c0_8 = arith.constant 0 : index
    %c0_9 = arith.constant 0 : index
    %18 = vector.load %arg4[%c0_7, %c0_8, %c0_9] : memref<2x32x384xf32, #tpu.memory_space<vmem>>, vector<1x32x384xf32>
    %19 = vector.shape_cast %18 : vector<1x32x384xf32> to vector<32x384xf32>
    %cst_10 = arith.constant dense<0.000000e+00> : vector<64x384xf32>
    %20 = tpu.matmul %17, %19, %cst_10 {dimension_numbers = #tpu.dot_dimension_numbers<[1], [0], [0], [1], [0, 0, 1, 1], [], []>} : vector<64x32xf32>, vector<32x384xf32>, vector<64x384xf32> -> vector<64x384xf32>
    %c0_11 = arith.constant 0 : index
    %c0_12 = arith.constant 0 : index
    %c0_13 = arith.constant 0 : index
    %21 = vector.load %arg5[%c0_11, %c0_12, %c0_13] : memref<2x1x384xf32, #tpu.memory_space<vmem>>, vector<1x1x384xf32>
    %22 = vector.shape_cast %21 : vector<1x1x384xf32> to vector<1x384xf32>
    %23 = vector.broadcast %22 : vector<1x384xf32> to vector<64x384xf32>
    %24 = arith.addf %20, %23 : vector<64x384xf32>
    %c0_14 = arith.constant 0 : index
    %c0_15 = arith.constant 0 : index
    %25 = vector.load %arg10[%c0_14, %c0_15] : memref<64x384xf32, #tpu.memory_space<vmem>>, vector<64x384xf32>
    tpu.vector_store %arg10[%c0_14, %c0_15], %24 {strides = array<i32>} : memref<64x384xf32, #tpu.memory_space<vmem>>, vector<64x384xf32>,
    %c0_16 = arith.constant 0 : index
    %c0_17 = arith.constant 0 : index
    %c0_18 = arith.constant 0 : index
    %26 = vector.load %arg6[%c0_16, %c0_17, %c0_18] : memref<2x32x384xf32, #tpu.memory_space<vmem>>, vector<1x32x384xf32>
    %27 = vector.shape_cast %26 : vector<1x32x384xf32> to vector<32x384xf32>
    %c0_19 = arith.constant 0 : index
    %c0_20 = arith.constant 0 : index
    %c0_21 = arith.constant 0 : index
    %28 = vector.load %arg7[%c0_19, %c0_20, %c0_21] : memref<2x1x384xf32, #tpu.memory_space<vmem>>, vector<1x1x384xf32>
    %29 = vector.shape_cast %28 : vector<1x1x384xf32> to vector<1x384xf32>
    %30 = vector.shape_cast %29 : vector<1x384xf32> to vector<1x384xf32>
    %31 = vector.broadcast %30 : vector<1x384xf32> to vector<8x384xf32>
    %c0_22 = arith.constant 0 : index
    %c0_23 = arith.constant 0 : index
    %c0_24 = arith.constant 0 : index
    %32 = vector.load %arg3[%c0_22, %c0_23, %c0_24] : memref<2x8x32xf32, #tpu.memory_space<vmem>>, vector<1x8x32xf32>
    %33 = vector.shape_cast %32 : vector<1x8x32xf32> to vector<8x32xf32>
    %c0_i32 = arith.constant 0 : i32
    %c8_i32 = arith.constant 8 : i32
    %34 = arith.muli %c0_i32, %c8_i32 : i32
    %35 = tpu.assume_multiple %34, 8 : i32
    %c7_i32 = arith.constant 7 : i32
    %36 = arith.subi %c7_i32, %c0_i32 : i32
    %c8_i32_25 = arith.constant 8 : i32
    %37 = arith.muli %36, %c8_i32_25 : i32
    %38 = tpu.assume_multiple %37, 8 : i32
    %39 = arith.index_cast %35 : i32 to index
    %c0_26 = arith.constant 0 : index
    %40 = vector.load %arg10[%39, %c0_26] : memref<64x384xf32, #tpu.memory_space<vmem>>, vector<8x384xf32>
    %41 = arith.index_cast %38 : i32 to index
    %c0_27 = arith.constant 0 : index
    %42 = vector.load %arg10[%41, %c0_27] : memref<64x384xf32, #tpu.memory_space<vmem>>, vector<8x384xf32>
    %43 = arith.select %8, %40, %42 : vector<8x384xi1>, vector<8x384xf32>
    %cst_28 = arith.constant dense<0.000000e+00> : vector<8x384xf32>
    %44 = tpu.matmul %33, %27, %cst_28 {dimension_numbers = #tpu.dot_dimension_numbers<[1], [0], [0], [1], [0, 0, 1, 1], [], []>} : vector<8x32xf32>, vector<32x384xf32>, vector<8x384xf32> -> vector<8x384xf32>
    %45 = arith.addf %44, %31 : vector<8x384xf32>
    %46 = vector.extract_strided_slice %43 {offsets = [0, 0], sizes = [8, 32], strides = [1, 1]} : vector<8x384xf32> to vector<8x32xf32>
    %47 = vector.extract_strided_slice %45 {offsets = [0, 0], sizes = [8, 32], strides = [1, 1]} : vector<8x384xf32> to vector<8x32xf32>
    %48 = arith.addf %46, %47 : vector<8x32xf32>
    %49 = arith.negf %48 : vector<8x32xf32>
    %50 = math.exp %49 : vector<8x32xf32>
    %cst_29 = arith.constant 1.000000e+00 : f32
    %51 = vector.broadcast %cst_29 : f32 to vector<8x32xf32>
    %52 = arith.addf %51, %50 : vector<8x32xf32>
    %53 = arith.divf %51, %52 : vector<8x32xf32>
    %54 = vector.extract_strided_slice %43 {offsets = [0, 128], sizes = [8, 32], strides = [1, 1]} : vector<8x384xf32> to vector<8x32xf32>
    %55 = vector.extract_strided_slice %45 {offsets = [0, 128], sizes = [8, 32], strides = [1, 1]} : vector<8x384xf32> to vector<8x32xf32>
    %56 = arith.addf %54, %55 : vector<8x32xf32>
    %57 = arith.negf %56 : vector<8x32xf32>
    %58 = math.exp %57 : vector<8x32xf32>
    %cst_30 = arith.constant 1.000000e+00 : f32
    %59 = vector.broadcast %cst_30 : f32 to vector<8x32xf32>
    %60 = arith.addf %59, %58 : vector<8x32xf32>
    %61 = arith.divf %59, %60 : vector<8x32xf32>
    %62 = vector.extract_strided_slice %43 {offsets = [0, 256], sizes = [8, 32], strides = [1, 1]} : vector<8x384xf32> to vector<8x32xf32>
    %63 = vector.extract_strided_slice %45 {offsets = [0, 256], sizes = [8, 32], strides = [1, 1]} : vector<8x384xf32> to vector<8x32xf32>
    %64 = arith.mulf %53, %63 : vector<8x32xf32>
    %65 = arith.addf %62, %64 : vector<8x32xf32>
    %66 = math.tanh %65 : vector<8x32xf32>
    %cst_31 = arith.constant 1.000000e+00 : f32
    %67 = vector.broadcast %cst_31 : f32 to vector<8x32xf32>
    %68 = arith.subf %67, %61 : vector<8x32xf32>
    %69 = arith.mulf %68, %66 : vector<8x32xf32>
    %70 = arith.mulf %61, %33 : vector<8x32xf32>
    %71 = arith.addf %69, %70 : vector<8x32xf32>
    %72 = arith.index_cast %35 : i32 to index
    %c0_32 = arith.constant 0 : index
    %73 = vector.load %arg2[%72, %c0_32] : memref<64x32xf32, #tpu.memory_space<vmem>>, vector<8x32xf32>
    %74 = arith.mulf %73, %71 : vector<8x32xf32>
    %75 = arith.index_cast %35 : i32 to index
    %c0_33 = arith.constant 0 : index
    %76 = vector.load %arg11[%75, %c0_33] : memref<64x32xf32, #tpu.memory_space<vmem>>, vector<8x32xf32>
    tpu.vector_store %arg11[%75, %c0_33], %74 masked %2 {strides = array<i32>} : memref<64x32xf32, #tpu.memory_space<vmem>>, vector<8x32xf32>, vector<8x32xi1>
    %77 = arith.index_cast %38 : i32 to index
    %c0_34 = arith.constant 0 : index
    %78 = vector.load %arg11[%77, %c0_34] : memref<64x32xf32, #tpu.memory_space<vmem>>, vector<8x32xf32>
    tpu.vector_store %arg11[%77, %c0_34], %74 masked %3 {strides = array<i32>} : memref<64x32xf32, #tpu.memory_space<vmem>>, vector<8x32xf32>, vector<8x32xi1>
    %79 = arith.subf %71, %33 : vector<8x32xf32>
    %80 = arith.mulf %73, %79 : vector<8x32xf32>
    %81 = arith.addf %33, %80 : vector<8x32xf32>
    %c1_i32 = arith.constant 1 : i32
    %c8_i32_35 = arith.constant 8 : i32
    %82 = arith.muli %c1_i32, %c8_i32_35 : i32
    %83 = tpu.assume_multiple %82, 8 : i32
    %c7_i32_36 = arith.constant 7 : i32
    %84 = arith.subi %c7_i32_36, %c1_i32 : i32
    %c8_i32_37 = arith.constant 8 : i32
    %85 = arith.muli %84, %c8_i32_37 : i32
    %86 = tpu.assume_multiple %85, 8 : i32
    %87 = arith.index_cast %83 : i32 to index
    %c0_38 = arith.constant 0 : index
    %88 = vector.load %arg10[%87, %c0_38] : memref<64x384xf32, #tpu.memory_space<vmem>>, vector<8x384xf32>
    %89 = arith.index_cast %86 : i32 to index
    %c0_39 = arith.constant 0 : index
    %90 = vector.load %arg10[%89, %c0_39] : memref<64x384xf32, #tpu.memory_space<vmem>>, vector<8x384xf32>
    %91 = arith.select %8, %88, %90 : vector<8x384xi1>, vector<8x384xf32>
    %cst_40 = arith.constant dense<0.000000e+00> : vector<8x384xf32>
    %92 = tpu.matmul %81, %27, %cst_40 {dimension_numbers = #tpu.dot_dimension_numbers<[1], [0], [0], [1], [0, 0, 1, 1], [], []>} : vector<8x32xf32>, vector<32x384xf32>, vector<8x384xf32> -> vector<8x384xf32>
    %93 = arith.addf %92, %31 : vector<8x384xf32>
    %94 = vector.extract_strided_slice %91 {offsets = [0, 0], sizes = [8, 32], strides = [1, 1]} : vector<8x384xf32> to vector<8x32xf32>
    %95 = vector.extract_strided_slice %93 {offsets = [0, 0], sizes = [8, 32], strides = [1, 1]} : vector<8x384xf32> to vector<8x32xf32>
    %96 = arith.addf %94, %95 : vector<8x32xf32>
    %97 = arith.negf %96 : vector<8x32xf32>
    %98 = math.exp %97 : vector<8x32xf32>
    %cst_41 = arith.constant 1.000000e+00 : f32
    %99 = vector.broadcast %cst_41 : f32 to vector<8x32xf32>
    %100 = arith.addf %99, %98 : vector<8x32xf32>
    %101 = arith.divf %99, %100 : vector<8x32xf32>
    %102 = vector.extract_strided_slice %91 {offsets = [0, 128], sizes = [8, 32], strides = [1, 1]} : vector<8x384xf32> to vector<8x32xf32>
    %103 = vector.extract_strided_slice %93 {offsets = [0, 128], sizes = [8, 32], strides = [1, 1]} : vector<8x384xf32> to vector<8x32xf32>
    %104 = arith.addf %102, %103 : vector<8x32xf32>
    %105 = arith.negf %104 : vector<8x32xf32>
    %106 = math.exp %105 : vector<8x32xf32>
    %cst_42 = arith.constant 1.000000e+00 : f32
    %107 = vector.broadcast %cst_42 : f32 to vector<8x32xf32>
    %108 = arith.addf %107, %106 : vector<8x32xf32>
    %109 = arith.divf %107, %108 : vector<8x32xf32>
    %110 = vector.extract_strided_slice %91 {offsets = [0, 256], sizes = [8, 32], strides = [1, 1]} : vector<8x384xf32> to vector<8x32xf32>
    %111 = vector.extract_strided_slice %93 {offsets = [0, 256], sizes = [8, 32], strides = [1, 1]} : vector<8x384xf32> to vector<8x32xf32>
    %112 = arith.mulf %101, %111 : vector<8x32xf32>
    %113 = arith.addf %110, %112 : vector<8x32xf32>
    %114 = math.tanh %113 : vector<8x32xf32>
    %cst_43 = arith.constant 1.000000e+00 : f32
    %115 = vector.broadcast %cst_43 : f32 to vector<8x32xf32>
    %116 = arith.subf %115, %109 : vector<8x32xf32>
    %117 = arith.mulf %116, %114 : vector<8x32xf32>
    %118 = arith.mulf %109, %81 : vector<8x32xf32>
    %119 = arith.addf %117, %118 : vector<8x32xf32>
    %120 = arith.index_cast %83 : i32 to index
    %c0_44 = arith.constant 0 : index
    %121 = vector.load %arg2[%120, %c0_44] : memref<64x32xf32, #tpu.memory_space<vmem>>, vector<8x32xf32>
    %122 = arith.mulf %121, %119 : vector<8x32xf32>
    %123 = arith.index_cast %83 : i32 to index
    %c0_45 = arith.constant 0 : index
    %124 = vector.load %arg11[%123, %c0_45] : memref<64x32xf32, #tpu.memory_space<vmem>>, vector<8x32xf32>
    tpu.vector_store %arg11[%123, %c0_45], %122 masked %2 {strides = array<i32>} : memref<64x32xf32, #tpu.memory_space<vmem>>, vector<8x32xf32>, vector<8x32xi1>
    %125 = arith.index_cast %86 : i32 to index
    %c0_46 = arith.constant 0 : index
    %126 = vector.load %arg11[%125, %c0_46] : memref<64x32xf32, #tpu.memory_space<vmem>>, vector<8x32xf32>
    tpu.vector_store %arg11[%125, %c0_46], %122 masked %3 {strides = array<i32>} : memref<64x32xf32, #tpu.memory_space<vmem>>, vector<8x32xf32>, vector<8x32xi1>
    %127 = arith.subf %119, %81 : vector<8x32xf32>
    %128 = arith.mulf %121, %127 : vector<8x32xf32>
    %129 = arith.addf %81, %128 : vector<8x32xf32>
    %c2_i32 = arith.constant 2 : i32
    %c8_i32_47 = arith.constant 8 : i32
    %130 = arith.muli %c2_i32, %c8_i32_47 : i32
    %131 = tpu.assume_multiple %130, 8 : i32
    %c7_i32_48 = arith.constant 7 : i32
    %132 = arith.subi %c7_i32_48, %c2_i32 : i32
    %c8_i32_49 = arith.constant 8 : i32
    %133 = arith.muli %132, %c8_i32_49 : i32
    %134 = tpu.assume_multiple %133, 8 : i32
    %135 = arith.index_cast %131 : i32 to index
    %c0_50 = arith.constant 0 : index
    %136 = vector.load %arg10[%135, %c0_50] : memref<64x384xf32, #tpu.memory_space<vmem>>, vector<8x384xf32>
    %137 = arith.index_cast %134 : i32 to index
    %c0_51 = arith.constant 0 : index
    %138 = vector.load %arg10[%137, %c0_51] : memref<64x384xf32, #tpu.memory_space<vmem>>, vector<8x384xf32>
    %139 = arith.select %8, %136, %138 : vector<8x384xi1>, vector<8x384xf32>
    %cst_52 = arith.constant dense<0.000000e+00> : vector<8x384xf32>
    %140 = tpu.matmul %129, %27, %cst_52 {dimension_numbers = #tpu.dot_dimension_numbers<[1], [0], [0], [1], [0, 0, 1, 1], [], []>} : vector<8x32xf32>, vector<32x384xf32>, vector<8x384xf32> -> vector<8x384xf32>
    %141 = arith.addf %140, %31 : vector<8x384xf32>
    %142 = vector.extract_strided_slice %139 {offsets = [0, 0], sizes = [8, 32], strides = [1, 1]} : vector<8x384xf32> to vector<8x32xf32>
    %143 = vector.extract_strided_slice %141 {offsets = [0, 0], sizes = [8, 32], strides = [1, 1]} : vector<8x384xf32> to vector<8x32xf32>
    %144 = arith.addf %142, %143 : vector<8x32xf32>
    %145 = arith.negf %144 : vector<8x32xf32>
    %146 = math.exp %145 : vector<8x32xf32>
    %cst_53 = arith.constant 1.000000e+00 : f32
    %147 = vector.broadcast %cst_53 : f32 to vector<8x32xf32>
    %148 = arith.addf %147, %146 : vector<8x32xf32>
    %149 = arith.divf %147, %148 : vector<8x32xf32>
    %150 = vector.extract_strided_slice %139 {offsets = [0, 128], sizes = [8, 32], strides = [1, 1]} : vector<8x384xf32> to vector<8x32xf32>
    %151 = vector.extract_strided_slice %141 {offsets = [0, 128], sizes = [8, 32], strides = [1, 1]} : vector<8x384xf32> to vector<8x32xf32>
    %152 = arith.addf %150, %151 : vector<8x32xf32>
    %153 = arith.negf %152 : vector<8x32xf32>
    %154 = math.exp %153 : vector<8x32xf32>
    %cst_54 = arith.constant 1.000000e+00 : f32
    %155 = vector.broadcast %cst_54 : f32 to vector<8x32xf32>
    %156 = arith.addf %155, %154 : vector<8x32xf32>
    %157 = arith.divf %155, %156 : vector<8x32xf32>
    %158 = vector.extract_strided_slice %139 {offsets = [0, 256], sizes = [8, 32], strides = [1, 1]} : vector<8x384xf32> to vector<8x32xf32>
    %159 = vector.extract_strided_slice %141 {offsets = [0, 256], sizes = [8, 32], strides = [1, 1]} : vector<8x384xf32> to vector<8x32xf32>
    %160 = arith.mulf %149, %159 : vector<8x32xf32>
    %161 = arith.addf %158, %160 : vector<8x32xf32>
    %162 = math.tanh %161 : vector<8x32xf32>
    %cst_55 = arith.constant 1.000000e+00 : f32
    %163 = vector.broadcast %cst_55 : f32 to vector<8x32xf32>
    %164 = arith.subf %163, %157 : vector<8x32xf32>
    %165 = arith.mulf %164, %162 : vector<8x32xf32>
    %166 = arith.mulf %157, %129 : vector<8x32xf32>
    %167 = arith.addf %165, %166 : vector<8x32xf32>
    %168 = arith.index_cast %131 : i32 to index
    %c0_56 = arith.constant 0 : index
    %169 = vector.load %arg2[%168, %c0_56] : memref<64x32xf32, #tpu.memory_space<vmem>>, vector<8x32xf32>
    %170 = arith.mulf %169, %167 : vector<8x32xf32>
    %171 = arith.index_cast %131 : i32 to index
    %c0_57 = arith.constant 0 : index
    %172 = vector.load %arg11[%171, %c0_57] : memref<64x32xf32, #tpu.memory_space<vmem>>, vector<8x32xf32>
    tpu.vector_store %arg11[%171, %c0_57], %170 masked %2 {strides = array<i32>} : memref<64x32xf32, #tpu.memory_space<vmem>>, vector<8x32xf32>, vector<8x32xi1>
    %173 = arith.index_cast %134 : i32 to index
    %c0_58 = arith.constant 0 : index
    %174 = vector.load %arg11[%173, %c0_58] : memref<64x32xf32, #tpu.memory_space<vmem>>, vector<8x32xf32>
    tpu.vector_store %arg11[%173, %c0_58], %170 masked %3 {strides = array<i32>} : memref<64x32xf32, #tpu.memory_space<vmem>>, vector<8x32xf32>, vector<8x32xi1>
    %175 = arith.subf %167, %129 : vector<8x32xf32>
    %176 = arith.mulf %169, %175 : vector<8x32xf32>
    %177 = arith.addf %129, %176 : vector<8x32xf32>
    %c3_i32 = arith.constant 3 : i32
    %c8_i32_59 = arith.constant 8 : i32
    %178 = arith.muli %c3_i32, %c8_i32_59 : i32
    %179 = tpu.assume_multiple %178, 8 : i32
    %c7_i32_60 = arith.constant 7 : i32
    %180 = arith.subi %c7_i32_60, %c3_i32 : i32
    %c8_i32_61 = arith.constant 8 : i32
    %181 = arith.muli %180, %c8_i32_61 : i32
    %182 = tpu.assume_multiple %181, 8 : i32
    %183 = arith.index_cast %179 : i32 to index
    %c0_62 = arith.constant 0 : index
    %184 = vector.load %arg10[%183, %c0_62] : memref<64x384xf32, #tpu.memory_space<vmem>>, vector<8x384xf32>
    %185 = arith.index_cast %182 : i32 to index
    %c0_63 = arith.constant 0 : index
    %186 = vector.load %arg10[%185, %c0_63] : memref<64x384xf32, #tpu.memory_space<vmem>>, vector<8x384xf32>
    %187 = arith.select %8, %184, %186 : vector<8x384xi1>, vector<8x384xf32>
    %cst_64 = arith.constant dense<0.000000e+00> : vector<8x384xf32>
    %188 = tpu.matmul %177, %27, %cst_64 {dimension_numbers = #tpu.dot_dimension_numbers<[1], [0], [0], [1], [0, 0, 1, 1], [], []>} : vector<8x32xf32>, vector<32x384xf32>, vector<8x384xf32> -> vector<8x384xf32>
    %189 = arith.addf %188, %31 : vector<8x384xf32>
    %190 = vector.extract_strided_slice %187 {offsets = [0, 0], sizes = [8, 32], strides = [1, 1]} : vector<8x384xf32> to vector<8x32xf32>
    %191 = vector.extract_strided_slice %189 {offsets = [0, 0], sizes = [8, 32], strides = [1, 1]} : vector<8x384xf32> to vector<8x32xf32>
    %192 = arith.addf %190, %191 : vector<8x32xf32>
    %193 = arith.negf %192 : vector<8x32xf32>
    %194 = math.exp %193 : vector<8x32xf32>
    %cst_65 = arith.constant 1.000000e+00 : f32
    %195 = vector.broadcast %cst_65 : f32 to vector<8x32xf32>
    %196 = arith.addf %195, %194 : vector<8x32xf32>
    %197 = arith.divf %195, %196 : vector<8x32xf32>
    %198 = vector.extract_strided_slice %187 {offsets = [0, 128], sizes = [8, 32], strides = [1, 1]} : vector<8x384xf32> to vector<8x32xf32>
    %199 = vector.extract_strided_slice %189 {offsets = [0, 128], sizes = [8, 32], strides = [1, 1]} : vector<8x384xf32> to vector<8x32xf32>
    %200 = arith.addf %198, %199 : vector<8x32xf32>
    %201 = arith.negf %200 : vector<8x32xf32>
    %202 = math.exp %201 : vector<8x32xf32>
    %cst_66 = arith.constant 1.000000e+00 : f32
    %203 = vector.broadcast %cst_66 : f32 to vector<8x32xf32>
    %204 = arith.addf %203, %202 : vector<8x32xf32>
    %205 = arith.divf %203, %204 : vector<8x32xf32>
    %206 = vector.extract_strided_slice %187 {offsets = [0, 256], sizes = [8, 32], strides = [1, 1]} : vector<8x384xf32> to vector<8x32xf32>
    %207 = vector.extract_strided_slice %189 {offsets = [0, 256], sizes = [8, 32], strides = [1, 1]} : vector<8x384xf32> to vector<8x32xf32>
    %208 = arith.mulf %197, %207 : vector<8x32xf32>
    %209 = arith.addf %206, %208 : vector<8x32xf32>
    %210 = math.tanh %209 : vector<8x32xf32>
    %cst_67 = arith.constant 1.000000e+00 : f32
    %211 = vector.broadcast %cst_67 : f32 to vector<8x32xf32>
    %212 = arith.subf %211, %205 : vector<8x32xf32>
    %213 = arith.mulf %212, %210 : vector<8x32xf32>
    %214 = arith.mulf %205, %177 : vector<8x32xf32>
    %215 = arith.addf %213, %214 : vector<8x32xf32>
    %216 = arith.index_cast %179 : i32 to index
    %c0_68 = arith.constant 0 : index
    %217 = vector.load %arg2[%216, %c0_68] : memref<64x32xf32, #tpu.memory_space<vmem>>, vector<8x32xf32>
    %218 = arith.mulf %217, %215 : vector<8x32xf32>
    %219 = arith.index_cast %179 : i32 to index
    %c0_69 = arith.constant 0 : index
    %220 = vector.load %arg11[%219, %c0_69] : memref<64x32xf32, #tpu.memory_space<vmem>>, vector<8x32xf32>
    tpu.vector_store %arg11[%219, %c0_69], %218 masked %2 {strides = array<i32>} : memref<64x32xf32, #tpu.memory_space<vmem>>, vector<8x32xf32>, vector<8x32xi1>
    %221 = arith.index_cast %182 : i32 to index
    %c0_70 = arith.constant 0 : index
    %222 = vector.load %arg11[%221, %c0_70] : memref<64x32xf32, #tpu.memory_space<vmem>>, vector<8x32xf32>
    tpu.vector_store %arg11[%221, %c0_70], %218 masked %3 {strides = array<i32>} : memref<64x32xf32, #tpu.memory_space<vmem>>, vector<8x32xf32>, vector<8x32xi1>
    %223 = arith.subf %215, %177 : vector<8x32xf32>
    %224 = arith.mulf %217, %223 : vector<8x32xf32>
    %225 = arith.addf %177, %224 : vector<8x32xf32>
    %c4_i32 = arith.constant 4 : i32
    %c8_i32_71 = arith.constant 8 : i32
    %226 = arith.muli %c4_i32, %c8_i32_71 : i32
    %227 = tpu.assume_multiple %226, 8 : i32
    %c7_i32_72 = arith.constant 7 : i32
    %228 = arith.subi %c7_i32_72, %c4_i32 : i32
    %c8_i32_73 = arith.constant 8 : i32
    %229 = arith.muli %228, %c8_i32_73 : i32
    %230 = tpu.assume_multiple %229, 8 : i32
    %231 = arith.index_cast %227 : i32 to index
    %c0_74 = arith.constant 0 : index
    %232 = vector.load %arg10[%231, %c0_74] : memref<64x384xf32, #tpu.memory_space<vmem>>, vector<8x384xf32>
    %233 = arith.index_cast %230 : i32 to index
    %c0_75 = arith.constant 0 : index
    %234 = vector.load %arg10[%233, %c0_75] : memref<64x384xf32, #tpu.memory_space<vmem>>, vector<8x384xf32>
    %235 = arith.select %8, %232, %234 : vector<8x384xi1>, vector<8x384xf32>
    %cst_76 = arith.constant dense<0.000000e+00> : vector<8x384xf32>
    %236 = tpu.matmul %225, %27, %cst_76 {dimension_numbers = #tpu.dot_dimension_numbers<[1], [0], [0], [1], [0, 0, 1, 1], [], []>} : vector<8x32xf32>, vector<32x384xf32>, vector<8x384xf32> -> vector<8x384xf32>
    %237 = arith.addf %236, %31 : vector<8x384xf32>
    %238 = vector.extract_strided_slice %235 {offsets = [0, 0], sizes = [8, 32], strides = [1, 1]} : vector<8x384xf32> to vector<8x32xf32>
    %239 = vector.extract_strided_slice %237 {offsets = [0, 0], sizes = [8, 32], strides = [1, 1]} : vector<8x384xf32> to vector<8x32xf32>
    %240 = arith.addf %238, %239 : vector<8x32xf32>
    %241 = arith.negf %240 : vector<8x32xf32>
    %242 = math.exp %241 : vector<8x32xf32>
    %cst_77 = arith.constant 1.000000e+00 : f32
    %243 = vector.broadcast %cst_77 : f32 to vector<8x32xf32>
    %244 = arith.addf %243, %242 : vector<8x32xf32>
    %245 = arith.divf %243, %244 : vector<8x32xf32>
    %246 = vector.extract_strided_slice %235 {offsets = [0, 128], sizes = [8, 32], strides = [1, 1]} : vector<8x384xf32> to vector<8x32xf32>
    %247 = vector.extract_strided_slice %237 {offsets = [0, 128], sizes = [8, 32], strides = [1, 1]} : vector<8x384xf32> to vector<8x32xf32>
    %248 = arith.addf %246, %247 : vector<8x32xf32>
    %249 = arith.negf %248 : vector<8x32xf32>
    %250 = math.exp %249 : vector<8x32xf32>
    %cst_78 = arith.constant 1.000000e+00 : f32
    %251 = vector.broadcast %cst_78 : f32 to vector<8x32xf32>
    %252 = arith.addf %251, %250 : vector<8x32xf32>
    %253 = arith.divf %251, %252 : vector<8x32xf32>
    %254 = vector.extract_strided_slice %235 {offsets = [0, 256], sizes = [8, 32], strides = [1, 1]} : vector<8x384xf32> to vector<8x32xf32>
    %255 = vector.extract_strided_slice %237 {offsets = [0, 256], sizes = [8, 32], strides = [1, 1]} : vector<8x384xf32> to vector<8x32xf32>
    %256 = arith.mulf %245, %255 : vector<8x32xf32>
    %257 = arith.addf %254, %256 : vector<8x32xf32>
    %258 = math.tanh %257 : vector<8x32xf32>
    %cst_79 = arith.constant 1.000000e+00 : f32
    %259 = vector.broadcast %cst_79 : f32 to vector<8x32xf32>
    %260 = arith.subf %259, %253 : vector<8x32xf32>
    %261 = arith.mulf %260, %258 : vector<8x32xf32>
    %262 = arith.mulf %253, %225 : vector<8x32xf32>
    %263 = arith.addf %261, %262 : vector<8x32xf32>
    %264 = arith.index_cast %227 : i32 to index
    %c0_80 = arith.constant 0 : index
    %265 = vector.load %arg2[%264, %c0_80] : memref<64x32xf32, #tpu.memory_space<vmem>>, vector<8x32xf32>
    %266 = arith.mulf %265, %263 : vector<8x32xf32>
    %267 = arith.index_cast %227 : i32 to index
    %c0_81 = arith.constant 0 : index
    %268 = vector.load %arg11[%267, %c0_81] : memref<64x32xf32, #tpu.memory_space<vmem>>, vector<8x32xf32>
    tpu.vector_store %arg11[%267, %c0_81], %266 masked %2 {strides = array<i32>} : memref<64x32xf32, #tpu.memory_space<vmem>>, vector<8x32xf32>, vector<8x32xi1>
    %269 = arith.index_cast %230 : i32 to index
    %c0_82 = arith.constant 0 : index
    %270 = vector.load %arg11[%269, %c0_82] : memref<64x32xf32, #tpu.memory_space<vmem>>, vector<8x32xf32>
    tpu.vector_store %arg11[%269, %c0_82], %266 masked %3 {strides = array<i32>} : memref<64x32xf32, #tpu.memory_space<vmem>>, vector<8x32xf32>, vector<8x32xi1>
    %271 = arith.subf %263, %225 : vector<8x32xf32>
    %272 = arith.mulf %265, %271 : vector<8x32xf32>
    %273 = arith.addf %225, %272 : vector<8x32xf32>
    %c5_i32 = arith.constant 5 : i32
    %c8_i32_83 = arith.constant 8 : i32
    %274 = arith.muli %c5_i32, %c8_i32_83 : i32
    %275 = tpu.assume_multiple %274, 8 : i32
    %c7_i32_84 = arith.constant 7 : i32
    %276 = arith.subi %c7_i32_84, %c5_i32 : i32
    %c8_i32_85 = arith.constant 8 : i32
    %277 = arith.muli %276, %c8_i32_85 : i32
    %278 = tpu.assume_multiple %277, 8 : i32
    %279 = arith.index_cast %275 : i32 to index
    %c0_86 = arith.constant 0 : index
    %280 = vector.load %arg10[%279, %c0_86] : memref<64x384xf32, #tpu.memory_space<vmem>>, vector<8x384xf32>
    %281 = arith.index_cast %278 : i32 to index
    %c0_87 = arith.constant 0 : index
    %282 = vector.load %arg10[%281, %c0_87] : memref<64x384xf32, #tpu.memory_space<vmem>>, vector<8x384xf32>
    %283 = arith.select %8, %280, %282 : vector<8x384xi1>, vector<8x384xf32>
    %cst_88 = arith.constant dense<0.000000e+00> : vector<8x384xf32>
    %284 = tpu.matmul %273, %27, %cst_88 {dimension_numbers = #tpu.dot_dimension_numbers<[1], [0], [0], [1], [0, 0, 1, 1], [], []>} : vector<8x32xf32>, vector<32x384xf32>, vector<8x384xf32> -> vector<8x384xf32>
    %285 = arith.addf %284, %31 : vector<8x384xf32>
    %286 = vector.extract_strided_slice %283 {offsets = [0, 0], sizes = [8, 32], strides = [1, 1]} : vector<8x384xf32> to vector<8x32xf32>
    %287 = vector.extract_strided_slice %285 {offsets = [0, 0], sizes = [8, 32], strides = [1, 1]} : vector<8x384xf32> to vector<8x32xf32>
    %288 = arith.addf %286, %287 : vector<8x32xf32>
    %289 = arith.negf %288 : vector<8x32xf32>
    %290 = math.exp %289 : vector<8x32xf32>
    %cst_89 = arith.constant 1.000000e+00 : f32
    %291 = vector.broadcast %cst_89 : f32 to vector<8x32xf32>
    %292 = arith.addf %291, %290 : vector<8x32xf32>
    %293 = arith.divf %291, %292 : vector<8x32xf32>
    %294 = vector.extract_strided_slice %283 {offsets = [0, 128], sizes = [8, 32], strides = [1, 1]} : vector<8x384xf32> to vector<8x32xf32>
    %295 = vector.extract_strided_slice %285 {offsets = [0, 128], sizes = [8, 32], strides = [1, 1]} : vector<8x384xf32> to vector<8x32xf32>
    %296 = arith.addf %294, %295 : vector<8x32xf32>
    %297 = arith.negf %296 : vector<8x32xf32>
    %298 = math.exp %297 : vector<8x32xf32>
    %cst_90 = arith.constant 1.000000e+00 : f32
    %299 = vector.broadcast %cst_90 : f32 to vector<8x32xf32>
    %300 = arith.addf %299, %298 : vector<8x32xf32>
    %301 = arith.divf %299, %300 : vector<8x32xf32>
    %302 = vector.extract_strided_slice %283 {offsets = [0, 256], sizes = [8, 32], strides = [1, 1]} : vector<8x384xf32> to vector<8x32xf32>
    %303 = vector.extract_strided_slice %285 {offsets = [0, 256], sizes = [8, 32], strides = [1, 1]} : vector<8x384xf32> to vector<8x32xf32>
    %304 = arith.mulf %293, %303 : vector<8x32xf32>
    %305 = arith.addf %302, %304 : vector<8x32xf32>
    %306 = math.tanh %305 : vector<8x32xf32>
    %cst_91 = arith.constant 1.000000e+00 : f32
    %307 = vector.broadcast %cst_91 : f32 to vector<8x32xf32>
    %308 = arith.subf %307, %301 : vector<8x32xf32>
    %309 = arith.mulf %308, %306 : vector<8x32xf32>
    %310 = arith.mulf %301, %273 : vector<8x32xf32>
    %311 = arith.addf %309, %310 : vector<8x32xf32>
    %312 = arith.index_cast %275 : i32 to index
    %c0_92 = arith.constant 0 : index
    %313 = vector.load %arg2[%312, %c0_92] : memref<64x32xf32, #tpu.memory_space<vmem>>, vector<8x32xf32>
    %314 = arith.mulf %313, %311 : vector<8x32xf32>
    %315 = arith.index_cast %275 : i32 to index
    %c0_93 = arith.constant 0 : index
    %316 = vector.load %arg11[%315, %c0_93] : memref<64x32xf32, #tpu.memory_space<vmem>>, vector<8x32xf32>
    tpu.vector_store %arg11[%315, %c0_93], %314 masked %2 {strides = array<i32>} : memref<64x32xf32, #tpu.memory_space<vmem>>, vector<8x32xf32>, vector<8x32xi1>
    %317 = arith.index_cast %278 : i32 to index
    %c0_94 = arith.constant 0 : index
    %318 = vector.load %arg11[%317, %c0_94] : memref<64x32xf32, #tpu.memory_space<vmem>>, vector<8x32xf32>
    tpu.vector_store %arg11[%317, %c0_94], %314 masked %3 {strides = array<i32>} : memref<64x32xf32, #tpu.memory_space<vmem>>, vector<8x32xf32>, vector<8x32xi1>
    %319 = arith.subf %311, %273 : vector<8x32xf32>
    %320 = arith.mulf %313, %319 : vector<8x32xf32>
    %321 = arith.addf %273, %320 : vector<8x32xf32>
    %c6_i32 = arith.constant 6 : i32
    %c8_i32_95 = arith.constant 8 : i32
    %322 = arith.muli %c6_i32, %c8_i32_95 : i32
    %323 = tpu.assume_multiple %322, 8 : i32
    %c7_i32_96 = arith.constant 7 : i32
    %324 = arith.subi %c7_i32_96, %c6_i32 : i32
    %c8_i32_97 = arith.constant 8 : i32
    %325 = arith.muli %324, %c8_i32_97 : i32
    %326 = tpu.assume_multiple %325, 8 : i32
    %327 = arith.index_cast %323 : i32 to index
    %c0_98 = arith.constant 0 : index
    %328 = vector.load %arg10[%327, %c0_98] : memref<64x384xf32, #tpu.memory_space<vmem>>, vector<8x384xf32>
    %329 = arith.index_cast %326 : i32 to index
    %c0_99 = arith.constant 0 : index
    %330 = vector.load %arg10[%329, %c0_99] : memref<64x384xf32, #tpu.memory_space<vmem>>, vector<8x384xf32>
    %331 = arith.select %8, %328, %330 : vector<8x384xi1>, vector<8x384xf32>
    %cst_100 = arith.constant dense<0.000000e+00> : vector<8x384xf32>
    %332 = tpu.matmul %321, %27, %cst_100 {dimension_numbers = #tpu.dot_dimension_numbers<[1], [0], [0], [1], [0, 0, 1, 1], [], []>} : vector<8x32xf32>, vector<32x384xf32>, vector<8x384xf32> -> vector<8x384xf32>
    %333 = arith.addf %332, %31 : vector<8x384xf32>
    %334 = vector.extract_strided_slice %331 {offsets = [0, 0], sizes = [8, 32], strides = [1, 1]} : vector<8x384xf32> to vector<8x32xf32>
    %335 = vector.extract_strided_slice %333 {offsets = [0, 0], sizes = [8, 32], strides = [1, 1]} : vector<8x384xf32> to vector<8x32xf32>
    %336 = arith.addf %334, %335 : vector<8x32xf32>
    %337 = arith.negf %336 : vector<8x32xf32>
    %338 = math.exp %337 : vector<8x32xf32>
    %cst_101 = arith.constant 1.000000e+00 : f32
    %339 = vector.broadcast %cst_101 : f32 to vector<8x32xf32>
    %340 = arith.addf %339, %338 : vector<8x32xf32>
    %341 = arith.divf %339, %340 : vector<8x32xf32>
    %342 = vector.extract_strided_slice %331 {offsets = [0, 128], sizes = [8, 32], strides = [1, 1]} : vector<8x384xf32> to vector<8x32xf32>
    %343 = vector.extract_strided_slice %333 {offsets = [0, 128], sizes = [8, 32], strides = [1, 1]} : vector<8x384xf32> to vector<8x32xf32>
    %344 = arith.addf %342, %343 : vector<8x32xf32>
    %345 = arith.negf %344 : vector<8x32xf32>
    %346 = math.exp %345 : vector<8x32xf32>
    %cst_102 = arith.constant 1.000000e+00 : f32
    %347 = vector.broadcast %cst_102 : f32 to vector<8x32xf32>
    %348 = arith.addf %347, %346 : vector<8x32xf32>
    %349 = arith.divf %347, %348 : vector<8x32xf32>
    %350 = vector.extract_strided_slice %331 {offsets = [0, 256], sizes = [8, 32], strides = [1, 1]} : vector<8x384xf32> to vector<8x32xf32>
    %351 = vector.extract_strided_slice %333 {offsets = [0, 256], sizes = [8, 32], strides = [1, 1]} : vector<8x384xf32> to vector<8x32xf32>
    %352 = arith.mulf %341, %351 : vector<8x32xf32>
    %353 = arith.addf %350, %352 : vector<8x32xf32>
    %354 = math.tanh %353 : vector<8x32xf32>
    %cst_103 = arith.constant 1.000000e+00 : f32
    %355 = vector.broadcast %cst_103 : f32 to vector<8x32xf32>
    %356 = arith.subf %355, %349 : vector<8x32xf32>
    %357 = arith.mulf %356, %354 : vector<8x32xf32>
    %358 = arith.mulf %349, %321 : vector<8x32xf32>
    %359 = arith.addf %357, %358 : vector<8x32xf32>
    %360 = arith.index_cast %323 : i32 to index
    %c0_104 = arith.constant 0 : index
    %361 = vector.load %arg2[%360, %c0_104] : memref<64x32xf32, #tpu.memory_space<vmem>>, vector<8x32xf32>
    %362 = arith.mulf %361, %359 : vector<8x32xf32>
    %363 = arith.index_cast %323 : i32 to index
    %c0_105 = arith.constant 0 : index
    %364 = vector.load %arg11[%363, %c0_105] : memref<64x32xf32, #tpu.memory_space<vmem>>, vector<8x32xf32>
    tpu.vector_store %arg11[%363, %c0_105], %362 masked %2 {strides = array<i32>} : memref<64x32xf32, #tpu.memory_space<vmem>>, vector<8x32xf32>, vector<8x32xi1>
    %365 = arith.index_cast %326 : i32 to index
    %c0_106 = arith.constant 0 : index
    %366 = vector.load %arg11[%365, %c0_106] : memref<64x32xf32, #tpu.memory_space<vmem>>, vector<8x32xf32>
    tpu.vector_store %arg11[%365, %c0_106], %362 masked %3 {strides = array<i32>} : memref<64x32xf32, #tpu.memory_space<vmem>>, vector<8x32xf32>, vector<8x32xi1>
    %367 = arith.subf %359, %321 : vector<8x32xf32>
    %368 = arith.mulf %361, %367 : vector<8x32xf32>
    %369 = arith.addf %321, %368 : vector<8x32xf32>
    %c7_i32_107 = arith.constant 7 : i32
    %c8_i32_108 = arith.constant 8 : i32
    %370 = arith.muli %c7_i32_107, %c8_i32_108 : i32
    %371 = tpu.assume_multiple %370, 8 : i32
    %c7_i32_109 = arith.constant 7 : i32
    %372 = arith.subi %c7_i32_109, %c7_i32_107 : i32
    %c8_i32_110 = arith.constant 8 : i32
    %373 = arith.muli %372, %c8_i32_110 : i32
    %374 = tpu.assume_multiple %373, 8 : i32
    %375 = arith.index_cast %371 : i32 to index
    %c0_111 = arith.constant 0 : index
    %376 = vector.load %arg10[%375, %c0_111] : memref<64x384xf32, #tpu.memory_space<vmem>>, vector<8x384xf32>
    %377 = arith.index_cast %374 : i32 to index
    %c0_112 = arith.constant 0 : index
    %378 = vector.load %arg10[%377, %c0_112] : memref<64x384xf32, #tpu.memory_space<vmem>>, vector<8x384xf32>
    %379 = arith.select %8, %376, %378 : vector<8x384xi1>, vector<8x384xf32>
    %cst_113 = arith.constant dense<0.000000e+00> : vector<8x384xf32>
    %380 = tpu.matmul %369, %27, %cst_113 {dimension_numbers = #tpu.dot_dimension_numbers<[1], [0], [0], [1], [0, 0, 1, 1], [], []>} : vector<8x32xf32>, vector<32x384xf32>, vector<8x384xf32> -> vector<8x384xf32>
    %381 = arith.addf %380, %31 : vector<8x384xf32>
    %382 = vector.extract_strided_slice %379 {offsets = [0, 0], sizes = [8, 32], strides = [1, 1]} : vector<8x384xf32> to vector<8x32xf32>
    %383 = vector.extract_strided_slice %381 {offsets = [0, 0], sizes = [8, 32], strides = [1, 1]} : vector<8x384xf32> to vector<8x32xf32>
    %384 = arith.addf %382, %383 : vector<8x32xf32>
    %385 = arith.negf %384 : vector<8x32xf32>
    %386 = math.exp %385 : vector<8x32xf32>
    %cst_114 = arith.constant 1.000000e+00 : f32
    %387 = vector.broadcast %cst_114 : f32 to vector<8x32xf32>
    %388 = arith.addf %387, %386 : vector<8x32xf32>
    %389 = arith.divf %387, %388 : vector<8x32xf32>
    %390 = vector.extract_strided_slice %379 {offsets = [0, 128], sizes = [8, 32], strides = [1, 1]} : vector<8x384xf32> to vector<8x32xf32>
    %391 = vector.extract_strided_slice %381 {offsets = [0, 128], sizes = [8, 32], strides = [1, 1]} : vector<8x384xf32> to vector<8x32xf32>
    %392 = arith.addf %390, %391 : vector<8x32xf32>
    %393 = arith.negf %392 : vector<8x32xf32>
    %394 = math.exp %393 : vector<8x32xf32>
    %cst_115 = arith.constant 1.000000e+00 : f32
    %395 = vector.broadcast %cst_115 : f32 to vector<8x32xf32>
    %396 = arith.addf %395, %394 : vector<8x32xf32>
    %397 = arith.divf %395, %396 : vector<8x32xf32>
    %398 = vector.extract_strided_slice %379 {offsets = [0, 256], sizes = [8, 32], strides = [1, 1]} : vector<8x384xf32> to vector<8x32xf32>
    %399 = vector.extract_strided_slice %381 {offsets = [0, 256], sizes = [8, 32], strides = [1, 1]} : vector<8x384xf32> to vector<8x32xf32>
    %400 = arith.mulf %389, %399 : vector<8x32xf32>
    %401 = arith.addf %398, %400 : vector<8x32xf32>
    %402 = math.tanh %401 : vector<8x32xf32>
    %cst_116 = arith.constant 1.000000e+00 : f32
    %403 = vector.broadcast %cst_116 : f32 to vector<8x32xf32>
    %404 = arith.subf %403, %397 : vector<8x32xf32>
    %405 = arith.mulf %404, %402 : vector<8x32xf32>
    %406 = arith.mulf %397, %369 : vector<8x32xf32>
    %407 = arith.addf %405, %406 : vector<8x32xf32>
    %408 = arith.index_cast %371 : i32 to index
    %c0_117 = arith.constant 0 : index
    %409 = vector.load %arg2[%408, %c0_117] : memref<64x32xf32, #tpu.memory_space<vmem>>, vector<8x32xf32>
    %410 = arith.mulf %409, %407 : vector<8x32xf32>
    %411 = arith.index_cast %371 : i32 to index
    %c0_118 = arith.constant 0 : index
    %412 = vector.load %arg11[%411, %c0_118] : memref<64x32xf32, #tpu.memory_space<vmem>>, vector<8x32xf32>
    tpu.vector_store %arg11[%411, %c0_118], %410 masked %2 {strides = array<i32>} : memref<64x32xf32, #tpu.memory_space<vmem>>, vector<8x32xf32>, vector<8x32xi1>
    %413 = arith.index_cast %374 : i32 to index
    %c0_119 = arith.constant 0 : index
    %414 = vector.load %arg11[%413, %c0_119] : memref<64x32xf32, #tpu.memory_space<vmem>>, vector<8x32xf32>
    tpu.vector_store %arg11[%413, %c0_119], %410 masked %3 {strides = array<i32>} : memref<64x32xf32, #tpu.memory_space<vmem>>, vector<8x32xf32>, vector<8x32xi1>
    %415 = arith.subf %407, %369 : vector<8x32xf32>
    %416 = arith.mulf %409, %415 : vector<8x32xf32>
    %417 = arith.addf %369, %416 : vector<8x32xf32>
    %c8_i32_120 = arith.constant 8 : i32
    %c0_121 = arith.constant 0 : index
    %c0_122 = arith.constant 0 : index
    %c0_123 = arith.constant 0 : index
    %418 = vector.load %arg9[%c0_121, %c0_122, %c0_123] : memref<2x8x32xf32, #tpu.memory_space<vmem>>, vector<1x8x32xf32>
    %419 = vector.shape_cast %418 : vector<1x8x32xf32> to vector<8x32xf32>
    %420 = vector.shape_cast %417 : vector<8x32xf32> to vector<1x8x32xf32>
    tpu.vector_store %arg9[%c0_121, %c0_122, %c0_123], %420 {strides = array<i32>} : memref<2x8x32xf32, #tpu.memory_space<vmem>>, vector<1x8x32xf32>,
    %c0_124 = arith.constant 0 : index
    %c0_125 = arith.constant 0 : index
    %421 = vector.load %arg11[%c0_124, %c0_125] : memref<64x32xf32, #tpu.memory_space<vmem>>, vector<64x32xf32>
    %c1 = arith.constant 1 : index
    %c0_126 = arith.constant 0 : index
    %c0_127 = arith.constant 0 : index
    %422 = vector.load %arg4[%c1, %c0_126, %c0_127] : memref<2x32x384xf32, #tpu.memory_space<vmem>>, vector<1x32x384xf32>
    %423 = vector.shape_cast %422 : vector<1x32x384xf32> to vector<32x384xf32>
    %cst_128 = arith.constant dense<0.000000e+00> : vector<64x384xf32>
    %424 = tpu.matmul %421, %423, %cst_128 {dimension_numbers = #tpu.dot_dimension_numbers<[1], [0], [0], [1], [0, 0, 1, 1], [], []>} : vector<64x32xf32>, vector<32x384xf32>, vector<64x384xf32> -> vector<64x384xf32>
    %c1_129 = arith.constant 1 : index
    %c0_130 = arith.constant 0 : index
    %c0_131 = arith.constant 0 : index
    %425 = vector.load %arg5[%c1_129, %c0_130, %c0_131] : memref<2x1x384xf32, #tpu.memory_space<vmem>>, vector<1x1x384xf32>
    %426 = vector.shape_cast %425 : vector<1x1x384xf32> to vector<1x384xf32>
    %427 = vector.broadcast %426 : vector<1x384xf32> to vector<64x384xf32>
    %428 = arith.addf %424, %427 : vector<64x384xf32>
    %c0_132 = arith.constant 0 : index
    %c0_133 = arith.constant 0 : index
    %429 = vector.load %arg10[%c0_132, %c0_133] : memref<64x384xf32, #tpu.memory_space<vmem>>, vector<64x384xf32>
    tpu.vector_store %arg10[%c0_132, %c0_133], %428 {strides = array<i32>} : memref<64x384xf32, #tpu.memory_space<vmem>>, vector<64x384xf32>,
    %c1_134 = arith.constant 1 : index
    %c0_135 = arith.constant 0 : index
    %c0_136 = arith.constant 0 : index
    %430 = vector.load %arg6[%c1_134, %c0_135, %c0_136] : memref<2x32x384xf32, #tpu.memory_space<vmem>>, vector<1x32x384xf32>
    %431 = vector.shape_cast %430 : vector<1x32x384xf32> to vector<32x384xf32>
    %c1_137 = arith.constant 1 : index
    %c0_138 = arith.constant 0 : index
    %c0_139 = arith.constant 0 : index
    %432 = vector.load %arg7[%c1_137, %c0_138, %c0_139] : memref<2x1x384xf32, #tpu.memory_space<vmem>>, vector<1x1x384xf32>
    %433 = vector.shape_cast %432 : vector<1x1x384xf32> to vector<1x384xf32>
    %434 = vector.shape_cast %433 : vector<1x384xf32> to vector<1x384xf32>
    %435 = vector.broadcast %434 : vector<1x384xf32> to vector<8x384xf32>
    %c1_140 = arith.constant 1 : index
    %c0_141 = arith.constant 0 : index
    %c0_142 = arith.constant 0 : index
    %436 = vector.load %arg3[%c1_140, %c0_141, %c0_142] : memref<2x8x32xf32, #tpu.memory_space<vmem>>, vector<1x8x32xf32>
    %437 = vector.shape_cast %436 : vector<1x8x32xf32> to vector<8x32xf32>
    %c0_i32_143 = arith.constant 0 : i32
    %c8_i32_144 = arith.constant 8 : i32
    %438 = arith.muli %c0_i32_143, %c8_i32_144 : i32
    %439 = tpu.assume_multiple %438, 8 : i32
    %c7_i32_145 = arith.constant 7 : i32
    %440 = arith.subi %c7_i32_145, %c0_i32_143 : i32
    %c8_i32_146 = arith.constant 8 : i32
    %441 = arith.muli %440, %c8_i32_146 : i32
    %442 = tpu.assume_multiple %441, 8 : i32
    %443 = arith.index_cast %439 : i32 to index
    %c0_147 = arith.constant 0 : index
    %444 = vector.load %arg10[%443, %c0_147] : memref<64x384xf32, #tpu.memory_space<vmem>>, vector<8x384xf32>
    %445 = arith.index_cast %442 : i32 to index
    %c0_148 = arith.constant 0 : index
    %446 = vector.load %arg10[%445, %c0_148] : memref<64x384xf32, #tpu.memory_space<vmem>>, vector<8x384xf32>
    %447 = arith.select %8, %444, %446 : vector<8x384xi1>, vector<8x384xf32>
    %cst_149 = arith.constant dense<0.000000e+00> : vector<8x384xf32>
    %448 = tpu.matmul %437, %431, %cst_149 {dimension_numbers = #tpu.dot_dimension_numbers<[1], [0], [0], [1], [0, 0, 1, 1], [], []>} : vector<8x32xf32>, vector<32x384xf32>, vector<8x384xf32> -> vector<8x384xf32>
    %449 = arith.addf %448, %435 : vector<8x384xf32>
    %450 = vector.extract_strided_slice %447 {offsets = [0, 0], sizes = [8, 32], strides = [1, 1]} : vector<8x384xf32> to vector<8x32xf32>
    %451 = vector.extract_strided_slice %449 {offsets = [0, 0], sizes = [8, 32], strides = [1, 1]} : vector<8x384xf32> to vector<8x32xf32>
    %452 = arith.addf %450, %451 : vector<8x32xf32>
    %453 = arith.negf %452 : vector<8x32xf32>
    %454 = math.exp %453 : vector<8x32xf32>
    %cst_150 = arith.constant 1.000000e+00 : f32
    %455 = vector.broadcast %cst_150 : f32 to vector<8x32xf32>
    %456 = arith.addf %455, %454 : vector<8x32xf32>
    %457 = arith.divf %455, %456 : vector<8x32xf32>
    %458 = vector.extract_strided_slice %447 {offsets = [0, 128], sizes = [8, 32], strides = [1, 1]} : vector<8x384xf32> to vector<8x32xf32>
    %459 = vector.extract_strided_slice %449 {offsets = [0, 128], sizes = [8, 32], strides = [1, 1]} : vector<8x384xf32> to vector<8x32xf32>
    %460 = arith.addf %458, %459 : vector<8x32xf32>
    %461 = arith.negf %460 : vector<8x32xf32>
    %462 = math.exp %461 : vector<8x32xf32>
    %cst_151 = arith.constant 1.000000e+00 : f32
    %463 = vector.broadcast %cst_151 : f32 to vector<8x32xf32>
    %464 = arith.addf %463, %462 : vector<8x32xf32>
    %465 = arith.divf %463, %464 : vector<8x32xf32>
    %466 = vector.extract_strided_slice %447 {offsets = [0, 256], sizes = [8, 32], strides = [1, 1]} : vector<8x384xf32> to vector<8x32xf32>
    %467 = vector.extract_strided_slice %449 {offsets = [0, 256], sizes = [8, 32], strides = [1, 1]} : vector<8x384xf32> to vector<8x32xf32>
    %468 = arith.mulf %457, %467 : vector<8x32xf32>
    %469 = arith.addf %466, %468 : vector<8x32xf32>
    %470 = math.tanh %469 : vector<8x32xf32>
    %cst_152 = arith.constant 1.000000e+00 : f32
    %471 = vector.broadcast %cst_152 : f32 to vector<8x32xf32>
    %472 = arith.subf %471, %465 : vector<8x32xf32>
    %473 = arith.mulf %472, %470 : vector<8x32xf32>
    %474 = arith.mulf %465, %437 : vector<8x32xf32>
    %475 = arith.addf %473, %474 : vector<8x32xf32>
    %476 = arith.index_cast %439 : i32 to index
    %c0_153 = arith.constant 0 : index
    %477 = vector.load %arg2[%476, %c0_153] : memref<64x32xf32, #tpu.memory_space<vmem>>, vector<8x32xf32>
    %478 = arith.mulf %477, %475 : vector<8x32xf32>
    %479 = arith.index_cast %439 : i32 to index
    %c0_154 = arith.constant 0 : index
    %480 = vector.load %arg8[%479, %c0_154] : memref<64x32xf32, #tpu.memory_space<vmem>>, vector<8x32xf32>
    tpu.vector_store %arg8[%479, %c0_154], %478 masked %2 {strides = array<i32>} : memref<64x32xf32, #tpu.memory_space<vmem>>, vector<8x32xf32>, vector<8x32xi1>
    %481 = arith.index_cast %442 : i32 to index
    %c0_155 = arith.constant 0 : index
    %482 = vector.load %arg8[%481, %c0_155] : memref<64x32xf32, #tpu.memory_space<vmem>>, vector<8x32xf32>
    tpu.vector_store %arg8[%481, %c0_155], %478 masked %3 {strides = array<i32>} : memref<64x32xf32, #tpu.memory_space<vmem>>, vector<8x32xf32>, vector<8x32xi1>
    %483 = arith.subf %475, %437 : vector<8x32xf32>
    %484 = arith.mulf %477, %483 : vector<8x32xf32>
    %485 = arith.addf %437, %484 : vector<8x32xf32>
    %c1_i32_156 = arith.constant 1 : i32
    %c8_i32_157 = arith.constant 8 : i32
    %486 = arith.muli %c1_i32_156, %c8_i32_157 : i32
    %487 = tpu.assume_multiple %486, 8 : i32
    %c7_i32_158 = arith.constant 7 : i32
    %488 = arith.subi %c7_i32_158, %c1_i32_156 : i32
    %c8_i32_159 = arith.constant 8 : i32
    %489 = arith.muli %488, %c8_i32_159 : i32
    %490 = tpu.assume_multiple %489, 8 : i32
    %491 = arith.index_cast %487 : i32 to index
    %c0_160 = arith.constant 0 : index
    %492 = vector.load %arg10[%491, %c0_160] : memref<64x384xf32, #tpu.memory_space<vmem>>, vector<8x384xf32>
    %493 = arith.index_cast %490 : i32 to index
    %c0_161 = arith.constant 0 : index
    %494 = vector.load %arg10[%493, %c0_161] : memref<64x384xf32, #tpu.memory_space<vmem>>, vector<8x384xf32>
    %495 = arith.select %8, %492, %494 : vector<8x384xi1>, vector<8x384xf32>
    %cst_162 = arith.constant dense<0.000000e+00> : vector<8x384xf32>
    %496 = tpu.matmul %485, %431, %cst_162 {dimension_numbers = #tpu.dot_dimension_numbers<[1], [0], [0], [1], [0, 0, 1, 1], [], []>} : vector<8x32xf32>, vector<32x384xf32>, vector<8x384xf32> -> vector<8x384xf32>
    %497 = arith.addf %496, %435 : vector<8x384xf32>
    %498 = vector.extract_strided_slice %495 {offsets = [0, 0], sizes = [8, 32], strides = [1, 1]} : vector<8x384xf32> to vector<8x32xf32>
    %499 = vector.extract_strided_slice %497 {offsets = [0, 0], sizes = [8, 32], strides = [1, 1]} : vector<8x384xf32> to vector<8x32xf32>
    %500 = arith.addf %498, %499 : vector<8x32xf32>
    %501 = arith.negf %500 : vector<8x32xf32>
    %502 = math.exp %501 : vector<8x32xf32>
    %cst_163 = arith.constant 1.000000e+00 : f32
    %503 = vector.broadcast %cst_163 : f32 to vector<8x32xf32>
    %504 = arith.addf %503, %502 : vector<8x32xf32>
    %505 = arith.divf %503, %504 : vector<8x32xf32>
    %506 = vector.extract_strided_slice %495 {offsets = [0, 128], sizes = [8, 32], strides = [1, 1]} : vector<8x384xf32> to vector<8x32xf32>
    %507 = vector.extract_strided_slice %497 {offsets = [0, 128], sizes = [8, 32], strides = [1, 1]} : vector<8x384xf32> to vector<8x32xf32>
    %508 = arith.addf %506, %507 : vector<8x32xf32>
    %509 = arith.negf %508 : vector<8x32xf32>
    %510 = math.exp %509 : vector<8x32xf32>
    %cst_164 = arith.constant 1.000000e+00 : f32
    %511 = vector.broadcast %cst_164 : f32 to vector<8x32xf32>
    %512 = arith.addf %511, %510 : vector<8x32xf32>
    %513 = arith.divf %511, %512 : vector<8x32xf32>
    %514 = vector.extract_strided_slice %495 {offsets = [0, 256], sizes = [8, 32], strides = [1, 1]} : vector<8x384xf32> to vector<8x32xf32>
    %515 = vector.extract_strided_slice %497 {offsets = [0, 256], sizes = [8, 32], strides = [1, 1]} : vector<8x384xf32> to vector<8x32xf32>
    %516 = arith.mulf %505, %515 : vector<8x32xf32>
    %517 = arith.addf %514, %516 : vector<8x32xf32>
    %518 = math.tanh %517 : vector<8x32xf32>
    %cst_165 = arith.constant 1.000000e+00 : f32
    %519 = vector.broadcast %cst_165 : f32 to vector<8x32xf32>
    %520 = arith.subf %519, %513 : vector<8x32xf32>
    %521 = arith.mulf %520, %518 : vector<8x32xf32>
    %522 = arith.mulf %513, %485 : vector<8x32xf32>
    %523 = arith.addf %521, %522 : vector<8x32xf32>
    %524 = arith.index_cast %487 : i32 to index
    %c0_166 = arith.constant 0 : index
    %525 = vector.load %arg2[%524, %c0_166] : memref<64x32xf32, #tpu.memory_space<vmem>>, vector<8x32xf32>
    %526 = arith.mulf %525, %523 : vector<8x32xf32>
    %527 = arith.index_cast %487 : i32 to index
    %c0_167 = arith.constant 0 : index
    %528 = vector.load %arg8[%527, %c0_167] : memref<64x32xf32, #tpu.memory_space<vmem>>, vector<8x32xf32>
    tpu.vector_store %arg8[%527, %c0_167], %526 masked %2 {strides = array<i32>} : memref<64x32xf32, #tpu.memory_space<vmem>>, vector<8x32xf32>, vector<8x32xi1>
    %529 = arith.index_cast %490 : i32 to index
    %c0_168 = arith.constant 0 : index
    %530 = vector.load %arg8[%529, %c0_168] : memref<64x32xf32, #tpu.memory_space<vmem>>, vector<8x32xf32>
    tpu.vector_store %arg8[%529, %c0_168], %526 masked %3 {strides = array<i32>} : memref<64x32xf32, #tpu.memory_space<vmem>>, vector<8x32xf32>, vector<8x32xi1>
    %531 = arith.subf %523, %485 : vector<8x32xf32>
    %532 = arith.mulf %525, %531 : vector<8x32xf32>
    %533 = arith.addf %485, %532 : vector<8x32xf32>
    %c2_i32_169 = arith.constant 2 : i32
    %c8_i32_170 = arith.constant 8 : i32
    %534 = arith.muli %c2_i32_169, %c8_i32_170 : i32
    %535 = tpu.assume_multiple %534, 8 : i32
    %c7_i32_171 = arith.constant 7 : i32
    %536 = arith.subi %c7_i32_171, %c2_i32_169 : i32
    %c8_i32_172 = arith.constant 8 : i32
    %537 = arith.muli %536, %c8_i32_172 : i32
    %538 = tpu.assume_multiple %537, 8 : i32
    %539 = arith.index_cast %535 : i32 to index
    %c0_173 = arith.constant 0 : index
    %540 = vector.load %arg10[%539, %c0_173] : memref<64x384xf32, #tpu.memory_space<vmem>>, vector<8x384xf32>
    %541 = arith.index_cast %538 : i32 to index
    %c0_174 = arith.constant 0 : index
    %542 = vector.load %arg10[%541, %c0_174] : memref<64x384xf32, #tpu.memory_space<vmem>>, vector<8x384xf32>
    %543 = arith.select %8, %540, %542 : vector<8x384xi1>, vector<8x384xf32>
    %cst_175 = arith.constant dense<0.000000e+00> : vector<8x384xf32>
    %544 = tpu.matmul %533, %431, %cst_175 {dimension_numbers = #tpu.dot_dimension_numbers<[1], [0], [0], [1], [0, 0, 1, 1], [], []>} : vector<8x32xf32>, vector<32x384xf32>, vector<8x384xf32> -> vector<8x384xf32>
    %545 = arith.addf %544, %435 : vector<8x384xf32>
    %546 = vector.extract_strided_slice %543 {offsets = [0, 0], sizes = [8, 32], strides = [1, 1]} : vector<8x384xf32> to vector<8x32xf32>
    %547 = vector.extract_strided_slice %545 {offsets = [0, 0], sizes = [8, 32], strides = [1, 1]} : vector<8x384xf32> to vector<8x32xf32>
    %548 = arith.addf %546, %547 : vector<8x32xf32>
    %549 = arith.negf %548 : vector<8x32xf32>
    %550 = math.exp %549 : vector<8x32xf32>
    %cst_176 = arith.constant 1.000000e+00 : f32
    %551 = vector.broadcast %cst_176 : f32 to vector<8x32xf32>
    %552 = arith.addf %551, %550 : vector<8x32xf32>
    %553 = arith.divf %551, %552 : vector<8x32xf32>
    %554 = vector.extract_strided_slice %543 {offsets = [0, 128], sizes = [8, 32], strides = [1, 1]} : vector<8x384xf32> to vector<8x32xf32>
    %555 = vector.extract_strided_slice %545 {offsets = [0, 128], sizes = [8, 32], strides = [1, 1]} : vector<8x384xf32> to vector<8x32xf32>
    %556 = arith.addf %554, %555 : vector<8x32xf32>
    %557 = arith.negf %556 : vector<8x32xf32>
    %558 = math.exp %557 : vector<8x32xf32>
    %cst_177 = arith.constant 1.000000e+00 : f32
    %559 = vector.broadcast %cst_177 : f32 to vector<8x32xf32>
    %560 = arith.addf %559, %558 : vector<8x32xf32>
    %561 = arith.divf %559, %560 : vector<8x32xf32>
    %562 = vector.extract_strided_slice %543 {offsets = [0, 256], sizes = [8, 32], strides = [1, 1]} : vector<8x384xf32> to vector<8x32xf32>
    %563 = vector.extract_strided_slice %545 {offsets = [0, 256], sizes = [8, 32], strides = [1, 1]} : vector<8x384xf32> to vector<8x32xf32>
    %564 = arith.mulf %553, %563 : vector<8x32xf32>
    %565 = arith.addf %562, %564 : vector<8x32xf32>
    %566 = math.tanh %565 : vector<8x32xf32>
    %cst_178 = arith.constant 1.000000e+00 : f32
    %567 = vector.broadcast %cst_178 : f32 to vector<8x32xf32>
    %568 = arith.subf %567, %561 : vector<8x32xf32>
    %569 = arith.mulf %568, %566 : vector<8x32xf32>
    %570 = arith.mulf %561, %533 : vector<8x32xf32>
    %571 = arith.addf %569, %570 : vector<8x32xf32>
    %572 = arith.index_cast %535 : i32 to index
    %c0_179 = arith.constant 0 : index
    %573 = vector.load %arg2[%572, %c0_179] : memref<64x32xf32, #tpu.memory_space<vmem>>, vector<8x32xf32>
    %574 = arith.mulf %573, %571 : vector<8x32xf32>
    %575 = arith.index_cast %535 : i32 to index
    %c0_180 = arith.constant 0 : index
    %576 = vector.load %arg8[%575, %c0_180] : memref<64x32xf32, #tpu.memory_space<vmem>>, vector<8x32xf32>
    tpu.vector_store %arg8[%575, %c0_180], %574 masked %2 {strides = array<i32>} : memref<64x32xf32, #tpu.memory_space<vmem>>, vector<8x32xf32>, vector<8x32xi1>
    %577 = arith.index_cast %538 : i32 to index
    %c0_181 = arith.constant 0 : index
    %578 = vector.load %arg8[%577, %c0_181] : memref<64x32xf32, #tpu.memory_space<vmem>>, vector<8x32xf32>
    tpu.vector_store %arg8[%577, %c0_181], %574 masked %3 {strides = array<i32>} : memref<64x32xf32, #tpu.memory_space<vmem>>, vector<8x32xf32>, vector<8x32xi1>
    %579 = arith.subf %571, %533 : vector<8x32xf32>
    %580 = arith.mulf %573, %579 : vector<8x32xf32>
    %581 = arith.addf %533, %580 : vector<8x32xf32>
    %c3_i32_182 = arith.constant 3 : i32
    %c8_i32_183 = arith.constant 8 : i32
    %582 = arith.muli %c3_i32_182, %c8_i32_183 : i32
    %583 = tpu.assume_multiple %582, 8 : i32
    %c7_i32_184 = arith.constant 7 : i32
    %584 = arith.subi %c7_i32_184, %c3_i32_182 : i32
    %c8_i32_185 = arith.constant 8 : i32
    %585 = arith.muli %584, %c8_i32_185 : i32
    %586 = tpu.assume_multiple %585, 8 : i32
    %587 = arith.index_cast %583 : i32 to index
    %c0_186 = arith.constant 0 : index
    %588 = vector.load %arg10[%587, %c0_186] : memref<64x384xf32, #tpu.memory_space<vmem>>, vector<8x384xf32>
    %589 = arith.index_cast %586 : i32 to index
    %c0_187 = arith.constant 0 : index
    %590 = vector.load %arg10[%589, %c0_187] : memref<64x384xf32, #tpu.memory_space<vmem>>, vector<8x384xf32>
    %591 = arith.select %8, %588, %590 : vector<8x384xi1>, vector<8x384xf32>
    %cst_188 = arith.constant dense<0.000000e+00> : vector<8x384xf32>
    %592 = tpu.matmul %581, %431, %cst_188 {dimension_numbers = #tpu.dot_dimension_numbers<[1], [0], [0], [1], [0, 0, 1, 1], [], []>} : vector<8x32xf32>, vector<32x384xf32>, vector<8x384xf32> -> vector<8x384xf32>
    %593 = arith.addf %592, %435 : vector<8x384xf32>
    %594 = vector.extract_strided_slice %591 {offsets = [0, 0], sizes = [8, 32], strides = [1, 1]} : vector<8x384xf32> to vector<8x32xf32>
    %595 = vector.extract_strided_slice %593 {offsets = [0, 0], sizes = [8, 32], strides = [1, 1]} : vector<8x384xf32> to vector<8x32xf32>
    %596 = arith.addf %594, %595 : vector<8x32xf32>
    %597 = arith.negf %596 : vector<8x32xf32>
    %598 = math.exp %597 : vector<8x32xf32>
    %cst_189 = arith.constant 1.000000e+00 : f32
    %599 = vector.broadcast %cst_189 : f32 to vector<8x32xf32>
    %600 = arith.addf %599, %598 : vector<8x32xf32>
    %601 = arith.divf %599, %600 : vector<8x32xf32>
    %602 = vector.extract_strided_slice %591 {offsets = [0, 128], sizes = [8, 32], strides = [1, 1]} : vector<8x384xf32> to vector<8x32xf32>
    %603 = vector.extract_strided_slice %593 {offsets = [0, 128], sizes = [8, 32], strides = [1, 1]} : vector<8x384xf32> to vector<8x32xf32>
    %604 = arith.addf %602, %603 : vector<8x32xf32>
    %605 = arith.negf %604 : vector<8x32xf32>
    %606 = math.exp %605 : vector<8x32xf32>
    %cst_190 = arith.constant 1.000000e+00 : f32
    %607 = vector.broadcast %cst_190 : f32 to vector<8x32xf32>
    %608 = arith.addf %607, %606 : vector<8x32xf32>
    %609 = arith.divf %607, %608 : vector<8x32xf32>
    %610 = vector.extract_strided_slice %591 {offsets = [0, 256], sizes = [8, 32], strides = [1, 1]} : vector<8x384xf32> to vector<8x32xf32>
    %611 = vector.extract_strided_slice %593 {offsets = [0, 256], sizes = [8, 32], strides = [1, 1]} : vector<8x384xf32> to vector<8x32xf32>
    %612 = arith.mulf %601, %611 : vector<8x32xf32>
    %613 = arith.addf %610, %612 : vector<8x32xf32>
    %614 = math.tanh %613 : vector<8x32xf32>
    %cst_191 = arith.constant 1.000000e+00 : f32
    %615 = vector.broadcast %cst_191 : f32 to vector<8x32xf32>
    %616 = arith.subf %615, %609 : vector<8x32xf32>
    %617 = arith.mulf %616, %614 : vector<8x32xf32>
    %618 = arith.mulf %609, %581 : vector<8x32xf32>
    %619 = arith.addf %617, %618 : vector<8x32xf32>
    %620 = arith.index_cast %583 : i32 to index
    %c0_192 = arith.constant 0 : index
    %621 = vector.load %arg2[%620, %c0_192] : memref<64x32xf32, #tpu.memory_space<vmem>>, vector<8x32xf32>
    %622 = arith.mulf %621, %619 : vector<8x32xf32>
    %623 = arith.index_cast %583 : i32 to index
    %c0_193 = arith.constant 0 : index
    %624 = vector.load %arg8[%623, %c0_193] : memref<64x32xf32, #tpu.memory_space<vmem>>, vector<8x32xf32>
    tpu.vector_store %arg8[%623, %c0_193], %622 masked %2 {strides = array<i32>} : memref<64x32xf32, #tpu.memory_space<vmem>>, vector<8x32xf32>, vector<8x32xi1>
    %625 = arith.index_cast %586 : i32 to index
    %c0_194 = arith.constant 0 : index
    %626 = vector.load %arg8[%625, %c0_194] : memref<64x32xf32, #tpu.memory_space<vmem>>, vector<8x32xf32>
    tpu.vector_store %arg8[%625, %c0_194], %622 masked %3 {strides = array<i32>} : memref<64x32xf32, #tpu.memory_space<vmem>>, vector<8x32xf32>, vector<8x32xi1>
    %627 = arith.subf %619, %581 : vector<8x32xf32>
    %628 = arith.mulf %621, %627 : vector<8x32xf32>
    %629 = arith.addf %581, %628 : vector<8x32xf32>
    %c4_i32_195 = arith.constant 4 : i32
    %c8_i32_196 = arith.constant 8 : i32
    %630 = arith.muli %c4_i32_195, %c8_i32_196 : i32
    %631 = tpu.assume_multiple %630, 8 : i32
    %c7_i32_197 = arith.constant 7 : i32
    %632 = arith.subi %c7_i32_197, %c4_i32_195 : i32
    %c8_i32_198 = arith.constant 8 : i32
    %633 = arith.muli %632, %c8_i32_198 : i32
    %634 = tpu.assume_multiple %633, 8 : i32
    %635 = arith.index_cast %631 : i32 to index
    %c0_199 = arith.constant 0 : index
    %636 = vector.load %arg10[%635, %c0_199] : memref<64x384xf32, #tpu.memory_space<vmem>>, vector<8x384xf32>
    %637 = arith.index_cast %634 : i32 to index
    %c0_200 = arith.constant 0 : index
    %638 = vector.load %arg10[%637, %c0_200] : memref<64x384xf32, #tpu.memory_space<vmem>>, vector<8x384xf32>
    %639 = arith.select %8, %636, %638 : vector<8x384xi1>, vector<8x384xf32>
    %cst_201 = arith.constant dense<0.000000e+00> : vector<8x384xf32>
    %640 = tpu.matmul %629, %431, %cst_201 {dimension_numbers = #tpu.dot_dimension_numbers<[1], [0], [0], [1], [0, 0, 1, 1], [], []>} : vector<8x32xf32>, vector<32x384xf32>, vector<8x384xf32> -> vector<8x384xf32>
    %641 = arith.addf %640, %435 : vector<8x384xf32>
    %642 = vector.extract_strided_slice %639 {offsets = [0, 0], sizes = [8, 32], strides = [1, 1]} : vector<8x384xf32> to vector<8x32xf32>
    %643 = vector.extract_strided_slice %641 {offsets = [0, 0], sizes = [8, 32], strides = [1, 1]} : vector<8x384xf32> to vector<8x32xf32>
    %644 = arith.addf %642, %643 : vector<8x32xf32>
    %645 = arith.negf %644 : vector<8x32xf32>
    %646 = math.exp %645 : vector<8x32xf32>
    %cst_202 = arith.constant 1.000000e+00 : f32
    %647 = vector.broadcast %cst_202 : f32 to vector<8x32xf32>
    %648 = arith.addf %647, %646 : vector<8x32xf32>
    %649 = arith.divf %647, %648 : vector<8x32xf32>
    %650 = vector.extract_strided_slice %639 {offsets = [0, 128], sizes = [8, 32], strides = [1, 1]} : vector<8x384xf32> to vector<8x32xf32>
    %651 = vector.extract_strided_slice %641 {offsets = [0, 128], sizes = [8, 32], strides = [1, 1]} : vector<8x384xf32> to vector<8x32xf32>
    %652 = arith.addf %650, %651 : vector<8x32xf32>
    %653 = arith.negf %652 : vector<8x32xf32>
    %654 = math.exp %653 : vector<8x32xf32>
    %cst_203 = arith.constant 1.000000e+00 : f32
    %655 = vector.broadcast %cst_203 : f32 to vector<8x32xf32>
    %656 = arith.addf %655, %654 : vector<8x32xf32>
    %657 = arith.divf %655, %656 : vector<8x32xf32>
    %658 = vector.extract_strided_slice %639 {offsets = [0, 256], sizes = [8, 32], strides = [1, 1]} : vector<8x384xf32> to vector<8x32xf32>
    %659 = vector.extract_strided_slice %641 {offsets = [0, 256], sizes = [8, 32], strides = [1, 1]} : vector<8x384xf32> to vector<8x32xf32>
    %660 = arith.mulf %649, %659 : vector<8x32xf32>
    %661 = arith.addf %658, %660 : vector<8x32xf32>
    %662 = math.tanh %661 : vector<8x32xf32>
    %cst_204 = arith.constant 1.000000e+00 : f32
    %663 = vector.broadcast %cst_204 : f32 to vector<8x32xf32>
    %664 = arith.subf %663, %657 : vector<8x32xf32>
    %665 = arith.mulf %664, %662 : vector<8x32xf32>
    %666 = arith.mulf %657, %629 : vector<8x32xf32>
    %667 = arith.addf %665, %666 : vector<8x32xf32>
    %668 = arith.index_cast %631 : i32 to index
    %c0_205 = arith.constant 0 : index
    %669 = vector.load %arg2[%668, %c0_205] : memref<64x32xf32, #tpu.memory_space<vmem>>, vector<8x32xf32>
    %670 = arith.mulf %669, %667 : vector<8x32xf32>
    %671 = arith.index_cast %631 : i32 to index
    %c0_206 = arith.constant 0 : index
    %672 = vector.load %arg8[%671, %c0_206] : memref<64x32xf32, #tpu.memory_space<vmem>>, vector<8x32xf32>
    tpu.vector_store %arg8[%671, %c0_206], %670 masked %2 {strides = array<i32>} : memref<64x32xf32, #tpu.memory_space<vmem>>, vector<8x32xf32>, vector<8x32xi1>
    %673 = arith.index_cast %634 : i32 to index
    %c0_207 = arith.constant 0 : index
    %674 = vector.load %arg8[%673, %c0_207] : memref<64x32xf32, #tpu.memory_space<vmem>>, vector<8x32xf32>
    tpu.vector_store %arg8[%673, %c0_207], %670 masked %3 {strides = array<i32>} : memref<64x32xf32, #tpu.memory_space<vmem>>, vector<8x32xf32>, vector<8x32xi1>
    %675 = arith.subf %667, %629 : vector<8x32xf32>
    %676 = arith.mulf %669, %675 : vector<8x32xf32>
    %677 = arith.addf %629, %676 : vector<8x32xf32>
    %c5_i32_208 = arith.constant 5 : i32
    %c8_i32_209 = arith.constant 8 : i32
    %678 = arith.muli %c5_i32_208, %c8_i32_209 : i32
    %679 = tpu.assume_multiple %678, 8 : i32
    %c7_i32_210 = arith.constant 7 : i32
    %680 = arith.subi %c7_i32_210, %c5_i32_208 : i32
    %c8_i32_211 = arith.constant 8 : i32
    %681 = arith.muli %680, %c8_i32_211 : i32
    %682 = tpu.assume_multiple %681, 8 : i32
    %683 = arith.index_cast %679 : i32 to index
    %c0_212 = arith.constant 0 : index
    %684 = vector.load %arg10[%683, %c0_212] : memref<64x384xf32, #tpu.memory_space<vmem>>, vector<8x384xf32>
    %685 = arith.index_cast %682 : i32 to index
    %c0_213 = arith.constant 0 : index
    %686 = vector.load %arg10[%685, %c0_213] : memref<64x384xf32, #tpu.memory_space<vmem>>, vector<8x384xf32>
    %687 = arith.select %8, %684, %686 : vector<8x384xi1>, vector<8x384xf32>
    %cst_214 = arith.constant dense<0.000000e+00> : vector<8x384xf32>
    %688 = tpu.matmul %677, %431, %cst_214 {dimension_numbers = #tpu.dot_dimension_numbers<[1], [0], [0], [1], [0, 0, 1, 1], [], []>} : vector<8x32xf32>, vector<32x384xf32>, vector<8x384xf32> -> vector<8x384xf32>
    %689 = arith.addf %688, %435 : vector<8x384xf32>
    %690 = vector.extract_strided_slice %687 {offsets = [0, 0], sizes = [8, 32], strides = [1, 1]} : vector<8x384xf32> to vector<8x32xf32>
    %691 = vector.extract_strided_slice %689 {offsets = [0, 0], sizes = [8, 32], strides = [1, 1]} : vector<8x384xf32> to vector<8x32xf32>
    %692 = arith.addf %690, %691 : vector<8x32xf32>
    %693 = arith.negf %692 : vector<8x32xf32>
    %694 = math.exp %693 : vector<8x32xf32>
    %cst_215 = arith.constant 1.000000e+00 : f32
    %695 = vector.broadcast %cst_215 : f32 to vector<8x32xf32>
    %696 = arith.addf %695, %694 : vector<8x32xf32>
    %697 = arith.divf %695, %696 : vector<8x32xf32>
    %698 = vector.extract_strided_slice %687 {offsets = [0, 128], sizes = [8, 32], strides = [1, 1]} : vector<8x384xf32> to vector<8x32xf32>
    %699 = vector.extract_strided_slice %689 {offsets = [0, 128], sizes = [8, 32], strides = [1, 1]} : vector<8x384xf32> to vector<8x32xf32>
    %700 = arith.addf %698, %699 : vector<8x32xf32>
    %701 = arith.negf %700 : vector<8x32xf32>
    %702 = math.exp %701 : vector<8x32xf32>
    %cst_216 = arith.constant 1.000000e+00 : f32
    %703 = vector.broadcast %cst_216 : f32 to vector<8x32xf32>
    %704 = arith.addf %703, %702 : vector<8x32xf32>
    %705 = arith.divf %703, %704 : vector<8x32xf32>
    %706 = vector.extract_strided_slice %687 {offsets = [0, 256], sizes = [8, 32], strides = [1, 1]} : vector<8x384xf32> to vector<8x32xf32>
    %707 = vector.extract_strided_slice %689 {offsets = [0, 256], sizes = [8, 32], strides = [1, 1]} : vector<8x384xf32> to vector<8x32xf32>
    %708 = arith.mulf %697, %707 : vector<8x32xf32>
    %709 = arith.addf %706, %708 : vector<8x32xf32>
    %710 = math.tanh %709 : vector<8x32xf32>
    %cst_217 = arith.constant 1.000000e+00 : f32
    %711 = vector.broadcast %cst_217 : f32 to vector<8x32xf32>
    %712 = arith.subf %711, %705 : vector<8x32xf32>
    %713 = arith.mulf %712, %710 : vector<8x32xf32>
    %714 = arith.mulf %705, %677 : vector<8x32xf32>
    %715 = arith.addf %713, %714 : vector<8x32xf32>
    %716 = arith.index_cast %679 : i32 to index
    %c0_218 = arith.constant 0 : index
    %717 = vector.load %arg2[%716, %c0_218] : memref<64x32xf32, #tpu.memory_space<vmem>>, vector<8x32xf32>
    %718 = arith.mulf %717, %715 : vector<8x32xf32>
    %719 = arith.index_cast %679 : i32 to index
    %c0_219 = arith.constant 0 : index
    %720 = vector.load %arg8[%719, %c0_219] : memref<64x32xf32, #tpu.memory_space<vmem>>, vector<8x32xf32>
    tpu.vector_store %arg8[%719, %c0_219], %718 masked %2 {strides = array<i32>} : memref<64x32xf32, #tpu.memory_space<vmem>>, vector<8x32xf32>, vector<8x32xi1>
    %721 = arith.index_cast %682 : i32 to index
    %c0_220 = arith.constant 0 : index
    %722 = vector.load %arg8[%721, %c0_220] : memref<64x32xf32, #tpu.memory_space<vmem>>, vector<8x32xf32>
    tpu.vector_store %arg8[%721, %c0_220], %718 masked %3 {strides = array<i32>} : memref<64x32xf32, #tpu.memory_space<vmem>>, vector<8x32xf32>, vector<8x32xi1>
    %723 = arith.subf %715, %677 : vector<8x32xf32>
    %724 = arith.mulf %717, %723 : vector<8x32xf32>
    %725 = arith.addf %677, %724 : vector<8x32xf32>
    %c6_i32_221 = arith.constant 6 : i32
    %c8_i32_222 = arith.constant 8 : i32
    %726 = arith.muli %c6_i32_221, %c8_i32_222 : i32
    %727 = tpu.assume_multiple %726, 8 : i32
    %c7_i32_223 = arith.constant 7 : i32
    %728 = arith.subi %c7_i32_223, %c6_i32_221 : i32
    %c8_i32_224 = arith.constant 8 : i32
    %729 = arith.muli %728, %c8_i32_224 : i32
    %730 = tpu.assume_multiple %729, 8 : i32
    %731 = arith.index_cast %727 : i32 to index
    %c0_225 = arith.constant 0 : index
    %732 = vector.load %arg10[%731, %c0_225] : memref<64x384xf32, #tpu.memory_space<vmem>>, vector<8x384xf32>
    %733 = arith.index_cast %730 : i32 to index
    %c0_226 = arith.constant 0 : index
    %734 = vector.load %arg10[%733, %c0_226] : memref<64x384xf32, #tpu.memory_space<vmem>>, vector<8x384xf32>
    %735 = arith.select %8, %732, %734 : vector<8x384xi1>, vector<8x384xf32>
    %cst_227 = arith.constant dense<0.000000e+00> : vector<8x384xf32>
    %736 = tpu.matmul %725, %431, %cst_227 {dimension_numbers = #tpu.dot_dimension_numbers<[1], [0], [0], [1], [0, 0, 1, 1], [], []>} : vector<8x32xf32>, vector<32x384xf32>, vector<8x384xf32> -> vector<8x384xf32>
    %737 = arith.addf %736, %435 : vector<8x384xf32>
    %738 = vector.extract_strided_slice %735 {offsets = [0, 0], sizes = [8, 32], strides = [1, 1]} : vector<8x384xf32> to vector<8x32xf32>
    %739 = vector.extract_strided_slice %737 {offsets = [0, 0], sizes = [8, 32], strides = [1, 1]} : vector<8x384xf32> to vector<8x32xf32>
    %740 = arith.addf %738, %739 : vector<8x32xf32>
    %741 = arith.negf %740 : vector<8x32xf32>
    %742 = math.exp %741 : vector<8x32xf32>
    %cst_228 = arith.constant 1.000000e+00 : f32
    %743 = vector.broadcast %cst_228 : f32 to vector<8x32xf32>
    %744 = arith.addf %743, %742 : vector<8x32xf32>
    %745 = arith.divf %743, %744 : vector<8x32xf32>
    %746 = vector.extract_strided_slice %735 {offsets = [0, 128], sizes = [8, 32], strides = [1, 1]} : vector<8x384xf32> to vector<8x32xf32>
    %747 = vector.extract_strided_slice %737 {offsets = [0, 128], sizes = [8, 32], strides = [1, 1]} : vector<8x384xf32> to vector<8x32xf32>
    %748 = arith.addf %746, %747 : vector<8x32xf32>
    %749 = arith.negf %748 : vector<8x32xf32>
    %750 = math.exp %749 : vector<8x32xf32>
    %cst_229 = arith.constant 1.000000e+00 : f32
    %751 = vector.broadcast %cst_229 : f32 to vector<8x32xf32>
    %752 = arith.addf %751, %750 : vector<8x32xf32>
    %753 = arith.divf %751, %752 : vector<8x32xf32>
    %754 = vector.extract_strided_slice %735 {offsets = [0, 256], sizes = [8, 32], strides = [1, 1]} : vector<8x384xf32> to vector<8x32xf32>
    %755 = vector.extract_strided_slice %737 {offsets = [0, 256], sizes = [8, 32], strides = [1, 1]} : vector<8x384xf32> to vector<8x32xf32>
    %756 = arith.mulf %745, %755 : vector<8x32xf32>
    %757 = arith.addf %754, %756 : vector<8x32xf32>
    %758 = math.tanh %757 : vector<8x32xf32>
    %cst_230 = arith.constant 1.000000e+00 : f32
    %759 = vector.broadcast %cst_230 : f32 to vector<8x32xf32>
    %760 = arith.subf %759, %753 : vector<8x32xf32>
    %761 = arith.mulf %760, %758 : vector<8x32xf32>
    %762 = arith.mulf %753, %725 : vector<8x32xf32>
    %763 = arith.addf %761, %762 : vector<8x32xf32>
    %764 = arith.index_cast %727 : i32 to index
    %c0_231 = arith.constant 0 : index
    %765 = vector.load %arg2[%764, %c0_231] : memref<64x32xf32, #tpu.memory_space<vmem>>, vector<8x32xf32>
    %766 = arith.mulf %765, %763 : vector<8x32xf32>
    %767 = arith.index_cast %727 : i32 to index
    %c0_232 = arith.constant 0 : index
    %768 = vector.load %arg8[%767, %c0_232] : memref<64x32xf32, #tpu.memory_space<vmem>>, vector<8x32xf32>
    tpu.vector_store %arg8[%767, %c0_232], %766 masked %2 {strides = array<i32>} : memref<64x32xf32, #tpu.memory_space<vmem>>, vector<8x32xf32>, vector<8x32xi1>
    %769 = arith.index_cast %730 : i32 to index
    %c0_233 = arith.constant 0 : index
    %770 = vector.load %arg8[%769, %c0_233] : memref<64x32xf32, #tpu.memory_space<vmem>>, vector<8x32xf32>
    tpu.vector_store %arg8[%769, %c0_233], %766 masked %3 {strides = array<i32>} : memref<64x32xf32, #tpu.memory_space<vmem>>, vector<8x32xf32>, vector<8x32xi1>
    %771 = arith.subf %763, %725 : vector<8x32xf32>
    %772 = arith.mulf %765, %771 : vector<8x32xf32>
    %773 = arith.addf %725, %772 : vector<8x32xf32>
    %c7_i32_234 = arith.constant 7 : i32
    %c8_i32_235 = arith.constant 8 : i32
    %774 = arith.muli %c7_i32_234, %c8_i32_235 : i32
    %775 = tpu.assume_multiple %774, 8 : i32
    %c7_i32_236 = arith.constant 7 : i32
    %776 = arith.subi %c7_i32_236, %c7_i32_234 : i32
    %c8_i32_237 = arith.constant 8 : i32
    %777 = arith.muli %776, %c8_i32_237 : i32
    %778 = tpu.assume_multiple %777, 8 : i32
    %779 = arith.index_cast %775 : i32 to index
    %c0_238 = arith.constant 0 : index
    %780 = vector.load %arg10[%779, %c0_238] : memref<64x384xf32, #tpu.memory_space<vmem>>, vector<8x384xf32>
    %781 = arith.index_cast %778 : i32 to index
    %c0_239 = arith.constant 0 : index
    %782 = vector.load %arg10[%781, %c0_239] : memref<64x384xf32, #tpu.memory_space<vmem>>, vector<8x384xf32>
    %783 = arith.select %8, %780, %782 : vector<8x384xi1>, vector<8x384xf32>
    %cst_240 = arith.constant dense<0.000000e+00> : vector<8x384xf32>
    %784 = tpu.matmul %773, %431, %cst_240 {dimension_numbers = #tpu.dot_dimension_numbers<[1], [0], [0], [1], [0, 0, 1, 1], [], []>} : vector<8x32xf32>, vector<32x384xf32>, vector<8x384xf32> -> vector<8x384xf32>
    %785 = arith.addf %784, %435 : vector<8x384xf32>
    %786 = vector.extract_strided_slice %783 {offsets = [0, 0], sizes = [8, 32], strides = [1, 1]} : vector<8x384xf32> to vector<8x32xf32>
    %787 = vector.extract_strided_slice %785 {offsets = [0, 0], sizes = [8, 32], strides = [1, 1]} : vector<8x384xf32> to vector<8x32xf32>
    %788 = arith.addf %786, %787 : vector<8x32xf32>
    %789 = arith.negf %788 : vector<8x32xf32>
    %790 = math.exp %789 : vector<8x32xf32>
    %cst_241 = arith.constant 1.000000e+00 : f32
    %791 = vector.broadcast %cst_241 : f32 to vector<8x32xf32>
    %792 = arith.addf %791, %790 : vector<8x32xf32>
    %793 = arith.divf %791, %792 : vector<8x32xf32>
    %794 = vector.extract_strided_slice %783 {offsets = [0, 128], sizes = [8, 32], strides = [1, 1]} : vector<8x384xf32> to vector<8x32xf32>
    %795 = vector.extract_strided_slice %785 {offsets = [0, 128], sizes = [8, 32], strides = [1, 1]} : vector<8x384xf32> to vector<8x32xf32>
    %796 = arith.addf %794, %795 : vector<8x32xf32>
    %797 = arith.negf %796 : vector<8x32xf32>
    %798 = math.exp %797 : vector<8x32xf32>
    %cst_242 = arith.constant 1.000000e+00 : f32
    %799 = vector.broadcast %cst_242 : f32 to vector<8x32xf32>
    %800 = arith.addf %799, %798 : vector<8x32xf32>
    %801 = arith.divf %799, %800 : vector<8x32xf32>
    %802 = vector.extract_strided_slice %783 {offsets = [0, 256], sizes = [8, 32], strides = [1, 1]} : vector<8x384xf32> to vector<8x32xf32>
    %803 = vector.extract_strided_slice %785 {offsets = [0, 256], sizes = [8, 32], strides = [1, 1]} : vector<8x384xf32> to vector<8x32xf32>
    %804 = arith.mulf %793, %803 : vector<8x32xf32>
    %805 = arith.addf %802, %804 : vector<8x32xf32>
    %806 = math.tanh %805 : vector<8x32xf32>
    %cst_243 = arith.constant 1.000000e+00 : f32
    %807 = vector.broadcast %cst_243 : f32 to vector<8x32xf32>
    %808 = arith.subf %807, %801 : vector<8x32xf32>
    %809 = arith.mulf %808, %806 : vector<8x32xf32>
    %810 = arith.mulf %801, %773 : vector<8x32xf32>
    %811 = arith.addf %809, %810 : vector<8x32xf32>
    %812 = arith.index_cast %775 : i32 to index
    %c0_244 = arith.constant 0 : index
    %813 = vector.load %arg2[%812, %c0_244] : memref<64x32xf32, #tpu.memory_space<vmem>>, vector<8x32xf32>
    %814 = arith.mulf %813, %811 : vector<8x32xf32>
    %815 = arith.index_cast %775 : i32 to index
    %c0_245 = arith.constant 0 : index
    %816 = vector.load %arg8[%815, %c0_245] : memref<64x32xf32, #tpu.memory_space<vmem>>, vector<8x32xf32>
    tpu.vector_store %arg8[%815, %c0_245], %814 masked %2 {strides = array<i32>} : memref<64x32xf32, #tpu.memory_space<vmem>>, vector<8x32xf32>, vector<8x32xi1>
    %817 = arith.index_cast %778 : i32 to index
    %c0_246 = arith.constant 0 : index
    %818 = vector.load %arg8[%817, %c0_246] : memref<64x32xf32, #tpu.memory_space<vmem>>, vector<8x32xf32>
    tpu.vector_store %arg8[%817, %c0_246], %814 masked %3 {strides = array<i32>} : memref<64x32xf32, #tpu.memory_space<vmem>>, vector<8x32xf32>, vector<8x32xi1>
    %819 = arith.subf %811, %773 : vector<8x32xf32>
    %820 = arith.mulf %813, %819 : vector<8x32xf32>
    %821 = arith.addf %773, %820 : vector<8x32xf32>
    %c8_i32_247 = arith.constant 8 : i32
    %c1_248 = arith.constant 1 : index
    %c0_249 = arith.constant 0 : index
    %c0_250 = arith.constant 0 : index
    %822 = vector.load %arg9[%c1_248, %c0_249, %c0_250] : memref<2x8x32xf32, #tpu.memory_space<vmem>>, vector<1x8x32xf32>
    %823 = vector.shape_cast %822 : vector<1x8x32xf32> to vector<8x32xf32>
    %824 = vector.shape_cast %821 : vector<8x32xf32> to vector<1x8x32xf32>
    tpu.vector_store %arg9[%c1_248, %c0_249, %c0_250], %824 {strides = array<i32>} : memref<2x8x32xf32, #tpu.memory_space<vmem>>, vector<1x8x32xf32>,
    return
  }
}

</mosaic_0001>

<llo_original>
// kernel: encoder_forward.1
$region0: #{encoder_forward.1}
  #allocation0 [shape = 'u32[]', space=smem, size = 0x4, offset = 0x4, fixed_abs, tag = 'smem constant byte address 0x4 - core index']
  #allocation1 [shape = 'u32[72,128]{1,0:T(1,128)}', space=vmem, size = 0x9000, scoped, tag = 'internal scratch']
  #allocation2 [shape = 'f32[64,384]{1,0:T(8,128)}', space=vmem, size = 0x18000, scoped, tag = 'scratch operand']
  #allocation3 [shape = 'f32[64,32]{1,0:T(8,128)}', space=vmem, size = 0x8000, scoped, tag = 'scratch operand']
  %s0 = inlined_call_operand.vmem [shape: s32[64,1], index: 0, kind: input, shape index: {}]
  %s1 = inlined_call_operand.vmem [shape: f32[32,32], index: 1, kind: input, shape index: {}]
  %s2 = inlined_call_operand.vmem [shape: f32[64,32], index: 2, kind: input, shape index: {}]
  %s3 = inlined_call_operand.vmem [shape: f32[2,8,32], index: 3, kind: input, shape index: {}]
  %s4 = inlined_call_operand.vmem [shape: f32[2,32,384], index: 4, kind: input, shape index: {}]
  %s5 = inlined_call_operand.vmem [shape: f32[2,1,384], index: 5, kind: input, shape index: {}]
  %s6 = inlined_call_operand.vmem [shape: f32[2,32,384], index: 6, kind: input, shape index: {}]
  %s7 = inlined_call_operand.vmem [shape: f32[2,1,384], index: 7, kind: input, shape index: {}]
  %s8 = inlined_call_operand.hbm [shape: f32[64,32], index: 8, kind: output, shape index: {0}]
  %s9 = inlined_call_operand.vmem [shape: f32[2,8,32], index: 9, kind: output, shape index: {1}]
  %10 = xla_tuple %s8, %s9
  %s11 = sld [smem:[#allocation0]]
  $region50: #{encoder_forward.1} parent=0
    _
  %s13 = ssub.s32 1, %s11
  %s14 = scalar_select 0, %s13, %s11
  $region1: #{encoder_forward.1} parent=0
    #allocation4 [shape = 'u8[32768]{0}', space=vmem, size = 0x8000, scoped, tag = 'output window, operand 0, single buffered']
    #allocation5 [shape = 's32[1]{0}', space=sflag, size = 0x4, scoped, tag = 'scoped memory for encoder_forward.1']
    %15 = vsyncpa [#allocation5], 0
    // Predicated region
    $region2: #{encoder_forward.1} parent=1 // pred_check
      _
    $region3: #{encoder_forward.1} parent=1 // pred_check_branch
      %17 = sbr.rel (0) target = $region5
    $region4: #{encoder_forward.1} parent=1 // pred_region
      _
    $region5: #{encoder_forward.1} parent=1 // pred_fallthru
      _
    // Predicated region
    $region6: #{encoder_forward.1} parent=1 // pred_check
      _
    $region7: #{encoder_forward.1} parent=1 // pred_check_branch
      %19 = sbr.rel (0) target = $region9
    $region8: #{encoder_forward.1} parent=1 // pred_region
      _
    $region9: #{encoder_forward.1} parent=1 // pred_fallthru
      _
    // Predicated region
    $region10: #{encoder_forward.1} parent=1 // pred_check
      _
    $region11: #{encoder_forward.1} parent=1 // pred_check_branch
      %21 = sbr.rel (0) target = $region13
    $region12: #{encoder_forward.1} parent=1 // pred_region
      _
    $region13: #{encoder_forward.1} parent=1 // pred_fallthru
      _
    // Predicated region
    $region14: #{encoder_forward.1} parent=1 // pred_check
      _
    $region15: #{encoder_forward.1} parent=1 // pred_check_branch
      %23 = sbr.rel (0) target = $region17
    $region16: #{encoder_forward.1} parent=1 // pred_region
      _
    $region17: #{encoder_forward.1} parent=1 // pred_fallthru
      _
    // Predicated region
    $region18: #{encoder_forward.1} parent=1 // pred_check
      _
    $region19: #{encoder_forward.1} parent=1 // pred_check_branch
      %25 = sbr.rel (0) target = $region21
    $region20: #{encoder_forward.1} parent=1 // pred_region
      _
    $region21: #{encoder_forward.1} parent=1 // pred_fallthru
      _
    // Predicated region
    $region22: #{encoder_forward.1} parent=1 // pred_check
      _
    $region23: #{encoder_forward.1} parent=1 // pred_check_branch
      %27 = sbr.rel (0) target = $region25
    $region24: #{encoder_forward.1} parent=1 // pred_region
      _
    $region25: #{encoder_forward.1} parent=1 // pred_fallthru
      _
    // Predicated region
    $region26: #{encoder_forward.1} parent=1 // pred_check
      _
    $region27: #{encoder_forward.1} parent=1 // pred_check_branch
      %29 = sbr.rel (0) target = $region29
    $region28: #{encoder_forward.1} parent=1 // pred_region
      _
    $region29: #{encoder_forward.1} parent=1 // pred_fallthru
      _
    // Predicated region
    $region30: #{encoder_forward.1} parent=1 // pred_check
      _
    $region31: #{encoder_forward.1} parent=1 // pred_check_branch
      %31 = sbr.rel (0) target = $region33
    $region32: #{encoder_forward.1} parent=1 // pred_region
      _
    $region33: #{encoder_forward.1} parent=1 // pred_fallthru
      _
    %v32 = vlaneseq
    %v33 = vand.u32 %v32, 127
    %vm34 = vcmp.lt.s32.totalorder %v33, 16
    %vm35 = vmxor %vm34, 1
    %v36 = vadd.s32 %v33, 128
    %v37 = vadd.s32 %v33, 256
    %v38 = vand.u32 %v33, 127
    %v39 = vand.u32 %v36, 127
    %v40 = vand.u32 %v37, 127
    %vm41 = vcmp.lt.s32.totalorder %v38, 16
    %vm42 = vcmp.lt.s32.totalorder %v39, 16
    %vm43 = vcmp.lt.s32.totalorder %v40, 16
    %v44 = vld [vmem:[%s0] sm:$0xff]
    %v45 = vld [vmem:[%s0 + $0x8] sm:$0xff]
    %v46 = vld [vmem:[%s0 + $0x10] sm:$0xff]
    %v47 = vld [vmem:[%s0 + $0x18] sm:$0xff]
    %v48 = vld [vmem:[%s0 + $0x20] sm:$0xff]
    %v49 = vld [vmem:[%s0 + $0x28] sm:$0xff]
    %v50 = vld [vmem:[%s0 + $0x30] sm:$0xff]
    %v51 = vld [vmem:[%s0 + $0x38] sm:$0xff]
    %52 = vset.pattern.permute.xlu0 0
    %53 = vperm.xlu0 %52, %v44
    %v54 = vpop.permute.xlu0 %53
    %55 = vset.pattern.permute.xlu0 0
    %56 = vperm.xlu0 %55, %v45
    %v57 = vpop.permute.xlu0 %56
    %58 = vset.pattern.permute.xlu0 0
    %59 = vperm.xlu0 %58, %v46
    %v60 = vpop.permute.xlu0 %59
    %61 = vset.pattern.permute.xlu0 0
    %62 = vperm.xlu0 %61, %v47
    %v63 = vpop.permute.xlu0 %62
    %64 = vset.pattern.permute.xlu0 0
    %65 = vperm.xlu0 %64, %v48
    %v66 = vpop.permute.xlu0 %65
    %67 = vset.pattern.permute.xlu0 0
    %68 = vperm.xlu0 %67, %v49
    %v69 = vpop.permute.xlu0 %68
    %70 = vset.pattern.permute.xlu0 0
    %71 = vperm.xlu0 %70, %v50
    %v72 = vpop.permute.xlu0 %71
    %73 = vset.pattern.permute.xlu0 0
    %74 = vperm.xlu0 %73, %v51
    %v75 = vpop.permute.xlu0 %74
    %vm76 = vcmp.eq.s32.totalorder %v33, %v54
    %vm77 = vcmp.eq.s32.totalorder %v33, %v57
    %vm78 = vcmp.eq.s32.totalorder %v33, %v60
    %vm79 = vcmp.eq.s32.totalorder %v33, %v63
    %vm80 = vcmp.eq.s32.totalorder %v33, %v66
    %vm81 = vcmp.eq.s32.totalorder %v33, %v69
    %vm82 = vcmp.eq.s32.totalorder %v33, %v72
    %vm83 = vcmp.eq.s32.totalorder %v33, %v75
    %v84 = vsel %vm76, 1.0, 0.0
    %v85 = vsel %vm77, 1.0, 0.0
    %v86 = vsel %vm78, 1.0, 0.0
    %v87 = vsel %vm79, 1.0, 0.0
    %v88 = vsel %vm80, 1.0, 0.0
    %v89 = vsel %vm81, 1.0, 0.0
    %v90 = vsel %vm82, 1.0, 0.0
    %v91 = vsel %vm83, 1.0, 0.0
    %v92 = vld [vmem:[%s1] sm:$0xff]
    %v93 = vld [vmem:[%s1 + $0x8] sm:$0xff]
    %v94 = vld [vmem:[%s1 + $0x10] sm:$0xff]
    %v95 = vld [vmem:[%s1 + $0x18] sm:$0xff]
    %vm96 = vcmask 261120
    %v98 = vsel %vm96, %v84, 0
    %v101 = vsel %vm96, %v85, 0
    %v104 = vsel %vm96, %v86, 0
    %v107 = vsel %vm96, %v87, 0
    %v110 = vsel %vm96, %v88, 0
    %v113 = vsel %vm96, %v89, 0
    %v116 = vsel %vm96, %v90, 0
    %v119 = vsel %vm96, %v91, 0
    %121 = vmatpush.msra.mxu0 0.0
    %122 = vmatpush.msra.mxu0 0.0
    %123 = vmatpush.msra.mxu0 0.0
    %124 = vmatpush.msra.mxu0 0.0
    %125 = vmatpush.msra.mxu0 0.0
    %126 = vmatpush.msra.mxu0 0.0
    %127 = vmatpush.msra.mxu0 0.0
    %128 = vmatpush.msra.mxu0 0.0
    %129 = vmatpush.msra.mxu0 0.0
    %130 = vmatpush.msra.mxu0 0.0
    %131 = vmatpush.msra.mxu0 0.0
    %132 = vmatpush.msra.mxu0 0.0
    %133 = vmatpush.msra.mxu0 %v95
    %134 = vmatpush.msra.mxu0 %v94
    %135 = vmatpush.msra.mxu0 %v93
    %136 = vmatpush.msra.mxu0 %v92
    %137 = vmatmul.f32.gmra.mxu0 %v98
    %v138 = vpop.f32.mrf.mxu0
    %v139 = vadd.f32 0.0, %v138
    %140 = vmatmul.f32.gmra.mxu0 %v101
    %v141 = vpop.f32.mrf.mxu0
    %v142 = vadd.f32 0.0, %v141
    %143 = vmatmul.f32.gmra.mxu0 %v104
    %v144 = vpop.f32.mrf.mxu0
    %v145 = vadd.f32 0.0, %v144
    %146 = vmatmul.f32.gmra.mxu0 %v107
    %v147 = vpop.f32.mrf.mxu0
    %v148 = vadd.f32 0.0, %v147
    %149 = vmatmul.f32.gmra.mxu0 %v110
    %v150 = vpop.f32.mrf.mxu0
    %v151 = vadd.f32 0.0, %v150
    %152 = vmatmul.f32.gmra.mxu0 %v113
    %v153 = vpop.f32.mrf.mxu0
    %v154 = vadd.f32 0.0, %v153
    %155 = vmatmul.f32.gmra.mxu0 %v116
    %v156 = vpop.f32.mrf.mxu0
    %v157 = vadd.f32 0.0, %v156
    %158 = vmatmul.f32.gmra.mxu0 %v119
    %v159 = vpop.f32.mrf.mxu0
    %v160 = vadd.f32 0.0, %v159
    %161 = vdwg.mxu0
    %v162 = vld [vmem:[%s4] sm:$0xff]
    %v163 = vld [vmem:[%s4 + $0x8] sm:$0xff]
    %v164 = vld [vmem:[%s4 + $0x10] sm:$0xff]
    %v165 = vld [vmem:[%s4 + $0x18] sm:$0xff]
    %v166 = vld [vmem:[%s4 + $0x20] sm:$0xff]
    %v167 = vld [vmem:[%s4 + $0x28] sm:$0xff]
    %v168 = vld [vmem:[%s4 + $0x30] sm:$0xff]
    %v169 = vld [vmem:[%s4 + $0x38] sm:$0xff]
    %v170 = vld [vmem:[%s4 + $0x40] sm:$0xff]
    %v171 = vld [vmem:[%s4 + $0x48] sm:$0xff]
    %v172 = vld [vmem:[%s4 + $0x50] sm:$0xff]
    %v173 = vld [vmem:[%s4 + $0x58] sm:$0xff]
    %v174 = vld [vmem:[%s5] sm:$0x7]
    %v176 = vperm.slane %v174, 0
    %v177 = vperm.slane %v174, 1
    %v178 = vperm.slane %v174, 2
    %v183 = vsel %vm96, %v139, 0
    %v186 = vsel %vm96, %v142, 0
    %v189 = vsel %vm96, %v145, 0
    %v192 = vsel %vm96, %v148, 0
    %v195 = vsel %vm96, %v151, 0
    %v198 = vsel %vm96, %v154, 0
    %v201 = vsel %vm96, %v157, 0
    %v204 = vsel %vm96, %v160, 0
    %206 = vmatpush.msra.mxu0 0.0
    %207 = vmatpush.msra.mxu0 0.0
    %208 = vmatpush.msra.mxu0 0.0
    %209 = vmatpush.msra.mxu0 0.0
    %210 = vmatpush.msra.mxu0 0.0
    %211 = vmatpush.msra.mxu0 0.0
    %212 = vmatpush.msra.mxu0 0.0
    %213 = vmatpush.msra.mxu0 0.0
    %214 = vmatpush.msra.mxu0 0.0
    %215 = vmatpush.msra.mxu0 0.0
    %216 = vmatpush.msra.mxu0 0.0
    %217 = vmatpush.msra.mxu0 0.0
    %218 = vmatpush.msra.mxu0 %v171
    %219 = vmatpush.msra.mxu0 %v168
    %220 = vmatpush.msra.mxu0 %v165
    %221 = vmatpush.msra.mxu0 %v162
    %222 = vmatmul.f32.gmra.mxu0 %v183
    %v223 = vpop.f32.mrf.mxu0
    %v224 = vadd.f32 %v176, %v223
    %225 = vmatmul.f32.gmra.mxu0 %v186
    %v226 = vpop.f32.mrf.mxu0
    %v227 = vadd.f32 %v176, %v226
    %228 = vmatmul.f32.gmra.mxu0 %v189
    %v229 = vpop.f32.mrf.mxu0
    %v230 = vadd.f32 %v176, %v229
    %231 = vmatmul.f32.gmra.mxu0 %v192
    %v232 = vpop.f32.mrf.mxu0
    %v233 = vadd.f32 %v176, %v232
    %234 = vmatmul.f32.gmra.mxu0 %v195
    %v235 = vpop.f32.mrf.mxu0
    %v236 = vadd.f32 %v176, %v235
    %237 = vmatmul.f32.gmra.mxu0 %v198
    %v238 = vpop.f32.mrf.mxu0
    %v239 = vadd.f32 %v176, %v238
    %240 = vmatmul.f32.gmra.mxu0 %v201
    %v241 = vpop.f32.mrf.mxu0
    %v242 = vadd.f32 %v176, %v241
    %243 = vmatmul.f32.gmra.mxu0 %v204
    %v244 = vpop.f32.mrf.mxu0
    %v245 = vadd.f32 %v176, %v244
    %246 = vdwg.mxu0
    %247 = vmatpush.msra.mxu0 0.0
    %248 = vmatpush.msra.mxu0 0.0
    %249 = vmatpush.msra.mxu0 0.0
    %250 = vmatpush.msra.mxu0 0.0
    %251 = vmatpush.msra.mxu0 0.0
    %252 = vmatpush.msra.mxu0 0.0
    %253 = vmatpush.msra.mxu0 0.0
    %254 = vmatpush.msra.mxu0 0.0
    %255 = vmatpush.msra.mxu0 0.0
    %256 = vmatpush.msra.mxu0 0.0
    %257 = vmatpush.msra.mxu0 0.0
    %258 = vmatpush.msra.mxu0 0.0
    %259 = vmatpush.msra.mxu0 %v172
    %260 = vmatpush.msra.mxu0 %v169
    %261 = vmatpush.msra.mxu0 %v166
    %262 = vmatpush.msra.mxu0 %v163
    %263 = vmatmul.f32.gmra.mxu0 %v183
    %v264 = vpop.f32.mrf.mxu0
    %v265 = vadd.f32 %v177, %v264
    %266 = vmatmul.f32.gmra.mxu0 %v186
    %v267 = vpop.f32.mrf.mxu0
    %v268 = vadd.f32 %v177, %v267
    %269 = vmatmul.f32.gmra.mxu0 %v189
    %v270 = vpop.f32.mrf.mxu0
    %v271 = vadd.f32 %v177, %v270
    %272 = vmatmul.f32.gmra.mxu0 %v192
    %v273 = vpop.f32.mrf.mxu0
    %v274 = vadd.f32 %v177, %v273
    %275 = vmatmul.f32.gmra.mxu0 %v195
    %v276 = vpop.f32.mrf.mxu0
    %v277 = vadd.f32 %v177, %v276
    %278 = vmatmul.f32.gmra.mxu0 %v198
    %v279 = vpop.f32.mrf.mxu0
    %v280 = vadd.f32 %v177, %v279
    %281 = vmatmul.f32.gmra.mxu0 %v201
    %v282 = vpop.f32.mrf.mxu0
    %v283 = vadd.f32 %v177, %v282
    %284 = vmatmul.f32.gmra.mxu0 %v204
    %v285 = vpop.f32.mrf.mxu0
    %v286 = vadd.f32 %v177, %v285
    %287 = vdwg.mxu0
    %288 = vmatpush.msra.mxu0 0.0
    %289 = vmatpush.msra.mxu0 0.0
    %290 = vmatpush.msra.mxu0 0.0
    %291 = vmatpush.msra.mxu0 0.0
    %292 = vmatpush.msra.mxu0 0.0
    %293 = vmatpush.msra.mxu0 0.0
    %294 = vmatpush.msra.mxu0 0.0
    %295 = vmatpush.msra.mxu0 0.0
    %296 = vmatpush.msra.mxu0 0.0
    %297 = vmatpush.msra.mxu0 0.0
    %298 = vmatpush.msra.mxu0 0.0
    %299 = vmatpush.msra.mxu0 0.0
    %300 = vmatpush.msra.mxu0 %v173
    %301 = vmatpush.msra.mxu0 %v170
    %302 = vmatpush.msra.mxu0 %v167
    %303 = vmatpush.msra.mxu0 %v164
    %304 = vmatmul.f32.gmra.mxu0 %v183
    %v305 = vpop.f32.mrf.mxu0
    %v306 = vadd.f32 %v178, %v305
    %307 = vmatmul.f32.gmra.mxu0 %v186
    %v308 = vpop.f32.mrf.mxu0
    %v309 = vadd.f32 %v178, %v308
    %310 = vmatmul.f32.gmra.mxu0 %v189
    %v311 = vpop.f32.mrf.mxu0
    %v312 = vadd.f32 %v178, %v311
    %313 = vmatmul.f32.gmra.mxu0 %v192
    %v314 = vpop.f32.mrf.mxu0
    %v315 = vadd.f32 %v178, %v314
    %316 = vmatmul.f32.gmra.mxu0 %v195
    %v317 = vpop.f32.mrf.mxu0
    %v318 = vadd.f32 %v178, %v317
    %319 = vmatmul.f32.gmra.mxu0 %v198
    %v320 = vpop.f32.mrf.mxu0
    %v321 = vadd.f32 %v178, %v320
    %322 = vmatmul.f32.gmra.mxu0 %v201
    %v323 = vpop.f32.mrf.mxu0
    %v324 = vadd.f32 %v178, %v323
    %325 = vmatmul.f32.gmra.mxu0 %v204
    %v326 = vpop.f32.mrf.mxu0
    %v327 = vadd.f32 %v178, %v326
    %328 = vdwg.mxu0
    %329 = vst [vmem:[#allocation2] sm:$0xff] %v224
    %330 = vst [vmem:[#allocation2 + $0x8] sm:$0xff] %v265
    %331 = vst [vmem:[#allocation2 + $0x10] sm:$0xff] %v306
    %332 = vst [vmem:[#allocation2 + $0x18] sm:$0xff] %v227
    %333 = vst [vmem:[#allocation2 + $0x20] sm:$0xff] %v268
    %334 = vst [vmem:[#allocation2 + $0x28] sm:$0xff] %v309
    %335 = vst [vmem:[#allocation2 + $0x30] sm:$0xff] %v230
    %336 = vst [vmem:[#allocation2 + $0x38] sm:$0xff] %v271
    %337 = vst [vmem:[#allocation2 + $0x40] sm:$0xff] %v312
    %338 = vst [vmem:[#allocation2 + $0x48] sm:$0xff] %v233
    %339 = vst [vmem:[#allocation2 + $0x50] sm:$0xff] %v274
    %340 = vst [vmem:[#allocation2 + $0x58] sm:$0xff] %v315
    %341 = vst [vmem:[#allocation2 + $0x60] sm:$0xff] %v236
    %342 = vst [vmem:[#allocation2 + $0x68] sm:$0xff] %v277
    %343 = vst [vmem:[#allocation2 + $0x70] sm:$0xff] %v318
    %344 = vst [vmem:[#allocation2 + $0x78] sm:$0xff] %v239
    %345 = vst [vmem:[#allocation2 + $0x80] sm:$0xff] %v280
    %346 = vst [vmem:[#allocation2 + $0x88] sm:$0xff] %v321
    %347 = vst [vmem:[#allocation2 + $0x90] sm:$0xff] %v242
    %348 = vst [vmem:[#allocation2 + $0x98] sm:$0xff] %v283
    %349 = vst [vmem:[#allocation2 + $0xa0] sm:$0xff] %v324
    %350 = vst [vmem:[#allocation2 + $0xa8] sm:$0xff] %v245
    %351 = vst [vmem:[#allocation2 + $0xb0] sm:$0xff] %v286
    %352 = vst [vmem:[#allocation2 + $0xb8] sm:$0xff] %v327
    %v353 = vld [vmem:[%s6] sm:$0xff]
    %v354 = vld [vmem:[%s6 + $0x8] sm:$0xff]
    %v355 = vld [vmem:[%s6 + $0x10] sm:$0xff]
    %v356 = vld [vmem:[%s6 + $0x18] sm:$0xff]
    %v357 = vld [vmem:[%s6 + $0x20] sm:$0xff]
    %v358 = vld [vmem:[%s6 + $0x28] sm:$0xff]
    %v359 = vld [vmem:[%s6 + $0x30] sm:$0xff]
    %v360 = vld [vmem:[%s6 + $0x38] sm:$0xff]
    %v361 = vld [vmem:[%s6 + $0x40] sm:$0xff]
    %v362 = vld [vmem:[%s6 + $0x48] sm:$0xff]
    %v363 = vld [vmem:[%s6 + $0x50] sm:$0xff]
    %v364 = vld [vmem:[%s6 + $0x58] sm:$0xff]
    %v365 = vld [vmem:[%s7] sm:$0x7]
    %v367 = vperm.slane %v365, 0
    %v368 = vperm.slane %v365, 1
    %v369 = vperm.slane %v365, 2
    %v373 = vld [vmem:[%s3] sm:$0xff]
    %s374 = smul.u32 0, 3
    %s375 = smul.addr %s374, 8
    %s376 = scalar_lea.vmem [#allocation2], %s375
    %v377 = vld [vmem:[%s376] sm:$0xff]
    %v378 = vld [vmem:[%s376 + $0x8] sm:$0xff]
    %v379 = vld [vmem:[%s376 + $0x10] sm:$0xff]
    %s380 = smul.u32 7, 3
    %s381 = smul.addr %s380, 8
    %s382 = scalar_lea.vmem [#allocation2], %s381
    %v383 = vld [vmem:[%s382] sm:$0xff]
    %v384 = vld [vmem:[%s382 + $0x8] sm:$0xff]
    %v385 = vld [vmem:[%s382 + $0x10] sm:$0xff]
    %v386 = vsel %vm41, %v377, %v383
    %v387 = vsel %vm42, %v378, %v384
    %v388 = vsel %vm43, %v379, %v385
    %v390 = vsel %vm96, %v373, 0
    %392 = vmatpush.msra.mxu0 0.0
    %393 = vmatpush.msra.mxu0 0.0
    %394 = vmatpush.msra.mxu0 0.0
    %395 = vmatpush.msra.mxu0 0.0
    %396 = vmatpush.msra.mxu0 0.0
    %397 = vmatpush.msra.mxu0 0.0
    %398 = vmatpush.msra.mxu0 0.0
    %399 = vmatpush.msra.mxu0 0.0
    %400 = vmatpush.msra.mxu0 0.0
    %401 = vmatpush.msra.mxu0 0.0
    %402 = vmatpush.msra.mxu0 0.0
    %403 = vmatpush.msra.mxu0 0.0
    %404 = vmatpush.msra.mxu0 %v362
    %405 = vmatpush.msra.mxu0 %v359
    %406 = vmatpush.msra.mxu0 %v356
    %407 = vmatpush.msra.mxu0 %v353
    %408 = vmatmul.f32.gmra.mxu0 %v390
    %v409 = vpop.f32.mrf.mxu0
    %v410 = vadd.f32 %v367, %v409
    %411 = vdwg.mxu0
    %412 = vmatpush.msra.mxu0 0.0
    %413 = vmatpush.msra.mxu0 0.0
    %414 = vmatpush.msra.mxu0 0.0
    %415 = vmatpush.msra.mxu0 0.0
    %416 = vmatpush.msra.mxu0 0.0
    %417 = vmatpush.msra.mxu0 0.0
    %418 = vmatpush.msra.mxu0 0.0
    %419 = vmatpush.msra.mxu0 0.0
    %420 = vmatpush.msra.mxu0 0.0
    %421 = vmatpush.msra.mxu0 0.0
    %422 = vmatpush.msra.mxu0 0.0
    %423 = vmatpush.msra.mxu0 0.0
    %424 = vmatpush.msra.mxu0 %v363
    %425 = vmatpush.msra.mxu0 %v360
    %426 = vmatpush.msra.mxu0 %v357
    %427 = vmatpush.msra.mxu0 %v354
    %428 = vmatmul.f32.gmra.mxu0 %v390
    %v429 = vpop.f32.mrf.mxu0
    %v430 = vadd.f32 %v368, %v429
    %431 = vdwg.mxu0
    %432 = vmatpush.msra.mxu0 0.0
    %433 = vmatpush.msra.mxu0 0.0
    %434 = vmatpush.msra.mxu0 0.0
    %435 = vmatpush.msra.mxu0 0.0
    %436 = vmatpush.msra.mxu0 0.0
    %437 = vmatpush.msra.mxu0 0.0
    %438 = vmatpush.msra.mxu0 0.0
    %439 = vmatpush.msra.mxu0 0.0
    %440 = vmatpush.msra.mxu0 0.0
    %441 = vmatpush.msra.mxu0 0.0
    %442 = vmatpush.msra.mxu0 0.0
    %443 = vmatpush.msra.mxu0 0.0
    %444 = vmatpush.msra.mxu0 %v364
    %445 = vmatpush.msra.mxu0 %v361
    %446 = vmatpush.msra.mxu0 %v358
    %447 = vmatpush.msra.mxu0 %v355
    %448 = vmatmul.f32.gmra.mxu0 %v390
    %v449 = vpop.f32.mrf.mxu0
    %v450 = vadd.f32 %v369, %v449
    %451 = vdwg.mxu0
    %v452 = vadd.f32 %v386, %v410
    %v453 = vxor.u32 %v452, 2147483648
    %v454 = vmul.f32 %v453, 1.442695
    %v455 = vpow.pop %v454
    %v456 = vadd.f32 %v455, 1.0
    %v457 = vrcp.pop %v456
    %v458 = vmul.f32 %v456, %v457
    %v459 = vsub.f32 1.0, %v458
    %v460 = vmul.f32 %v457, %v459
    %v461 = vadd.f32 %v457, %v460
    %vm462 = vweird.f32 %v456
    %vm463 = vweird.f32 %v457
    %vm464 = vmor %vm462, %vm463
    %v465 = vsel %vm464, %v457, %v461
    %v466 = vand.u32 2147483647, %v456
    %vm467 = vcmp.eq.f32.partialorder %v466, 8.507059e+37
    %v468 = vand.u32 %v456, 2147483648
    %v469 = vor.u32 1.1754944e-38, %v468
    %v470 = vsel %vm467, %v469, %v465
    %v471 = vmul.f32 1.0, %v470
    %v472 = vadd.f32 %v387, %v430
    %v473 = vxor.u32 %v472, 2147483648
    %v474 = vmul.f32 %v473, 1.442695
    %v475 = vpow.pop %v474
    %v476 = vadd.f32 %v475, 1.0
    %v477 = vrcp.pop %v476
    %v478 = vmul.f32 %v476, %v477
    %v479 = vsub.f32 1.0, %v478
    %v480 = vmul.f32 %v477, %v479
    %v481 = vadd.f32 %v477, %v480
    %vm482 = vweird.f32 %v476
    %vm483 = vweird.f32 %v477
    %vm484 = vmor %vm482, %vm483
    %v485 = vsel %vm484, %v477, %v481
    %v486 = vand.u32 2147483647, %v476
    %vm487 = vcmp.eq.f32.partialorder %v486, 8.507059e+37
    %v488 = vand.u32 %v476, 2147483648
    %v489 = vor.u32 1.1754944e-38, %v488
    %v490 = vsel %vm487, %v489, %v485
    %v491 = vmul.f32 1.0, %v490
    %v492 = vmul.f32 %v471, %v450
    %v493 = vadd.f32 %v388, %v492
    %v494 = vtanh.pop %v493
    %v495 = vsub.f32 1.0, %v491
    %v496 = vmul.f32 %v495, %v494
    %v497 = vmul.f32 %v491, %v373
    %v498 = vadd.f32 %v496, %v497
    %v499 = vld [vmem:[%s2] sm:$0xff]
    %v500 = vmul.f32 %v499, %v498
    %vm501 = vmand %vm96, %vm34
    %502 = vst.msk [vmem:[#allocation3] sm:$0xff] %vm501, %v500
    %s503 = scalar_lea.vmem [#allocation3], 56
    %vm504 = vmand %vm96, %vm35
    %505 = vst.msk [vmem:[%s503] sm:$0xff] %vm504, %v500
    %v506 = vsub.f32 %v498, %v373
    %v507 = vmul.f32 %v499, %v506
    %v508 = vadd.f32 %v373, %v507
    %s509 = smul.u32 1, 3
    %s510 = smul.addr %s509, 8
    %s511 = scalar_lea.vmem [#allocation2], %s510
    %v512 = vld [vmem:[%s511] sm:$0xff]
    %v513 = vld [vmem:[%s511 + $0x8] sm:$0xff]
    %v514 = vld [vmem:[%s511 + $0x10] sm:$0xff]
    %s515 = smul.u32 6, 3
    %s516 = smul.addr %s515, 8
    %s517 = scalar_lea.vmem [#allocation2], %s516
    %v518 = vld [vmem:[%s517] sm:$0xff]
    %v519 = vld [vmem:[%s517 + $0x8] sm:$0xff]
    %v520 = vld [vmem:[%s517 + $0x10] sm:$0xff]
    %v521 = vsel %vm41, %v512, %v518
    %v522 = vsel %vm42, %v513, %v519
    %v523 = vsel %vm43, %v514, %v520
    %v525 = vsel %vm96, %v508, 0
    %527 = vmatpush.msra.mxu0 0.0
    %528 = vmatpush.msra.mxu0 0.0
    %529 = vmatpush.msra.mxu0 0.0
    %530 = vmatpush.msra.mxu0 0.0
    %531 = vmatpush.msra.mxu0 0.0
    %532 = vmatpush.msra.mxu0 0.0
    %533 = vmatpush.msra.mxu0 0.0
    %534 = vmatpush.msra.mxu0 0.0
    %535 = vmatpush.msra.mxu0 0.0
    %536 = vmatpush.msra.mxu0 0.0
    %537 = vmatpush.msra.mxu0 0.0
    %538 = vmatpush.msra.mxu0 0.0
    %539 = vmatpush.msra.mxu0 %v362
    %540 = vmatpush.msra.mxu0 %v359
    %541 = vmatpush.msra.mxu0 %v356
    %542 = vmatpush.msra.mxu0 %v353
    %543 = vmatmul.f32.gmra.mxu0 %v525
    %v544 = vpop.f32.mrf.mxu0
    %v545 = vadd.f32 %v367, %v544
    %546 = vdwg.mxu0
    %547 = vmatpush.msra.mxu0 0.0
    %548 = vmatpush.msra.mxu0 0.0
    %549 = vmatpush.msra.mxu0 0.0
    %550 = vmatpush.msra.mxu0 0.0
    %551 = vmatpush.msra.mxu0 0.0
    %552 = vmatpush.msra.mxu0 0.0
    %553 = vmatpush.msra.mxu0 0.0
    %554 = vmatpush.msra.mxu0 0.0
    %555 = vmatpush.msra.mxu0 0.0
    %556 = vmatpush.msra.mxu0 0.0
    %557 = vmatpush.msra.mxu0 0.0
    %558 = vmatpush.msra.mxu0 0.0
    %559 = vmatpush.msra.mxu0 %v363
    %560 = vmatpush.msra.mxu0 %v360
    %561 = vmatpush.msra.mxu0 %v357
    %562 = vmatpush.msra.mxu0 %v354
    %563 = vmatmul.f32.gmra.mxu0 %v525
    %v564 = vpop.f32.mrf.mxu0
    %v565 = vadd.f32 %v368, %v564
    %566 = vdwg.mxu0
    %567 = vmatpush.msra.mxu0 0.0
    %568 = vmatpush.msra.mxu0 0.0
    %569 = vmatpush.msra.mxu0 0.0
    %570 = vmatpush.msra.mxu0 0.0
    %571 = vmatpush.msra.mxu0 0.0
    %572 = vmatpush.msra.mxu0 0.0
    %573 = vmatpush.msra.mxu0 0.0
    %574 = vmatpush.msra.mxu0 0.0
    %575 = vmatpush.msra.mxu0 0.0
    %576 = vmatpush.msra.mxu0 0.0
    %577 = vmatpush.msra.mxu0 0.0
    %578 = vmatpush.msra.mxu0 0.0
    %579 = vmatpush.msra.mxu0 %v364
    %580 = vmatpush.msra.mxu0 %v361
    %581 = vmatpush.msra.mxu0 %v358
    %582 = vmatpush.msra.mxu0 %v355
    %583 = vmatmul.f32.gmra.mxu0 %v525
    %v584 = vpop.f32.mrf.mxu0
    %v585 = vadd.f32 %v369, %v584
    %586 = vdwg.mxu0
    %v587 = vadd.f32 %v521, %v545
    %v588 = vxor.u32 %v587, 2147483648
    %v589 = vmul.f32 %v588, 1.442695
    %v590 = vpow.pop %v589
    %v591 = vadd.f32 %v590, 1.0
    %v592 = vrcp.pop %v591
    %v593 = vmul.f32 %v591, %v592
    %v594 = vsub.f32 1.0, %v593
    %v595 = vmul.f32 %v592, %v594
    %v596 = vadd.f32 %v592, %v595
    %vm597 = vweird.f32 %v591
    %vm598 = vweird.f32 %v592
    %vm599 = vmor %vm597, %vm598
    %v600 = vsel %vm599, %v592, %v596
    %v601 = vand.u32 2147483647, %v591
    %vm602 = vcmp.eq.f32.partialorder %v601, 8.507059e+37
    %v603 = vand.u32 %v591, 2147483648
    %v604 = vor.u32 1.1754944e-38, %v603
    %v605 = vsel %vm602, %v604, %v600
    %v606 = vmul.f32 1.0, %v605
    %v607 = vadd.f32 %v522, %v565
    %v608 = vxor.u32 %v607, 2147483648
    %v609 = vmul.f32 %v608, 1.442695
    %v610 = vpow.pop %v609
    %v611 = vadd.f32 %v610, 1.0
    %v612 = vrcp.pop %v611
    %v613 = vmul.f32 %v611, %v612
    %v614 = vsub.f32 1.0, %v613
    %v615 = vmul.f32 %v612, %v614
    %v616 = vadd.f32 %v612, %v615
    %vm617 = vweird.f32 %v611
    %vm618 = vweird.f32 %v612
    %vm619 = vmor %vm617, %vm618
    %v620 = vsel %vm619, %v612, %v616
    %v621 = vand.u32 2147483647, %v611
    %vm622 = vcmp.eq.f32.partialorder %v621, 8.507059e+37
    %v623 = vand.u32 %v611, 2147483648
    %v624 = vor.u32 1.1754944e-38, %v623
    %v625 = vsel %vm622, %v624, %v620
    %v626 = vmul.f32 1.0, %v625
    %v627 = vmul.f32 %v606, %v585
    %v628 = vadd.f32 %v523, %v627
    %v629 = vtanh.pop %v628
    %v630 = vsub.f32 1.0, %v626
    %v631 = vmul.f32 %v630, %v629
    %v632 = vmul.f32 %v626, %v508
    %v633 = vadd.f32 %v631, %v632
    %s634 = scalar_lea.vmem %s2, 8
    %v635 = vld [vmem:[%s634] sm:$0xff]
    %v636 = vmul.f32 %v635, %v633
    %s637 = scalar_lea.vmem [#allocation3], 8
    %638 = vst.msk [vmem:[%s637] sm:$0xff] %vm501, %v636
    %s639 = scalar_lea.vmem [#allocation3], 48
    %640 = vst.msk [vmem:[%s639] sm:$0xff] %vm504, %v636
    %v641 = vsub.f32 %v633, %v508
    %v642 = vmul.f32 %v635, %v641
    %v643 = vadd.f32 %v508, %v642
    %s644 = smul.u32 2, 3
    %s645 = smul.addr %s644, 8
    %s646 = scalar_lea.vmem [#allocation2], %s645
    %v647 = vld [vmem:[%s646] sm:$0xff]
    %v648 = vld [vmem:[%s646 + $0x8] sm:$0xff]
    %v649 = vld [vmem:[%s646 + $0x10] sm:$0xff]
    %s650 = smul.u32 5, 3
    %s651 = smul.addr %s650, 8
    %s652 = scalar_lea.vmem [#allocation2], %s651
    %v653 = vld [vmem:[%s652] sm:$0xff]
    %v654 = vld [vmem:[%s652 + $0x8] sm:$0xff]
    %v655 = vld [vmem:[%s652 + $0x10] sm:$0xff]
    %v656 = vsel %vm41, %v647, %v653
    %v657 = vsel %vm42, %v648, %v654
    %v658 = vsel %vm43, %v649, %v655
    %v660 = vsel %vm96, %v643, 0
    %662 = vmatpush.msra.mxu0 0.0
    %663 = vmatpush.msra.mxu0 0.0
    %664 = vmatpush.msra.mxu0 0.0
    %665 = vmatpush.msra.mxu0 0.0
    %666 = vmatpush.msra.mxu0 0.0
    %667 = vmatpush.msra.mxu0 0.0
    %668 = vmatpush.msra.mxu0 0.0
    %669 = vmatpush.msra.mxu0 0.0
    %670 = vmatpush.msra.mxu0 0.0
    %671 = vmatpush.msra.mxu0 0.0
    %672 = vmatpush.msra.mxu0 0.0
    %673 = vmatpush.msra.mxu0 0.0
    %674 = vmatpush.msra.mxu0 %v362
    %675 = vmatpush.msra.mxu0 %v359
    %676 = vmatpush.msra.mxu0 %v356
    %677 = vmatpush.msra.mxu0 %v353
    %678 = vmatmul.f32.gmra.mxu0 %v660
    %v679 = vpop.f32.mrf.mxu0
    %v680 = vadd.f32 %v367, %v679
    %681 = vdwg.mxu0
    %682 = vmatpush.msra.mxu0 0.0
    %683 = vmatpush.msra.mxu0 0.0
    %684 = vmatpush.msra.mxu0 0.0
    %685 = vmatpush.msra.mxu0 0.0
    %686 = vmatpush.msra.mxu0 0.0
    %687 = vmatpush.msra.mxu0 0.0
    %688 = vmatpush.msra.mxu0 0.0
    %689 = vmatpush.msra.mxu0 0.0
    %690 = vmatpush.msra.mxu0 0.0
    %691 = vmatpush.msra.mxu0 0.0
    %692 = vmatpush.msra.mxu0 0.0
    %693 = vmatpush.msra.mxu0 0.0
    %694 = vmatpush.msra.mxu0 %v363
    %695 = vmatpush.msra.mxu0 %v360
    %696 = vmatpush.msra.mxu0 %v357
    %697 = vmatpush.msra.mxu0 %v354
    %698 = vmatmul.f32.gmra.mxu0 %v660
    %v699 = vpop.f32.mrf.mxu0
    %v700 = vadd.f32 %v368, %v699
    %701 = vdwg.mxu0
    %702 = vmatpush.msra.mxu0 0.0
    %703 = vmatpush.msra.mxu0 0.0
    %704 = vmatpush.msra.mxu0 0.0
    %705 = vmatpush.msra.mxu0 0.0
    %706 = vmatpush.msra.mxu0 0.0
    %707 = vmatpush.msra.mxu0 0.0
    %708 = vmatpush.msra.mxu0 0.0
    %709 = vmatpush.msra.mxu0 0.0
    %710 = vmatpush.msra.mxu0 0.0
    %711 = vmatpush.msra.mxu0 0.0
    %712 = vmatpush.msra.mxu0 0.0
    %713 = vmatpush.msra.mxu0 0.0
    %714 = vmatpush.msra.mxu0 %v364
    %715 = vmatpush.msra.mxu0 %v361
    %716 = vmatpush.msra.mxu0 %v358
    %717 = vmatpush.msra.mxu0 %v355
    %718 = vmatmul.f32.gmra.mxu0 %v660
    %v719 = vpop.f32.mrf.mxu0
    %v720 = vadd.f32 %v369, %v719
    %721 = vdwg.mxu0
    %v722 = vadd.f32 %v656, %v680
    %v723 = vxor.u32 %v722, 2147483648
    %v724 = vmul.f32 %v723, 1.442695
    %v725 = vpow.pop %v724
    %v726 = vadd.f32 %v725, 1.0
    %v727 = vrcp.pop %v726
    %v728 = vmul.f32 %v726, %v727
    %v729 = vsub.f32 1.0, %v728
    %v730 = vmul.f32 %v727, %v729
    %v731 = vadd.f32 %v727, %v730
    %vm732 = vweird.f32 %v726
    %vm733 = vweird.f32 %v727
    %vm734 = vmor %vm732, %vm733
    %v735 = vsel %vm734, %v727, %v731
    %v736 = vand.u32 2147483647, %v726
    %vm737 = vcmp.eq.f32.partialorder %v736, 8.507059e+37
    %v738 = vand.u32 %v726, 2147483648
    %v739 = vor.u32 1.1754944e-38, %v738
    %v740 = vsel %vm737, %v739, %v735
    %v741 = vmul.f32 1.0, %v740
    %v742 = vadd.f32 %v657, %v700
    %v743 = vxor.u32 %v742, 2147483648
    %v744 = vmul.f32 %v743, 1.442695
    %v745 = vpow.pop %v744
    %v746 = vadd.f32 %v745, 1.0
    %v747 = vrcp.pop %v746
    %v748 = vmul.f32 %v746, %v747
    %v749 = vsub.f32 1.0, %v748
    %v750 = vmul.f32 %v747, %v749
    %v751 = vadd.f32 %v747, %v750
    %vm752 = vweird.f32 %v746
    %vm753 = vweird.f32 %v747
    %vm754 = vmor %vm752, %vm753
    %v755 = vsel %vm754, %v747, %v751
    %v756 = vand.u32 2147483647, %v746
    %vm757 = vcmp.eq.f32.partialorder %v756, 8.507059e+37
    %v758 = vand.u32 %v746, 2147483648
    %v759 = vor.u32 1.1754944e-38, %v758
    %v760 = vsel %vm757, %v759, %v755
    %v761 = vmul.f32 1.0, %v760
    %v762 = vmul.f32 %v741, %v720
    %v763 = vadd.f32 %v658, %v762
    %v764 = vtanh.pop %v763
    %v765 = vsub.f32 1.0, %v761
    %v766 = vmul.f32 %v765, %v764
    %v767 = vmul.f32 %v761, %v643
    %v768 = vadd.f32 %v766, %v767
    %s769 = scalar_lea.vmem %s2, 16
    %v770 = vld [vmem:[%s769] sm:$0xff]
    %v771 = vmul.f32 %v770, %v768
    %s772 = scalar_lea.vmem [#allocation3], 16
    %773 = vst.msk [vmem:[%s772] sm:$0xff] %vm501, %v771
    %s774 = scalar_lea.vmem [#allocation3], 40
    %775 = vst.msk [vmem:[%s774] sm:$0xff] %vm504, %v771
    %v776 = vsub.f32 %v768, %v643
    %v777 = vmul.f32 %v770, %v776
    %v778 = vadd.f32 %v643, %v777
    %s779 = smul.u32 3, 3
    %s780 = smul.addr %s779, 8
    %s781 = scalar_lea.vmem [#allocation2], %s780
    %v782 = vld [vmem:[%s781] sm:$0xff]
    %v783 = vld [vmem:[%s781 + $0x8] sm:$0xff]
    %v784 = vld [vmem:[%s781 + $0x10] sm:$0xff]
    %s785 = smul.u32 4, 3
    %s786 = smul.addr %s785, 8
    %s787 = scalar_lea.vmem [#allocation2], %s786
    %v788 = vld [vmem:[%s787] sm:$0xff]
    %v789 = vld [vmem:[%s787 + $0x8] sm:$0xff]
    %v790 = vld [vmem:[%s787 + $0x10] sm:$0xff]
    %v791 = vsel %vm41, %v782, %v788
    %v792 = vsel %vm42, %v783, %v789
    %v793 = vsel %vm43, %v784, %v790
    %v795 = vsel %vm96, %v778, 0
    %797 = vmatpush.msra.mxu0 0.0
    %798 = vmatpush.msra.mxu0 0.0
    %799 = vmatpush.msra.mxu0 0.0
    %800 = vmatpush.msra.mxu0 0.0
    %801 = vmatpush.msra.mxu0 0.0
    %802 = vmatpush.msra.mxu0 0.0
    %803 = vmatpush.msra.mxu0 0.0
    %804 = vmatpush.msra.mxu0 0.0
    %805 = vmatpush.msra.mxu0 0.0
    %806 = vmatpush.msra.mxu0 0.0
    %807 = vmatpush.msra.mxu0 0.0
    %808 = vmatpush.msra.mxu0 0.0
    %809 = vmatpush.msra.mxu0 %v362
    %810 = vmatpush.msra.mxu0 %v359
    %811 = vmatpush.msra.mxu0 %v356
    %812 = vmatpush.msra.mxu0 %v353
    %813 = vmatmul.f32.gmra.mxu0 %v795
    %v814 = vpop.f32.mrf.mxu0
    %v815 = vadd.f32 %v367, %v814
    %816 = vdwg.mxu0
    %817 = vmatpush.msra.mxu0 0.0
    %818 = vmatpush.msra.mxu0 0.0
    %819 = vmatpush.msra.mxu0 0.0
    %820 = vmatpush.msra.mxu0 0.0
    %821 = vmatpush.msra.mxu0 0.0
    %822 = vmatpush.msra.mxu0 0.0
    %823 = vmatpush.msra.mxu0 0.0
    %824 = vmatpush.msra.mxu0 0.0
    %825 = vmatpush.msra.mxu0 0.0
    %826 = vmatpush.msra.mxu0 0.0
    %827 = vmatpush.msra.mxu0 0.0
    %828 = vmatpush.msra.mxu0 0.0
    %829 = vmatpush.msra.mxu0 %v363
    %830 = vmatpush.msra.mxu0 %v360
    %831 = vmatpush.msra.mxu0 %v357
    %832 = vmatpush.msra.mxu0 %v354
    %833 = vmatmul.f32.gmra.mxu0 %v795
    %v834 = vpop.f32.mrf.mxu0
    %v835 = vadd.f32 %v368, %v834
    %836 = vdwg.mxu0
    %837 = vmatpush.msra.mxu0 0.0
    %838 = vmatpush.msra.mxu0 0.0
    %839 = vmatpush.msra.mxu0 0.0
    %840 = vmatpush.msra.mxu0 0.0
    %841 = vmatpush.msra.mxu0 0.0
    %842 = vmatpush.msra.mxu0 0.0
    %843 = vmatpush.msra.mxu0 0.0
    %844 = vmatpush.msra.mxu0 0.0
    %845 = vmatpush.msra.mxu0 0.0
    %846 = vmatpush.msra.mxu0 0.0
    %847 = vmatpush.msra.mxu0 0.0
    %848 = vmatpush.msra.mxu0 0.0
    %849 = vmatpush.msra.mxu0 %v364
    %850 = vmatpush.msra.mxu0 %v361
    %851 = vmatpush.msra.mxu0 %v358
    %852 = vmatpush.msra.mxu0 %v355
    %853 = vmatmul.f32.gmra.mxu0 %v795
    %v854 = vpop.f32.mrf.mxu0
    %v855 = vadd.f32 %v369, %v854
    %856 = vdwg.mxu0
    %v857 = vadd.f32 %v791, %v815
    %v858 = vxor.u32 %v857, 2147483648
    %v859 = vmul.f32 %v858, 1.442695
    %v860 = vpow.pop %v859
    %v861 = vadd.f32 %v860, 1.0
    %v862 = vrcp.pop %v861
    %v863 = vmul.f32 %v861, %v862
    %v864 = vsub.f32 1.0, %v863
    %v865 = vmul.f32 %v862, %v864
    %v866 = vadd.f32 %v862, %v865
    %vm867 = vweird.f32 %v861
    %vm868 = vweird.f32 %v862
    %vm869 = vmor %vm867, %vm868
    %v870 = vsel %vm869, %v862, %v866
    %v871 = vand.u32 2147483647, %v861
    %vm872 = vcmp.eq.f32.partialorder %v871, 8.507059e+37
    %v873 = vand.u32 %v861, 2147483648
    %v874 = vor.u32 1.1754944e-38, %v873
    %v875 = vsel %vm872, %v874, %v870
    %v876 = vmul.f32 1.0, %v875
    %v877 = vadd.f32 %v792, %v835
    %v878 = vxor.u32 %v877, 2147483648
    %v879 = vmul.f32 %v878, 1.442695
    %v880 = vpow.pop %v879
    %v881 = vadd.f32 %v880, 1.0
    %v882 = vrcp.pop %v881
    %v883 = vmul.f32 %v881, %v882
    %v884 = vsub.f32 1.0, %v883
    %v885 = vmul.f32 %v882, %v884
    %v886 = vadd.f32 %v882, %v885
    %vm887 = vweird.f32 %v881
    %vm888 = vweird.f32 %v882
    %vm889 = vmor %vm887, %vm888
    %v890 = vsel %vm889, %v882, %v886
    %v891 = vand.u32 2147483647, %v881
    %vm892 = vcmp.eq.f32.partialorder %v891, 8.507059e+37
    %v893 = vand.u32 %v881, 2147483648
    %v894 = vor.u32 1.1754944e-38, %v893
    %v895 = vsel %vm892, %v894, %v890
    %v896 = vmul.f32 1.0, %v895
    %v897 = vmul.f32 %v876, %v855
    %v898 = vadd.f32 %v793, %v897
    %v899 = vtanh.pop %v898
    %v900 = vsub.f32 1.0, %v896
    %v901 = vmul.f32 %v900, %v899
    %v902 = vmul.f32 %v896, %v778
    %v903 = vadd.f32 %v901, %v902
    %s904 = scalar_lea.vmem %s2, 24
    %v905 = vld [vmem:[%s904] sm:$0xff]
    %v906 = vmul.f32 %v905, %v903
    %s907 = scalar_lea.vmem [#allocation3], 24
    %908 = vst.msk [vmem:[%s907] sm:$0xff] %vm501, %v906
    %s909 = scalar_lea.vmem [#allocation3], 32
    %910 = vst.msk [vmem:[%s909] sm:$0xff] %vm504, %v906
    %v911 = vsub.f32 %v903, %v778
    %v912 = vmul.f32 %v905, %v911
    %v913 = vadd.f32 %v778, %v912
    %v914 = vld [vmem:[%s787] sm:$0xff]
    %v915 = vld [vmem:[%s787 + $0x8] sm:$0xff]
    %v916 = vld [vmem:[%s787 + $0x10] sm:$0xff]
    %v917 = vld [vmem:[%s781] sm:$0xff]
    %v918 = vld [vmem:[%s781 + $0x8] sm:$0xff]
    %v919 = vld [vmem:[%s781 + $0x10] sm:$0xff]
    %v920 = vsel %vm41, %v914, %v917
    %v921 = vsel %vm42, %v915, %v918
    %v922 = vsel %vm43, %v916, %v919
    %v924 = vsel %vm96, %v913, 0
    %926 = vmatpush.msra.mxu0 0.0
    %927 = vmatpush.msra.mxu0 0.0
    %928 = vmatpush.msra.mxu0 0.0
    %929 = vmatpush.msra.mxu0 0.0
    %930 = vmatpush.msra.mxu0 0.0
    %931 = vmatpush.msra.mxu0 0.0
    %932 = vmatpush.msra.mxu0 0.0
    %933 = vmatpush.msra.mxu0 0.0
    %934 = vmatpush.msra.mxu0 0.0
    %935 = vmatpush.msra.mxu0 0.0
    %936 = vmatpush.msra.mxu0 0.0
    %937 = vmatpush.msra.mxu0 0.0
    %938 = vmatpush.msra.mxu0 %v362
    %939 = vmatpush.msra.mxu0 %v359
    %940 = vmatpush.msra.mxu0 %v356
    %941 = vmatpush.msra.mxu0 %v353
    %942 = vmatmul.f32.gmra.mxu0 %v924
    %v943 = vpop.f32.mrf.mxu0
    %v944 = vadd.f32 %v367, %v943
    %945 = vdwg.mxu0
    %946 = vmatpush.msra.mxu0 0.0
    %947 = vmatpush.msra.mxu0 0.0
    %948 = vmatpush.msra.mxu0 0.0
    %949 = vmatpush.msra.mxu0 0.0
    %950 = vmatpush.msra.mxu0 0.0
    %951 = vmatpush.msra.mxu0 0.0
    %952 = vmatpush.msra.mxu0 0.0
    %953 = vmatpush.msra.mxu0 0.0
    %954 = vmatpush.msra.mxu0 0.0
    %955 = vmatpush.msra.mxu0 0.0
    %956 = vmatpush.msra.mxu0 0.0
    %957 = vmatpush.msra.mxu0 0.0
    %958 = vmatpush.msra.mxu0 %v363
    %959 = vmatpush.msra.mxu0 %v360
    %960 = vmatpush.msra.mxu0 %v357
    %961 = vmatpush.msra.mxu0 %v354
    %962 = vmatmul.f32.gmra.mxu0 %v924
    %v963 = vpop.f32.mrf.mxu0
    %v964 = vadd.f32 %v368, %v963
    %965 = vdwg.mxu0
    %966 = vmatpush.msra.mxu0 0.0
    %967 = vmatpush.msra.mxu0 0.0
    %968 = vmatpush.msra.mxu0 0.0
    %969 = vmatpush.msra.mxu0 0.0
    %970 = vmatpush.msra.mxu0 0.0
    %971 = vmatpush.msra.mxu0 0.0
    %972 = vmatpush.msra.mxu0 0.0
    %973 = vmatpush.msra.mxu0 0.0
    %974 = vmatpush.msra.mxu0 0.0
    %975 = vmatpush.msra.mxu0 0.0
    %976 = vmatpush.msra.mxu0 0.0
    %977 = vmatpush.msra.mxu0 0.0
    %978 = vmatpush.msra.mxu0 %v364
    %979 = vmatpush.msra.mxu0 %v361
    %980 = vmatpush.msra.mxu0 %v358
    %981 = vmatpush.msra.mxu0 %v355
    %982 = vmatmul.f32.gmra.mxu0 %v924
    %v983 = vpop.f32.mrf.mxu0
    %v984 = vadd.f32 %v369, %v983
    %985 = vdwg.mxu0
    %v986 = vadd.f32 %v920, %v944
    %v987 = vxor.u32 %v986, 2147483648
    %v988 = vmul.f32 %v987, 1.442695
    %v989 = vpow.pop %v988
    %v990 = vadd.f32 %v989, 1.0
    %v991 = vrcp.pop %v990
    %v992 = vmul.f32 %v990, %v991
    %v993 = vsub.f32 1.0, %v992
    %v994 = vmul.f32 %v991, %v993
    %v995 = vadd.f32 %v991, %v994
    %vm996 = vweird.f32 %v990
    %vm997 = vweird.f32 %v991
    %vm998 = vmor %vm996, %vm997
    %v999 = vsel %vm998, %v991, %v995
    %v1000 = vand.u32 2147483647, %v990
    %vm1001 = vcmp.eq.f32.partialorder %v1000, 8.507059e+37
    %v1002 = vand.u32 %v990, 2147483648
    %v1003 = vor.u32 1.1754944e-38, %v1002
    %v1004 = vsel %vm1001, %v1003, %v999
    %v1005 = vmul.f32 1.0, %v1004
    %v1006 = vadd.f32 %v921, %v964
    %v1007 = vxor.u32 %v1006, 2147483648
    %v1008 = vmul.f32 %v1007, 1.442695
    %v1009 = vpow.pop %v1008
    %v1010 = vadd.f32 %v1009, 1.0
    %v1011 = vrcp.pop %v1010
    %v1012 = vmul.f32 %v1010, %v1011
    %v1013 = vsub.f32 1.0, %v1012
    %v1014 = vmul.f32 %v1011, %v1013
    %v1015 = vadd.f32 %v1011, %v1014
    %vm1016 = vweird.f32 %v1010
    %vm1017 = vweird.f32 %v1011
    %vm1018 = vmor %vm1016, %vm1017
    %v1019 = vsel %vm1018, %v1011, %v1015
    %v1020 = vand.u32 2147483647, %v1010
    %vm1021 = vcmp.eq.f32.partialorder %v1020, 8.507059e+37
    %v1022 = vand.u32 %v1010, 2147483648
    %v1023 = vor.u32 1.1754944e-38, %v1022
    %v1024 = vsel %vm1021, %v1023, %v1019
    %v1025 = vmul.f32 1.0, %v1024
    %v1026 = vmul.f32 %v1005, %v984
    %v1027 = vadd.f32 %v922, %v1026
    %v1028 = vtanh.pop %v1027
    %v1029 = vsub.f32 1.0, %v1025
    %v1030 = vmul.f32 %v1029, %v1028
    %v1031 = vmul.f32 %v1025, %v913
    %v1032 = vadd.f32 %v1030, %v1031
    %s1033 = scalar_lea.vmem %s2, 32
    %v1034 = vld [vmem:[%s1033] sm:$0xff]
    %v1035 = vmul.f32 %v1034, %v1032
    %1036 = vst.msk [vmem:[%s909] sm:$0xff] %vm501, %v1035
    %1037 = vst.msk [vmem:[%s907] sm:$0xff] %vm504, %v1035
    %v1038 = vsub.f32 %v1032, %v913
    %v1039 = vmul.f32 %v1034, %v1038
    %v1040 = vadd.f32 %v913, %v1039
    %v1041 = vld [vmem:[%s652] sm:$0xff]
    %v1042 = vld [vmem:[%s652 + $0x8] sm:$0xff]
    %v1043 = vld [vmem:[%s652 + $0x10] sm:$0xff]
    %v1044 = vld [vmem:[%s646] sm:$0xff]
    %v1045 = vld [vmem:[%s646 + $0x8] sm:$0xff]
    %v1046 = vld [vmem:[%s646 + $0x10] sm:$0xff]
    %v1047 = vsel %vm41, %v1041, %v1044
    %v1048 = vsel %vm42, %v1042, %v1045
    %v1049 = vsel %vm43, %v1043, %v1046
    %v1051 = vsel %vm96, %v1040, 0
    %1053 = vmatpush.msra.mxu0 0.0
    %1054 = vmatpush.msra.mxu0 0.0
    %1055 = vmatpush.msra.mxu0 0.0
    %1056 = vmatpush.msra.mxu0 0.0
    %1057 = vmatpush.msra.mxu0 0.0
    %1058 = vmatpush.msra.mxu0 0.0
    %1059 = vmatpush.msra.mxu0 0.0
    %1060 = vmatpush.msra.mxu0 0.0
    %1061 = vmatpush.msra.mxu0 0.0
    %1062 = vmatpush.msra.mxu0 0.0
    %1063 = vmatpush.msra.mxu0 0.0
    %1064 = vmatpush.msra.mxu0 0.0
    %1065 = vmatpush.msra.mxu0 %v362
    %1066 = vmatpush.msra.mxu0 %v359
    %1067 = vmatpush.msra.mxu0 %v356
    %1068 = vmatpush.msra.mxu0 %v353
    %1069 = vmatmul.f32.gmra.mxu0 %v1051
    %v1070 = vpop.f32.mrf.mxu0
    %v1071 = vadd.f32 %v367, %v1070
    %1072 = vdwg.mxu0
    %1073 = vmatpush.msra.mxu0 0.0
    %1074 = vmatpush.msra.mxu0 0.0
    %1075 = vmatpush.msra.mxu0 0.0
    %1076 = vmatpush.msra.mxu0 0.0
    %1077 = vmatpush.msra.mxu0 0.0
    %1078 = vmatpush.msra.mxu0 0.0
    %1079 = vmatpush.msra.mxu0 0.0
    %1080 = vmatpush.msra.mxu0 0.0
    %1081 = vmatpush.msra.mxu0 0.0
    %1082 = vmatpush.msra.mxu0 0.0
    %1083 = vmatpush.msra.mxu0 0.0
    %1084 = vmatpush.msra.mxu0 0.0
    %1085 = vmatpush.msra.mxu0 %v363
    %1086 = vmatpush.msra.mxu0 %v360
    %1087 = vmatpush.msra.mxu0 %v357
    %1088 = vmatpush.msra.mxu0 %v354
    %1089 = vmatmul.f32.gmra.mxu0 %v1051
    %v1090 = vpop.f32.mrf.mxu0
    %v1091 = vadd.f32 %v368, %v1090
    %1092 = vdwg.mxu0
    %1093 = vmatpush.msra.mxu0 0.0
    %1094 = vmatpush.msra.mxu0 0.0
    %1095 = vmatpush.msra.mxu0 0.0
    %1096 = vmatpush.msra.mxu0 0.0
    %1097 = vmatpush.msra.mxu0 0.0
    %1098 = vmatpush.msra.mxu0 0.0
    %1099 = vmatpush.msra.mxu0 0.0
    %1100 = vmatpush.msra.mxu0 0.0
    %1101 = vmatpush.msra.mxu0 0.0
    %1102 = vmatpush.msra.mxu0 0.0
    %1103 = vmatpush.msra.mxu0 0.0
    %1104 = vmatpush.msra.mxu0 0.0
    %1105 = vmatpush.msra.mxu0 %v364
    %1106 = vmatpush.msra.mxu0 %v361
    %1107 = vmatpush.msra.mxu0 %v358
    %1108 = vmatpush.msra.mxu0 %v355
    %1109 = vmatmul.f32.gmra.mxu0 %v1051
    %v1110 = vpop.f32.mrf.mxu0
    %v1111 = vadd.f32 %v369, %v1110
    %1112 = vdwg.mxu0
    %v1113 = vadd.f32 %v1047, %v1071
    %v1114 = vxor.u32 %v1113, 2147483648
    %v1115 = vmul.f32 %v1114, 1.442695
    %v1116 = vpow.pop %v1115
    %v1117 = vadd.f32 %v1116, 1.0
    %v1118 = vrcp.pop %v1117
    %v1119 = vmul.f32 %v1117, %v1118
    %v1120 = vsub.f32 1.0, %v1119
    %v1121 = vmul.f32 %v1118, %v1120
    %v1122 = vadd.f32 %v1118, %v1121
    %vm1123 = vweird.f32 %v1117
    %vm1124 = vweird.f32 %v1118
    %vm1125 = vmor %vm1123, %vm1124
    %v1126 = vsel %vm1125, %v1118, %v1122
    %v1127 = vand.u32 2147483647, %v1117
    %vm1128 = vcmp.eq.f32.partialorder %v1127, 8.507059e+37
    %v1129 = vand.u32 %v1117, 2147483648
    %v1130 = vor.u32 1.1754944e-38, %v1129
    %v1131 = vsel %vm1128, %v1130, %v1126
    %v1132 = vmul.f32 1.0, %v1131
    %v1133 = vadd.f32 %v1048, %v1091
    %v1134 = vxor.u32 %v1133, 2147483648
    %v1135 = vmul.f32 %v1134, 1.442695
    %v1136 = vpow.pop %v1135
    %v1137 = vadd.f32 %v1136, 1.0
    %v1138 = vrcp.pop %v1137
    %v1139 = vmul.f32 %v1137, %v1138
    %v1140 = vsub.f32 1.0, %v1139
    %v1141 = vmul.f32 %v1138, %v1140
    %v1142 = vadd.f32 %v1138, %v1141
    %vm1143 = vweird.f32 %v1137
    %vm1144 = vweird.f32 %v1138
    %vm1145 = vmor %vm1143, %vm1144
    %v1146 = vsel %vm1145, %v1138, %v1142
    %v1147 = vand.u32 2147483647, %v1137
    %vm1148 = vcmp.eq.f32.partialorder %v1147, 8.507059e+37
    %v1149 = vand.u32 %v1137, 2147483648
    %v1150 = vor.u32 1.1754944e-38, %v1149
    %v1151 = vsel %vm1148, %v1150, %v1146
    %v1152 = vmul.f32 1.0, %v1151
    %v1153 = vmul.f32 %v1132, %v1111
    %v1154 = vadd.f32 %v1049, %v1153
    %v1155 = vtanh.pop %v1154
    %v1156 = vsub.f32 1.0, %v1152
    %v1157 = vmul.f32 %v1156, %v1155
    %v1158 = vmul.f32 %v1152, %v1040
    %v1159 = vadd.f32 %v1157, %v1158
    %s1160 = scalar_lea.vmem %s2, 40
    %v1161 = vld [vmem:[%s1160] sm:$0xff]
    %v1162 = vmul.f32 %v1161, %v1159
    %1163 = vst.msk [vmem:[%s774] sm:$0xff] %vm501, %v1162
    %1164 = vst.msk [vmem:[%s772] sm:$0xff] %vm504, %v1162
    %v1165 = vsub.f32 %v1159, %v1040
    %v1166 = vmul.f32 %v1161, %v1165
    %v1167 = vadd.f32 %v1040, %v1166
    %v1168 = vld [vmem:[%s517] sm:$0xff]
    %v1169 = vld [vmem:[%s517 + $0x8] sm:$0xff]
    %v1170 = vld [vmem:[%s517 + $0x10] sm:$0xff]
    %v1171 = vld [vmem:[%s511] sm:$0xff]
    %v1172 = vld [vmem:[%s511 + $0x8] sm:$0xff]
    %v1173 = vld [vmem:[%s511 + $0x10] sm:$0xff]
    %v1174 = vsel %vm41, %v1168, %v1171
    %v1175 = vsel %vm42, %v1169, %v1172
    %v1176 = vsel %vm43, %v1170, %v1173
    %v1178 = vsel %vm96, %v1167, 0
    %1180 = vmatpush.msra.mxu0 0.0
    %1181 = vmatpush.msra.mxu0 0.0
    %1182 = vmatpush.msra.mxu0 0.0
    %1183 = vmatpush.msra.mxu0 0.0
    %1184 = vmatpush.msra.mxu0 0.0
    %1185 = vmatpush.msra.mxu0 0.0
    %1186 = vmatpush.msra.mxu0 0.0
    %1187 = vmatpush.msra.mxu0 0.0
    %1188 = vmatpush.msra.mxu0 0.0
    %1189 = vmatpush.msra.mxu0 0.0
    %1190 = vmatpush.msra.mxu0 0.0
    %1191 = vmatpush.msra.mxu0 0.0
    %1192 = vmatpush.msra.mxu0 %v362
    %1193 = vmatpush.msra.mxu0 %v359
    %1194 = vmatpush.msra.mxu0 %v356
    %1195 = vmatpush.msra.mxu0 %v353
    %1196 = vmatmul.f32.gmra.mxu0 %v1178
    %v1197 = vpop.f32.mrf.mxu0
    %v1198 = vadd.f32 %v367, %v1197
    %1199 = vdwg.mxu0
    %1200 = vmatpush.msra.mxu0 0.0
    %1201 = vmatpush.msra.mxu0 0.0
    %1202 = vmatpush.msra.mxu0 0.0
    %1203 = vmatpush.msra.mxu0 0.0
    %1204 = vmatpush.msra.mxu0 0.0
    %1205 = vmatpush.msra.mxu0 0.0
    %1206 = vmatpush.msra.mxu0 0.0
    %1207 = vmatpush.msra.mxu0 0.0
    %1208 = vmatpush.msra.mxu0 0.0
    %1209 = vmatpush.msra.mxu0 0.0
    %1210 = vmatpush.msra.mxu0 0.0
    %1211 = vmatpush.msra.mxu0 0.0
    %1212 = vmatpush.msra.mxu0 %v363
    %1213 = vmatpush.msra.mxu0 %v360
    %1214 = vmatpush.msra.mxu0 %v357
    %1215 = vmatpush.msra.mxu0 %v354
    %1216 = vmatmul.f32.gmra.mxu0 %v1178
    %v1217 = vpop.f32.mrf.mxu0
    %v1218 = vadd.f32 %v368, %v1217
    %1219 = vdwg.mxu0
    %1220 = vmatpush.msra.mxu0 0.0
    %1221 = vmatpush.msra.mxu0 0.0
    %1222 = vmatpush.msra.mxu0 0.0
    %1223 = vmatpush.msra.mxu0 0.0
    %1224 = vmatpush.msra.mxu0 0.0
    %1225 = vmatpush.msra.mxu0 0.0
    %1226 = vmatpush.msra.mxu0 0.0
    %1227 = vmatpush.msra.mxu0 0.0
    %1228 = vmatpush.msra.mxu0 0.0
    %1229 = vmatpush.msra.mxu0 0.0
    %1230 = vmatpush.msra.mxu0 0.0
    %1231 = vmatpush.msra.mxu0 0.0
    %1232 = vmatpush.msra.mxu0 %v364
    %1233 = vmatpush.msra.mxu0 %v361
    %1234 = vmatpush.msra.mxu0 %v358
    %1235 = vmatpush.msra.mxu0 %v355
    %1236 = vmatmul.f32.gmra.mxu0 %v1178
    %v1237 = vpop.f32.mrf.mxu0
    %v1238 = vadd.f32 %v369, %v1237
    %1239 = vdwg.mxu0
    %v1240 = vadd.f32 %v1174, %v1198
    %v1241 = vxor.u32 %v1240, 2147483648
    %v1242 = vmul.f32 %v1241, 1.442695
    %v1243 = vpow.pop %v1242
    %v1244 = vadd.f32 %v1243, 1.0
    %v1245 = vrcp.pop %v1244
    %v1246 = vmul.f32 %v1244, %v1245
    %v1247 = vsub.f32 1.0, %v1246
    %v1248 = vmul.f32 %v1245, %v1247
    %v1249 = vadd.f32 %v1245, %v1248
    %vm1250 = vweird.f32 %v1244
    %vm1251 = vweird.f32 %v1245
    %vm1252 = vmor %vm1250, %vm1251
    %v1253 = vsel %vm1252, %v1245, %v1249
    %v1254 = vand.u32 2147483647, %v1244
    %vm1255 = vcmp.eq.f32.partialorder %v1254, 8.507059e+37
    %v1256 = vand.u32 %v1244, 2147483648
    %v1257 = vor.u32 1.1754944e-38, %v1256
    %v1258 = vsel %vm1255, %v1257, %v1253
    %v1259 = vmul.f32 1.0, %v1258
    %v1260 = vadd.f32 %v1175, %v1218
    %v1261 = vxor.u32 %v1260, 2147483648
    %v1262 = vmul.f32 %v1261, 1.442695
    %v1263 = vpow.pop %v1262
    %v1264 = vadd.f32 %v1263, 1.0
    %v1265 = vrcp.pop %v1264
    %v1266 = vmul.f32 %v1264, %v1265
    %v1267 = vsub.f32 1.0, %v1266
    %v1268 = vmul.f32 %v1265, %v1267
    %v1269 = vadd.f32 %v1265, %v1268
    %vm1270 = vweird.f32 %v1264
    %vm1271 = vweird.f32 %v1265
    %vm1272 = vmor %vm1270, %vm1271
    %v1273 = vsel %vm1272, %v1265, %v1269
    %v1274 = vand.u32 2147483647, %v1264
    %vm1275 = vcmp.eq.f32.partialorder %v1274, 8.507059e+37
    %v1276 = vand.u32 %v1264, 2147483648
    %v1277 = vor.u32 1.1754944e-38, %v1276
    %v1278 = vsel %vm1275, %v1277, %v1273
    %v1279 = vmul.f32 1.0, %v1278
    %v1280 = vmul.f32 %v1259, %v1238
    %v1281 = vadd.f32 %v1176, %v1280
    %v1282 = vtanh.pop %v1281
    %v1283 = vsub.f32 1.0, %v1279
    %v1284 = vmul.f32 %v1283, %v1282
    %v1285 = vmul.f32 %v1279, %v1167
    %v1286 = vadd.f32 %v1284, %v1285
    %s1287 = scalar_lea.vmem %s2, 48
    %v1288 = vld [vmem:[%s1287] sm:$0xff]
    %v1289 = vmul.f32 %v1288, %v1286
    %1290 = vst.msk [vmem:[%s639] sm:$0xff] %vm501, %v1289
    %1291 = vst.msk [vmem:[%s637] sm:$0xff] %vm504, %v1289
    %v1292 = vsub.f32 %v1286, %v1167
    %v1293 = vmul.f32 %v1288, %v1292
    %v1294 = vadd.f32 %v1167, %v1293
    %v1295 = vld [vmem:[%s382] sm:$0xff]
    %v1296 = vld [vmem:[%s382 + $0x8] sm:$0xff]
    %v1297 = vld [vmem:[%s382 + $0x10] sm:$0xff]
    %v1298 = vld [vmem:[%s376] sm:$0xff]
    %v1299 = vld [vmem:[%s376 + $0x8] sm:$0xff]
    %v1300 = vld [vmem:[%s376 + $0x10] sm:$0xff]
    %v1301 = vsel %vm41, %v1295, %v1298
    %v1302 = vsel %vm42, %v1296, %v1299
    %v1303 = vsel %vm43, %v1297, %v1300
    %v1305 = vsel %vm96, %v1294, 0
    %1307 = vmatpush.msra.mxu0 0.0
    %1308 = vmatpush.msra.mxu0 0.0
    %1309 = vmatpush.msra.mxu0 0.0
    %1310 = vmatpush.msra.mxu0 0.0
    %1311 = vmatpush.msra.mxu0 0.0
    %1312 = vmatpush.msra.mxu0 0.0
    %1313 = vmatpush.msra.mxu0 0.0
    %1314 = vmatpush.msra.mxu0 0.0
    %1315 = vmatpush.msra.mxu0 0.0
    %1316 = vmatpush.msra.mxu0 0.0
    %1317 = vmatpush.msra.mxu0 0.0
    %1318 = vmatpush.msra.mxu0 0.0
    %1319 = vmatpush.msra.mxu0 %v362
    %1320 = vmatpush.msra.mxu0 %v359
    %1321 = vmatpush.msra.mxu0 %v356
    %1322 = vmatpush.msra.mxu0 %v353
    %1323 = vmatmul.f32.gmra.mxu0 %v1305
    %v1324 = vpop.f32.mrf.mxu0
    %v1325 = vadd.f32 %v367, %v1324
    %1326 = vdwg.mxu0
    %1327 = vmatpush.msra.mxu0 0.0
    %1328 = vmatpush.msra.mxu0 0.0
    %1329 = vmatpush.msra.mxu0 0.0
    %1330 = vmatpush.msra.mxu0 0.0
    %1331 = vmatpush.msra.mxu0 0.0
    %1332 = vmatpush.msra.mxu0 0.0
    %1333 = vmatpush.msra.mxu0 0.0
    %1334 = vmatpush.msra.mxu0 0.0
    %1335 = vmatpush.msra.mxu0 0.0
    %1336 = vmatpush.msra.mxu0 0.0
    %1337 = vmatpush.msra.mxu0 0.0
    %1338 = vmatpush.msra.mxu0 0.0
    %1339 = vmatpush.msra.mxu0 %v363
    %1340 = vmatpush.msra.mxu0 %v360
    %1341 = vmatpush.msra.mxu0 %v357
    %1342 = vmatpush.msra.mxu0 %v354
    %1343 = vmatmul.f32.gmra.mxu0 %v1305
    %v1344 = vpop.f32.mrf.mxu0
    %v1345 = vadd.f32 %v368, %v1344
    %1346 = vdwg.mxu0
    %1347 = vmatpush.msra.mxu0 0.0
    %1348 = vmatpush.msra.mxu0 0.0
    %1349 = vmatpush.msra.mxu0 0.0
    %1350 = vmatpush.msra.mxu0 0.0
    %1351 = vmatpush.msra.mxu0 0.0
    %1352 = vmatpush.msra.mxu0 0.0
    %1353 = vmatpush.msra.mxu0 0.0
    %1354 = vmatpush.msra.mxu0 0.0
    %1355 = vmatpush.msra.mxu0 0.0
    %1356 = vmatpush.msra.mxu0 0.0
    %1357 = vmatpush.msra.mxu0 0.0
    %1358 = vmatpush.msra.mxu0 0.0
    %1359 = vmatpush.msra.mxu0 %v364
    %1360 = vmatpush.msra.mxu0 %v361
    %1361 = vmatpush.msra.mxu0 %v358
    %1362 = vmatpush.msra.mxu0 %v355
    %1363 = vmatmul.f32.gmra.mxu0 %v1305
    %v1364 = vpop.f32.mrf.mxu0
    %v1365 = vadd.f32 %v369, %v1364
    %1366 = vdwg.mxu0
    %v1367 = vadd.f32 %v1301, %v1325
    %v1368 = vxor.u32 %v1367, 2147483648
    %v1369 = vmul.f32 %v1368, 1.442695
    %v1370 = vpow.pop %v1369
    %v1371 = vadd.f32 %v1370, 1.0
    %v1372 = vrcp.pop %v1371
    %v1373 = vmul.f32 %v1371, %v1372
    %v1374 = vsub.f32 1.0, %v1373
    %v1375 = vmul.f32 %v1372, %v1374
    %v1376 = vadd.f32 %v1372, %v1375
    %vm1377 = vweird.f32 %v1371
    %vm1378 = vweird.f32 %v1372
    %vm1379 = vmor %vm1377, %vm1378
    %v1380 = vsel %vm1379, %v1372, %v1376
    %v1381 = vand.u32 2147483647, %v1371
    %vm1382 = vcmp.eq.f32.partialorder %v1381, 8.507059e+37
    %v1383 = vand.u32 %v1371, 2147483648
    %v1384 = vor.u32 1.1754944e-38, %v1383
    %v1385 = vsel %vm1382, %v1384, %v1380
    %v1386 = vmul.f32 1.0, %v1385
    %v1387 = vadd.f32 %v1302, %v1345
    %v1388 = vxor.u32 %v1387, 2147483648
    %v1389 = vmul.f32 %v1388, 1.442695
    %v1390 = vpow.pop %v1389
    %v1391 = vadd.f32 %v1390, 1.0
    %v1392 = vrcp.pop %v1391
    %v1393 = vmul.f32 %v1391, %v1392
    %v1394 = vsub.f32 1.0, %v1393
    %v1395 = vmul.f32 %v1392, %v1394
    %v1396 = vadd.f32 %v1392, %v1395
    %vm1397 = vweird.f32 %v1391
    %vm1398 = vweird.f32 %v1392
    %vm1399 = vmor %vm1397, %vm1398
    %v1400 = vsel %vm1399, %v1392, %v1396
    %v1401 = vand.u32 2147483647, %v1391
    %vm1402 = vcmp.eq.f32.partialorder %v1401, 8.507059e+37
    %v1403 = vand.u32 %v1391, 2147483648
    %v1404 = vor.u32 1.1754944e-38, %v1403
    %v1405 = vsel %vm1402, %v1404, %v1400
    %v1406 = vmul.f32 1.0, %v1405
    %v1407 = vmul.f32 %v1386, %v1365
    %v1408 = vadd.f32 %v1303, %v1407
    %v1409 = vtanh.pop %v1408
    %v1410 = vsub.f32 1.0, %v1406
    %v1411 = vmul.f32 %v1410, %v1409
    %v1412 = vmul.f32 %v1406, %v1294
    %v1413 = vadd.f32 %v1411, %v1412
    %s1414 = scalar_lea.vmem %s2, 56
    %v1415 = vld [vmem:[%s1414] sm:$0xff]
    %v1416 = vmul.f32 %v1415, %v1413
    %1417 = vst.msk [vmem:[%s503] sm:$0xff] %vm501, %v1416
    %1418 = vst.msk [vmem:[#allocation3] sm:$0xff] %vm504, %v1416
    %v1419 = vsub.f32 %v1413, %v1294
    %v1420 = vmul.f32 %v1415, %v1419
    %v1421 = vadd.f32 %v1294, %v1420
    %1422 = vst.msk [vmem:[%s9] sm:$0xff] %vm96, %v1421
    %v1423 = vld [vmem:[#allocation3] sm:$0xff]
    %v1424 = vld [vmem:[#allocation3 + $0x8] sm:$0xff]
    %v1425 = vld [vmem:[#allocation3 + $0x10] sm:$0xff]
    %v1426 = vld [vmem:[#allocation3 + $0x18] sm:$0xff]
    %v1427 = vld [vmem:[#allocation3 + $0x20] sm:$0xff]
    %v1428 = vld [vmem:[#allocation3 + $0x28] sm:$0xff]
    %v1429 = vld [vmem:[#allocation3 + $0x30] sm:$0xff]
    %v1430 = vld [vmem:[#allocation3 + $0x38] sm:$0xff]
    %s1431 = scalar_lea.vmem %s4, 96
    %v1432 = vld [vmem:[%s1431] sm:$0xff]
    %v1433 = vld [vmem:[%s1431 + $0x8] sm:$0xff]
    %v1434 = vld [vmem:[%s1431 + $0x10] sm:$0xff]
    %v1435 = vld [vmem:[%s1431 + $0x18] sm:$0xff]
    %v1436 = vld [vmem:[%s1431 + $0x20] sm:$0xff]
    %v1437 = vld [vmem:[%s1431 + $0x28] sm:$0xff]
    %v1438 = vld [vmem:[%s1431 + $0x30] sm:$0xff]
    %v1439 = vld [vmem:[%s1431 + $0x38] sm:$0xff]
    %v1440 = vld [vmem:[%s1431 + $0x40] sm:$0xff]
    %v1441 = vld [vmem:[%s1431 + $0x48] sm:$0xff]
    %v1442 = vld [vmem:[%s1431 + $0x50] sm:$0xff]
    %v1443 = vld [vmem:[%s1431 + $0x58] sm:$0xff]
    %s1444 = scalar_lea.vmem %s5, 3
    %v1445 = vld [vmem:[%s1444] sm:$0x7]
    %v1447 = vperm.slane %v1445, 0
    %v1448 = vperm.slane %v1445, 1
    %v1449 = vperm.slane %v1445, 2
    %v1454 = vsel %vm96, %v1423, 0
    %v1457 = vsel %vm96, %v1424, 0
    %v1460 = vsel %vm96, %v1425, 0
    %v1463 = vsel %vm96, %v1426, 0
    %v1466 = vsel %vm96, %v1427, 0
    %v1469 = vsel %vm96, %v1428, 0
    %v1472 = vsel %vm96, %v1429, 0
    %v1475 = vsel %vm96, %v1430, 0
    %1477 = vmatpush.msra.mxu0 0.0
    %1478 = vmatpush.msra.mxu0 0.0
    %1479 = vmatpush.msra.mxu0 0.0
    %1480 = vmatpush.msra.mxu0 0.0
    %1481 = vmatpush.msra.mxu0 0.0
    %1482 = vmatpush.msra.mxu0 0.0
    %1483 = vmatpush.msra.mxu0 0.0
    %1484 = vmatpush.msra.mxu0 0.0
    %1485 = vmatpush.msra.mxu0 0.0
    %1486 = vmatpush.msra.mxu0 0.0
    %1487 = vmatpush.msra.mxu0 0.0
    %1488 = vmatpush.msra.mxu0 0.0
    %1489 = vmatpush.msra.mxu0 %v1441
    %1490 = vmatpush.msra.mxu0 %v1438
    %1491 = vmatpush.msra.mxu0 %v1435
    %1492 = vmatpush.msra.mxu0 %v1432
    %1493 = vmatmul.f32.gmra.mxu0 %v1454
    %v1494 = vpop.f32.mrf.mxu0
    %v1495 = vadd.f32 %v1447, %v1494
    %1496 = vmatmul.f32.gmra.mxu0 %v1457
    %v1497 = vpop.f32.mrf.mxu0
    %v1498 = vadd.f32 %v1447, %v1497
    %1499 = vmatmul.f32.gmra.mxu0 %v1460
    %v1500 = vpop.f32.mrf.mxu0
    %v1501 = vadd.f32 %v1447, %v1500
    %1502 = vmatmul.f32.gmra.mxu0 %v1463
    %v1503 = vpop.f32.mrf.mxu0
    %v1504 = vadd.f32 %v1447, %v1503
    %1505 = vmatmul.f32.gmra.mxu0 %v1466
    %v1506 = vpop.f32.mrf.mxu0
    %v1507 = vadd.f32 %v1447, %v1506
    %1508 = vmatmul.f32.gmra.mxu0 %v1469
    %v1509 = vpop.f32.mrf.mxu0
    %v1510 = vadd.f32 %v1447, %v1509
    %1511 = vmatmul.f32.gmra.mxu0 %v1472
    %v1512 = vpop.f32.mrf.mxu0
    %v1513 = vadd.f32 %v1447, %v1512
    %1514 = vmatmul.f32.gmra.mxu0 %v1475
    %v1515 = vpop.f32.mrf.mxu0
    %v1516 = vadd.f32 %v1447, %v1515
    %1517 = vdwg.mxu0
    %1518 = vmatpush.msra.mxu0 0.0
    %1519 = vmatpush.msra.mxu0 0.0
    %1520 = vmatpush.msra.mxu0 0.0
    %1521 = vmatpush.msra.mxu0 0.0
    %1522 = vmatpush.msra.mxu0 0.0
    %1523 = vmatpush.msra.mxu0 0.0
    %1524 = vmatpush.msra.mxu0 0.0
    %1525 = vmatpush.msra.mxu0 0.0
    %1526 = vmatpush.msra.mxu0 0.0
    %1527 = vmatpush.msra.mxu0 0.0
    %1528 = vmatpush.msra.mxu0 0.0
    %1529 = vmatpush.msra.mxu0 0.0
    %1530 = vmatpush.msra.mxu0 %v1442
    %1531 = vmatpush.msra.mxu0 %v1439
    %1532 = vmatpush.msra.mxu0 %v1436
    %1533 = vmatpush.msra.mxu0 %v1433
    %1534 = vmatmul.f32.gmra.mxu0 %v1454
    %v1535 = vpop.f32.mrf.mxu0
    %v1536 = vadd.f32 %v1448, %v1535
    %1537 = vmatmul.f32.gmra.mxu0 %v1457
    %v1538 = vpop.f32.mrf.mxu0
    %v1539 = vadd.f32 %v1448, %v1538
    %1540 = vmatmul.f32.gmra.mxu0 %v1460
    %v1541 = vpop.f32.mrf.mxu0
    %v1542 = vadd.f32 %v1448, %v1541
    %1543 = vmatmul.f32.gmra.mxu0 %v1463
    %v1544 = vpop.f32.mrf.mxu0
    %v1545 = vadd.f32 %v1448, %v1544
    %1546 = vmatmul.f32.gmra.mxu0 %v1466
    %v1547 = vpop.f32.mrf.mxu0
    %v1548 = vadd.f32 %v1448, %v1547
    %1549 = vmatmul.f32.gmra.mxu0 %v1469
    %v1550 = vpop.f32.mrf.mxu0
    %v1551 = vadd.f32 %v1448, %v1550
    %1552 = vmatmul.f32.gmra.mxu0 %v1472
    %v1553 = vpop.f32.mrf.mxu0
    %v1554 = vadd.f32 %v1448, %v1553
    %1555 = vmatmul.f32.gmra.mxu0 %v1475
    %v1556 = vpop.f32.mrf.mxu0
    %v1557 = vadd.f32 %v1448, %v1556
    %1558 = vdwg.mxu0
    %1559 = vmatpush.msra.mxu0 0.0
    %1560 = vmatpush.msra.mxu0 0.0
    %1561 = vmatpush.msra.mxu0 0.0
    %1562 = vmatpush.msra.mxu0 0.0
    %1563 = vmatpush.msra.mxu0 0.0
    %1564 = vmatpush.msra.mxu0 0.0
    %1565 = vmatpush.msra.mxu0 0.0
    %1566 = vmatpush.msra.mxu0 0.0
    %1567 = vmatpush.msra.mxu0 0.0
    %1568 = vmatpush.msra.mxu0 0.0
    %1569 = vmatpush.msra.mxu0 0.0
    %1570 = vmatpush.msra.mxu0 0.0
    %1571 = vmatpush.msra.mxu0 %v1443
    %1572 = vmatpush.msra.mxu0 %v1440
    %1573 = vmatpush.msra.mxu0 %v1437
    %1574 = vmatpush.msra.mxu0 %v1434
    %1575 = vmatmul.f32.gmra.mxu0 %v1454
    %v1576 = vpop.f32.mrf.mxu0
    %v1577 = vadd.f32 %v1449, %v1576
    %1578 = vmatmul.f32.gmra.mxu0 %v1457
    %v1579 = vpop.f32.mrf.mxu0
    %v1580 = vadd.f32 %v1449, %v1579
    %1581 = vmatmul.f32.gmra.mxu0 %v1460
    %v1582 = vpop.f32.mrf.mxu0
    %v1583 = vadd.f32 %v1449, %v1582
    %1584 = vmatmul.f32.gmra.mxu0 %v1463
    %v1585 = vpop.f32.mrf.mxu0
    %v1586 = vadd.f32 %v1449, %v1585
    %1587 = vmatmul.f32.gmra.mxu0 %v1466
    %v1588 = vpop.f32.mrf.mxu0
    %v1589 = vadd.f32 %v1449, %v1588
    %1590 = vmatmul.f32.gmra.mxu0 %v1469
    %v1591 = vpop.f32.mrf.mxu0
    %v1592 = vadd.f32 %v1449, %v1591
    %1593 = vmatmul.f32.gmra.mxu0 %v1472
    %v1594 = vpop.f32.mrf.mxu0
    %v1595 = vadd.f32 %v1449, %v1594
    %1596 = vmatmul.f32.gmra.mxu0 %v1475
    %v1597 = vpop.f32.mrf.mxu0
    %v1598 = vadd.f32 %v1449, %v1597
    %1599 = vdwg.mxu0
    %1600 = vst [vmem:[#allocation2] sm:$0xff] %v1495
    %1601 = vst [vmem:[#allocation2 + $0x8] sm:$0xff] %v1536
    %1602 = vst [vmem:[#allocation2 + $0x10] sm:$0xff] %v1577
    %1603 = vst [vmem:[#allocation2 + $0x18] sm:$0xff] %v1498
    %1604 = vst [vmem:[#allocation2 + $0x20] sm:$0xff] %v1539
    %1605 = vst [vmem:[#allocation2 + $0x28] sm:$0xff] %v1580
    %1606 = vst [vmem:[#allocation2 + $0x30] sm:$0xff] %v1501
    %1607 = vst [vmem:[#allocation2 + $0x38] sm:$0xff] %v1542
    %1608 = vst [vmem:[#allocation2 + $0x40] sm:$0xff] %v1583
    %1609 = vst [vmem:[#allocation2 + $0x48] sm:$0xff] %v1504
    %1610 = vst [vmem:[#allocation2 + $0x50] sm:$0xff] %v1545
    %1611 = vst [vmem:[#allocation2 + $0x58] sm:$0xff] %v1586
    %1612 = vst [vmem:[#allocation2 + $0x60] sm:$0xff] %v1507
    %1613 = vst [vmem:[#allocation2 + $0x68] sm:$0xff] %v1548
    %1614 = vst [vmem:[#allocation2 + $0x70] sm:$0xff] %v1589
    %1615 = vst [vmem:[#allocation2 + $0x78] sm:$0xff] %v1510
    %1616 = vst [vmem:[#allocation2 + $0x80] sm:$0xff] %v1551
    %1617 = vst [vmem:[#allocation2 + $0x88] sm:$0xff] %v1592
    %1618 = vst [vmem:[#allocation2 + $0x90] sm:$0xff] %v1513
    %1619 = vst [vmem:[#allocation2 + $0x98] sm:$0xff] %v1554
    %1620 = vst [vmem:[#allocation2 + $0xa0] sm:$0xff] %v1595
    %1621 = vst [vmem:[#allocation2 + $0xa8] sm:$0xff] %v1516
    %1622 = vst [vmem:[#allocation2 + $0xb0] sm:$0xff] %v1557
    %1623 = vst [vmem:[#allocation2 + $0xb8] sm:$0xff] %v1598
    %s1624 = scalar_lea.vmem %s6, 96
    %v1625 = vld [vmem:[%s1624] sm:$0xff]
    %v1626 = vld [vmem:[%s1624 + $0x8] sm:$0xff]
    %v1627 = vld [vmem:[%s1624 + $0x10] sm:$0xff]
    %v1628 = vld [vmem:[%s1624 + $0x18] sm:$0xff]
    %v1629 = vld [vmem:[%s1624 + $0x20] sm:$0xff]
    %v1630 = vld [vmem:[%s1624 + $0x28] sm:$0xff]
    %v1631 = vld [vmem:[%s1624 + $0x30] sm:$0xff]
    %v1632 = vld [vmem:[%s1624 + $0x38] sm:$0xff]
    %v1633 = vld [vmem:[%s1624 + $0x40] sm:$0xff]
    %v1634 = vld [vmem:[%s1624 + $0x48] sm:$0xff]
    %v1635 = vld [vmem:[%s1624 + $0x50] sm:$0xff]
    %v1636 = vld [vmem:[%s1624 + $0x58] sm:$0xff]
    %s1637 = scalar_lea.vmem %s7, 3
    %v1638 = vld [vmem:[%s1637] sm:$0x7]
    %v1640 = vperm.slane %v1638, 0
    %v1641 = vperm.slane %v1638, 1
    %v1642 = vperm.slane %v1638, 2
    %s1646 = scalar_lea.vmem %s3, 8
    %v1647 = vld [vmem:[%s1646] sm:$0xff]
    %v1648 = vld [vmem:[%s376] sm:$0xff]
    %v1649 = vld [vmem:[%s376 + $0x8] sm:$0xff]
    %v1650 = vld [vmem:[%s376 + $0x10] sm:$0xff]
    %v1651 = vld [vmem:[%s382] sm:$0xff]
    %v1652 = vld [vmem:[%s382 + $0x8] sm:$0xff]
    %v1653 = vld [vmem:[%s382 + $0x10] sm:$0xff]
    %v1654 = vsel %vm41, %v1648, %v1651
    %v1655 = vsel %vm42, %v1649, %v1652
    %v1656 = vsel %vm43, %v1650, %v1653
    %v1658 = vsel %vm96, %v1647, 0
    %1660 = vmatpush.msra.mxu0 0.0
    %1661 = vmatpush.msra.mxu0 0.0
    %1662 = vmatpush.msra.mxu0 0.0
    %1663 = vmatpush.msra.mxu0 0.0
    %1664 = vmatpush.msra.mxu0 0.0
    %1665 = vmatpush.msra.mxu0 0.0
    %1666 = vmatpush.msra.mxu0 0.0
    %1667 = vmatpush.msra.mxu0 0.0
    %1668 = vmatpush.msra.mxu0 0.0
    %1669 = vmatpush.msra.mxu0 0.0
    %1670 = vmatpush.msra.mxu0 0.0
    %1671 = vmatpush.msra.mxu0 0.0
    %1672 = vmatpush.msra.mxu0 %v1634
    %1673 = vmatpush.msra.mxu0 %v1631
    %1674 = vmatpush.msra.mxu0 %v1628
    %1675 = vmatpush.msra.mxu0 %v1625
    %1676 = vmatmul.f32.gmra.mxu0 %v1658
    %v1677 = vpop.f32.mrf.mxu0
    %v1678 = vadd.f32 %v1640, %v1677
    %1679 = vdwg.mxu0
    %1680 = vmatpush.msra.mxu0 0.0
    %1681 = vmatpush.msra.mxu0 0.0
    %1682 = vmatpush.msra.mxu0 0.0
    %1683 = vmatpush.msra.mxu0 0.0
    %1684 = vmatpush.msra.mxu0 0.0
    %1685 = vmatpush.msra.mxu0 0.0
    %1686 = vmatpush.msra.mxu0 0.0
    %1687 = vmatpush.msra.mxu0 0.0
    %1688 = vmatpush.msra.mxu0 0.0
    %1689 = vmatpush.msra.mxu0 0.0
    %1690 = vmatpush.msra.mxu0 0.0
    %1691 = vmatpush.msra.mxu0 0.0
    %1692 = vmatpush.msra.mxu0 %v1635
    %1693 = vmatpush.msra.mxu0 %v1632
    %1694 = vmatpush.msra.mxu0 %v1629
    %1695 = vmatpush.msra.mxu0 %v1626
    %1696 = vmatmul.f32.gmra.mxu0 %v1658
    %v1697 = vpop.f32.mrf.mxu0
    %v1698 = vadd.f32 %v1641, %v1697
    %1699 = vdwg.mxu0
    %1700 = vmatpush.msra.mxu0 0.0
    %1701 = vmatpush.msra.mxu0 0.0
    %1702 = vmatpush.msra.mxu0 0.0
    %1703 = vmatpush.msra.mxu0 0.0
    %1704 = vmatpush.msra.mxu0 0.0
    %1705 = vmatpush.msra.mxu0 0.0
    %1706 = vmatpush.msra.mxu0 0.0
    %1707 = vmatpush.msra.mxu0 0.0
    %1708 = vmatpush.msra.mxu0 0.0
    %1709 = vmatpush.msra.mxu0 0.0
    %1710 = vmatpush.msra.mxu0 0.0
    %1711 = vmatpush.msra.mxu0 0.0
    %1712 = vmatpush.msra.mxu0 %v1636
    %1713 = vmatpush.msra.mxu0 %v1633
    %1714 = vmatpush.msra.mxu0 %v1630
    %1715 = vmatpush.msra.mxu0 %v1627
    %1716 = vmatmul.f32.gmra.mxu0 %v1658
    %v1717 = vpop.f32.mrf.mxu0
    %v1718 = vadd.f32 %v1642, %v1717
    %1719 = vdwg.mxu0
    %v1720 = vadd.f32 %v1654, %v1678
    %v1721 = vxor.u32 %v1720, 2147483648
    %v1722 = vmul.f32 %v1721, 1.442695
    %v1723 = vpow.pop %v1722
    %v1724 = vadd.f32 %v1723, 1.0
    %v1725 = vrcp.pop %v1724
    %v1726 = vmul.f32 %v1724, %v1725
    %v1727 = vsub.f32 1.0, %v1726
    %v1728 = vmul.f32 %v1725, %v1727
    %v1729 = vadd.f32 %v1725, %v1728
    %vm1730 = vweird.f32 %v1724
    %vm1731 = vweird.f32 %v1725
    %vm1732 = vmor %vm1730, %vm1731
    %v1733 = vsel %vm1732, %v1725, %v1729
    %v1734 = vand.u32 2147483647, %v1724
    %vm1735 = vcmp.eq.f32.partialorder %v1734, 8.507059e+37
    %v1736 = vand.u32 %v1724, 2147483648
    %v1737 = vor.u32 1.1754944e-38, %v1736
    %v1738 = vsel %vm1735, %v1737, %v1733
    %v1739 = vmul.f32 1.0, %v1738
    %v1740 = vadd.f32 %v1655, %v1698
    %v1741 = vxor.u32 %v1740, 2147483648
    %v1742 = vmul.f32 %v1741, 1.442695
    %v1743 = vpow.pop %v1742
    %v1744 = vadd.f32 %v1743, 1.0
    %v1745 = vrcp.pop %v1744
    %v1746 = vmul.f32 %v1744, %v1745
    %v1747 = vsub.f32 1.0, %v1746
    %v1748 = vmul.f32 %v1745, %v1747
    %v1749 = vadd.f32 %v1745, %v1748
    %vm1750 = vweird.f32 %v1744
    %vm1751 = vweird.f32 %v1745
    %vm1752 = vmor %vm1750, %vm1751
    %v1753 = vsel %vm1752, %v1745, %v1749
    %v1754 = vand.u32 2147483647, %v1744
    %vm1755 = vcmp.eq.f32.partialorder %v1754, 8.507059e+37
    %v1756 = vand.u32 %v1744, 2147483648
    %v1757 = vor.u32 1.1754944e-38, %v1756
    %v1758 = vsel %vm1755, %v1757, %v1753
    %v1759 = vmul.f32 1.0, %v1758
    %v1760 = vmul.f32 %v1739, %v1718
    %v1761 = vadd.f32 %v1656, %v1760
    %v1762 = vtanh.pop %v1761
    %v1763 = vsub.f32 1.0, %v1759
    %v1764 = vmul.f32 %v1763, %v1762
    %v1765 = vmul.f32 %v1759, %v1647
    %v1766 = vadd.f32 %v1764, %v1765
    %v1767 = vld [vmem:[%s2] sm:$0xff]
    %v1768 = vmul.f32 %v1767, %v1766
    %1769 = vst.msk [vmem:[#allocation4] sm:$0xff] %vm501, %v1768
    %s1770 = scalar_lea.vmem [#allocation4], 56
    %1771 = vst.msk [vmem:[%s1770] sm:$0xff] %vm504, %v1768
    %v1772 = vsub.f32 %v1766, %v1647
    %v1773 = vmul.f32 %v1767, %v1772
    %v1774 = vadd.f32 %v1647, %v1773
    %v1775 = vld [vmem:[%s511] sm:$0xff]
    %v1776 = vld [vmem:[%s511 + $0x8] sm:$0xff]
    %v1777 = vld [vmem:[%s511 + $0x10] sm:$0xff]
    %v1778 = vld [vmem:[%s517] sm:$0xff]
    %v1779 = vld [vmem:[%s517 + $0x8] sm:$0xff]
    %v1780 = vld [vmem:[%s517 + $0x10] sm:$0xff]
    %v1781 = vsel %vm41, %v1775, %v1778
    %v1782 = vsel %vm42, %v1776, %v1779
    %v1783 = vsel %vm43, %v1777, %v1780
    %v1785 = vsel %vm96, %v1774, 0
    %1787 = vmatpush.msra.mxu0 0.0
    %1788 = vmatpush.msra.mxu0 0.0
    %1789 = vmatpush.msra.mxu0 0.0
    %1790 = vmatpush.msra.mxu0 0.0
    %1791 = vmatpush.msra.mxu0 0.0
    %1792 = vmatpush.msra.mxu0 0.0
    %1793 = vmatpush.msra.mxu0 0.0
    %1794 = vmatpush.msra.mxu0 0.0
    %1795 = vmatpush.msra.mxu0 0.0
    %1796 = vmatpush.msra.mxu0 0.0
    %1797 = vmatpush.msra.mxu0 0.0
    %1798 = vmatpush.msra.mxu0 0.0
    %1799 = vmatpush.msra.mxu0 %v1634
    %1800 = vmatpush.msra.mxu0 %v1631
    %1801 = vmatpush.msra.mxu0 %v1628
    %1802 = vmatpush.msra.mxu0 %v1625
    %1803 = vmatmul.f32.gmra.mxu0 %v1785
    %v1804 = vpop.f32.mrf.mxu0
    %v1805 = vadd.f32 %v1640, %v1804
    %1806 = vdwg.mxu0
    %1807 = vmatpush.msra.mxu0 0.0
    %1808 = vmatpush.msra.mxu0 0.0
    %1809 = vmatpush.msra.mxu0 0.0
    %1810 = vmatpush.msra.mxu0 0.0
    %1811 = vmatpush.msra.mxu0 0.0
    %1812 = vmatpush.msra.mxu0 0.0
    %1813 = vmatpush.msra.mxu0 0.0
    %1814 = vmatpush.msra.mxu0 0.0
    %1815 = vmatpush.msra.mxu0 0.0
    %1816 = vmatpush.msra.mxu0 0.0
    %1817 = vmatpush.msra.mxu0 0.0
    %1818 = vmatpush.msra.mxu0 0.0
    %1819 = vmatpush.msra.mxu0 %v1635
    %1820 = vmatpush.msra.mxu0 %v1632
    %1821 = vmatpush.msra.mxu0 %v1629
    %1822 = vmatpush.msra.mxu0 %v1626
    %1823 = vmatmul.f32.gmra.mxu0 %v1785
    %v1824 = vpop.f32.mrf.mxu0
    %v1825 = vadd.f32 %v1641, %v1824
    %1826 = vdwg.mxu0
    %1827 = vmatpush.msra.mxu0 0.0
    %1828 = vmatpush.msra.mxu0 0.0
    %1829 = vmatpush.msra.mxu0 0.0
    %1830 = vmatpush.msra.mxu0 0.0
    %1831 = vmatpush.msra.mxu0 0.0
    %1832 = vmatpush.msra.mxu0 0.0
    %1833 = vmatpush.msra.mxu0 0.0
    %1834 = vmatpush.msra.mxu0 0.0
    %1835 = vmatpush.msra.mxu0 0.0
    %1836 = vmatpush.msra.mxu0 0.0
    %1837 = vmatpush.msra.mxu0 0.0
    %1838 = vmatpush.msra.mxu0 0.0
    %1839 = vmatpush.msra.mxu0 %v1636
    %1840 = vmatpush.msra.mxu0 %v1633
    %1841 = vmatpush.msra.mxu0 %v1630
    %1842 = vmatpush.msra.mxu0 %v1627
    %1843 = vmatmul.f32.gmra.mxu0 %v1785
    %v1844 = vpop.f32.mrf.mxu0
    %v1845 = vadd.f32 %v1642, %v1844
    %1846 = vdwg.mxu0
    %v1847 = vadd.f32 %v1781, %v1805
    %v1848 = vxor.u32 %v1847, 2147483648
    %v1849 = vmul.f32 %v1848, 1.442695
    %v1850 = vpow.pop %v1849
    %v1851 = vadd.f32 %v1850, 1.0
    %v1852 = vrcp.pop %v1851
    %v1853 = vmul.f32 %v1851, %v1852
    %v1854 = vsub.f32 1.0, %v1853
    %v1855 = vmul.f32 %v1852, %v1854
    %v1856 = vadd.f32 %v1852, %v1855
    %vm1857 = vweird.f32 %v1851
    %vm1858 = vweird.f32 %v1852
    %vm1859 = vmor %vm1857, %vm1858
    %v1860 = vsel %vm1859, %v1852, %v1856
    %v1861 = vand.u32 2147483647, %v1851
    %vm1862 = vcmp.eq.f32.partialorder %v1861, 8.507059e+37
    %v1863 = vand.u32 %v1851, 2147483648
    %v1864 = vor.u32 1.1754944e-38, %v1863
    %v1865 = vsel %vm1862, %v1864, %v1860
    %v1866 = vmul.f32 1.0, %v1865
    %v1867 = vadd.f32 %v1782, %v1825
    %v1868 = vxor.u32 %v1867, 2147483648
    %v1869 = vmul.f32 %v1868, 1.442695
    %v1870 = vpow.pop %v1869
    %v1871 = vadd.f32 %v1870, 1.0
    %v1872 = vrcp.pop %v1871
    %v1873 = vmul.f32 %v1871, %v1872
    %v1874 = vsub.f32 1.0, %v1873
    %v1875 = vmul.f32 %v1872, %v1874
    %v1876 = vadd.f32 %v1872, %v1875
    %vm1877 = vweird.f32 %v1871
    %vm1878 = vweird.f32 %v1872
    %vm1879 = vmor %vm1877, %vm1878
    %v1880 = vsel %vm1879, %v1872, %v1876
    %v1881 = vand.u32 2147483647, %v1871
    %vm1882 = vcmp.eq.f32.partialorder %v1881, 8.507059e+37
    %v1883 = vand.u32 %v1871, 2147483648
    %v1884 = vor.u32 1.1754944e-38, %v1883
    %v1885 = vsel %vm1882, %v1884, %v1880
    %v1886 = vmul.f32 1.0, %v1885
    %v1887 = vmul.f32 %v1866, %v1845
    %v1888 = vadd.f32 %v1783, %v1887
    %v1889 = vtanh.pop %v1888
    %v1890 = vsub.f32 1.0, %v1886
    %v1891 = vmul.f32 %v1890, %v1889
    %v1892 = vmul.f32 %v1886, %v1774
    %v1893 = vadd.f32 %v1891, %v1892
    %v1894 = vld [vmem:[%s634] sm:$0xff]
    %v1895 = vmul.f32 %v1894, %v1893
    %s1896 = scalar_lea.vmem [#allocation4], 8
    %1897 = vst.msk [vmem:[%s1896] sm:$0xff] %vm501, %v1895
    %s1898 = scalar_lea.vmem [#allocation4], 48
    %1899 = vst.msk [vmem:[%s1898] sm:$0xff] %vm504, %v1895
    %v1900 = vsub.f32 %v1893, %v1774
    %v1901 = vmul.f32 %v1894, %v1900
    %v1902 = vadd.f32 %v1774, %v1901
    %v1903 = vld [vmem:[%s646] sm:$0xff]
    %v1904 = vld [vmem:[%s646 + $0x8] sm:$0xff]
    %v1905 = vld [vmem:[%s646 + $0x10] sm:$0xff]
    %v1906 = vld [vmem:[%s652] sm:$0xff]
    %v1907 = vld [vmem:[%s652 + $0x8] sm:$0xff]
    %v1908 = vld [vmem:[%s652 + $0x10] sm:$0xff]
    %v1909 = vsel %vm41, %v1903, %v1906
    %v1910 = vsel %vm42, %v1904, %v1907
    %v1911 = vsel %vm43, %v1905, %v1908
    %v1913 = vsel %vm96, %v1902, 0
    %1915 = vmatpush.msra.mxu0 0.0
    %1916 = vmatpush.msra.mxu0 0.0
    %1917 = vmatpush.msra.mxu0 0.0
    %1918 = vmatpush.msra.mxu0 0.0
    %1919 = vmatpush.msra.mxu0 0.0
    %1920 = vmatpush.msra.mxu0 0.0
    %1921 = vmatpush.msra.mxu0 0.0
    %1922 = vmatpush.msra.mxu0 0.0
    %1923 = vmatpush.msra.mxu0 0.0
    %1924 = vmatpush.msra.mxu0 0.0
    %1925 = vmatpush.msra.mxu0 0.0
    %1926 = vmatpush.msra.mxu0 0.0
    %1927 = vmatpush.msra.mxu0 %v1634
    %1928 = vmatpush.msra.mxu0 %v1631
    %1929 = vmatpush.msra.mxu0 %v1628
    %1930 = vmatpush.msra.mxu0 %v1625
    %1931 = vmatmul.f32.gmra.mxu0 %v1913
    %v1932 = vpop.f32.mrf.mxu0
    %v1933 = vadd.f32 %v1640, %v1932
    %1934 = vdwg.mxu0
    %1935 = vmatpush.msra.mxu0 0.0
    %1936 = vmatpush.msra.mxu0 0.0
    %1937 = vmatpush.msra.mxu0 0.0
    %1938 = vmatpush.msra.mxu0 0.0
    %1939 = vmatpush.msra.mxu0 0.0
    %1940 = vmatpush.msra.mxu0 0.0
    %1941 = vmatpush.msra.mxu0 0.0
    %1942 = vmatpush.msra.mxu0 0.0
    %1943 = vmatpush.msra.mxu0 0.0
    %1944 = vmatpush.msra.mxu0 0.0
    %1945 = vmatpush.msra.mxu0 0.0
    %1946 = vmatpush.msra.mxu0 0.0
    %1947 = vmatpush.msra.mxu0 %v1635
    %1948 = vmatpush.msra.mxu0 %v1632
    %1949 = vmatpush.msra.mxu0 %v1629
    %1950 = vmatpush.msra.mxu0 %v1626
    %1951 = vmatmul.f32.gmra.mxu0 %v1913
    %v1952 = vpop.f32.mrf.mxu0
    %v1953 = vadd.f32 %v1641, %v1952
    %1954 = vdwg.mxu0
    %1955 = vmatpush.msra.mxu0 0.0
    %1956 = vmatpush.msra.mxu0 0.0
    %1957 = vmatpush.msra.mxu0 0.0
    %1958 = vmatpush.msra.mxu0 0.0
    %1959 = vmatpush.msra.mxu0 0.0
    %1960 = vmatpush.msra.mxu0 0.0
    %1961 = vmatpush.msra.mxu0 0.0
    %1962 = vmatpush.msra.mxu0 0.0
    %1963 = vmatpush.msra.mxu0 0.0
    %1964 = vmatpush.msra.mxu0 0.0
    %1965 = vmatpush.msra.mxu0 0.0
    %1966 = vmatpush.msra.mxu0 0.0
    %1967 = vmatpush.msra.mxu0 %v1636
    %1968 = vmatpush.msra.mxu0 %v1633
    %1969 = vmatpush.msra.mxu0 %v1630
    %1970 = vmatpush.msra.mxu0 %v1627
    %1971 = vmatmul.f32.gmra.mxu0 %v1913
    %v1972 = vpop.f32.mrf.mxu0
    %v1973 = vadd.f32 %v1642, %v1972
    %1974 = vdwg.mxu0
    %v1975 = vadd.f32 %v1909, %v1933
    %v1976 = vxor.u32 %v1975, 2147483648
    %v1977 = vmul.f32 %v1976, 1.442695
    %v1978 = vpow.pop %v1977
    %v1979 = vadd.f32 %v1978, 1.0
    %v1980 = vrcp.pop %v1979
    %v1981 = vmul.f32 %v1979, %v1980
    %v1982 = vsub.f32 1.0, %v1981
    %v1983 = vmul.f32 %v1980, %v1982
    %v1984 = vadd.f32 %v1980, %v1983
    %vm1985 = vweird.f32 %v1979
    %vm1986 = vweird.f32 %v1980
    %vm1987 = vmor %vm1985, %vm1986
    %v1988 = vsel %vm1987, %v1980, %v1984
    %v1989 = vand.u32 2147483647, %v1979
    %vm1990 = vcmp.eq.f32.partialorder %v1989, 8.507059e+37
    %v1991 = vand.u32 %v1979, 2147483648
    %v1992 = vor.u32 1.1754944e-38, %v1991
    %v1993 = vsel %vm1990, %v1992, %v1988
    %v1994 = vmul.f32 1.0, %v1993
    %v1995 = vadd.f32 %v1910, %v1953
    %v1996 = vxor.u32 %v1995, 2147483648
    %v1997 = vmul.f32 %v1996, 1.442695
    %v1998 = vpow.pop %v1997
    %v1999 = vadd.f32 %v1998, 1.0
    %v2000 = vrcp.pop %v1999
    %v2001 = vmul.f32 %v1999, %v2000
    %v2002 = vsub.f32 1.0, %v2001
    %v2003 = vmul.f32 %v2000, %v2002
    %v2004 = vadd.f32 %v2000, %v2003
    %vm2005 = vweird.f32 %v1999
    %vm2006 = vweird.f32 %v2000
    %vm2007 = vmor %vm2005, %vm2006
    %v2008 = vsel %vm2007, %v2000, %v2004
    %v2009 = vand.u32 2147483647, %v1999
    %vm2010 = vcmp.eq.f32.partialorder %v2009, 8.507059e+37
    %v2011 = vand.u32 %v1999, 2147483648
    %v2012 = vor.u32 1.1754944e-38, %v2011
    %v2013 = vsel %vm2010, %v2012, %v2008
    %v2014 = vmul.f32 1.0, %v2013
    %v2015 = vmul.f32 %v1994, %v1973
    %v2016 = vadd.f32 %v1911, %v2015
    %v2017 = vtanh.pop %v2016
    %v2018 = vsub.f32 1.0, %v2014
    %v2019 = vmul.f32 %v2018, %v2017
    %v2020 = vmul.f32 %v2014, %v1902
    %v2021 = vadd.f32 %v2019, %v2020
    %v2022 = vld [vmem:[%s769] sm:$0xff]
    %v2023 = vmul.f32 %v2022, %v2021
    %s2024 = scalar_lea.vmem [#allocation4], 16
    %2025 = vst.msk [vmem:[%s2024] sm:$0xff] %vm501, %v2023
    %s2026 = scalar_lea.vmem [#allocation4], 40
    %2027 = vst.msk [vmem:[%s2026] sm:$0xff] %vm504, %v2023
    %v2028 = vsub.f32 %v2021, %v1902
    %v2029 = vmul.f32 %v2022, %v2028
    %v2030 = vadd.f32 %v1902, %v2029
    %v2031 = vld [vmem:[%s781] sm:$0xff]
    %v2032 = vld [vmem:[%s781 + $0x8] sm:$0xff]
    %v2033 = vld [vmem:[%s781 + $0x10] sm:$0xff]
    %v2034 = vld [vmem:[%s787] sm:$0xff]
    %v2035 = vld [vmem:[%s787 + $0x8] sm:$0xff]
    %v2036 = vld [vmem:[%s787 + $0x10] sm:$0xff]
    %v2037 = vsel %vm41, %v2031, %v2034
    %v2038 = vsel %vm42, %v2032, %v2035
    %v2039 = vsel %vm43, %v2033, %v2036
    %v2041 = vsel %vm96, %v2030, 0
    %2043 = vmatpush.msra.mxu0 0.0
    %2044 = vmatpush.msra.mxu0 0.0
    %2045 = vmatpush.msra.mxu0 0.0
    %2046 = vmatpush.msra.mxu0 0.0
    %2047 = vmatpush.msra.mxu0 0.0
    %2048 = vmatpush.msra.mxu0 0.0
    %2049 = vmatpush.msra.mxu0 0.0
    %2050 = vmatpush.msra.mxu0 0.0
    %2051 = vmatpush.msra.mxu0 0.0
    %2052 = vmatpush.msra.mxu0 0.0
    %2053 = vmatpush.msra.mxu0 0.0
    %2054 = vmatpush.msra.mxu0 0.0
    %2055 = vmatpush.msra.mxu0 %v1634
    %2056 = vmatpush.msra.mxu0 %v1631
    %2057 = vmatpush.msra.mxu0 %v1628
    %2058 = vmatpush.msra.mxu0 %v1625
    %2059 = vmatmul.f32.gmra.mxu0 %v2041
    %v2060 = vpop.f32.mrf.mxu0
    %v2061 = vadd.f32 %v1640, %v2060
    %2062 = vdwg.mxu0
    %2063 = vmatpush.msra.mxu0 0.0
    %2064 = vmatpush.msra.mxu0 0.0
    %2065 = vmatpush.msra.mxu0 0.0
    %2066 = vmatpush.msra.mxu0 0.0
    %2067 = vmatpush.msra.mxu0 0.0
    %2068 = vmatpush.msra.mxu0 0.0
    %2069 = vmatpush.msra.mxu0 0.0
    %2070 = vmatpush.msra.mxu0 0.0
    %2071 = vmatpush.msra.mxu0 0.0
    %2072 = vmatpush.msra.mxu0 0.0
    %2073 = vmatpush.msra.mxu0 0.0
    %2074 = vmatpush.msra.mxu0 0.0
    %2075 = vmatpush.msra.mxu0 %v1635
    %2076 = vmatpush.msra.mxu0 %v1632
    %2077 = vmatpush.msra.mxu0 %v1629
    %2078 = vmatpush.msra.mxu0 %v1626
    %2079 = vmatmul.f32.gmra.mxu0 %v2041
    %v2080 = vpop.f32.mrf.mxu0
    %v2081 = vadd.f32 %v1641, %v2080
    %2082 = vdwg.mxu0
    %2083 = vmatpush.msra.mxu0 0.0
    %2084 = vmatpush.msra.mxu0 0.0
    %2085 = vmatpush.msra.mxu0 0.0
    %2086 = vmatpush.msra.mxu0 0.0
    %2087 = vmatpush.msra.mxu0 0.0
    %2088 = vmatpush.msra.mxu0 0.0
    %2089 = vmatpush.msra.mxu0 0.0
    %2090 = vmatpush.msra.mxu0 0.0
    %2091 = vmatpush.msra.mxu0 0.0
    %2092 = vmatpush.msra.mxu0 0.0
    %2093 = vmatpush.msra.mxu0 0.0
    %2094 = vmatpush.msra.mxu0 0.0
    %2095 = vmatpush.msra.mxu0 %v1636
    %2096 = vmatpush.msra.mxu0 %v1633
    %2097 = vmatpush.msra.mxu0 %v1630
    %2098 = vmatpush.msra.mxu0 %v1627
    %2099 = vmatmul.f32.gmra.mxu0 %v2041
    %v2100 = vpop.f32.mrf.mxu0
    %v2101 = vadd.f32 %v1642, %v2100
    %2102 = vdwg.mxu0
    %v2103 = vadd.f32 %v2037, %v2061
    %v2104 = vxor.u32 %v2103, 2147483648
    %v2105 = vmul.f32 %v2104, 1.442695
    %v2106 = vpow.pop %v2105
    %v2107 = vadd.f32 %v2106, 1.0
    %v2108 = vrcp.pop %v2107
    %v2109 = vmul.f32 %v2107, %v2108
    %v2110 = vsub.f32 1.0, %v2109
    %v2111 = vmul.f32 %v2108, %v2110
    %v2112 = vadd.f32 %v2108, %v2111
    %vm2113 = vweird.f32 %v2107
    %vm2114 = vweird.f32 %v2108
    %vm2115 = vmor %vm2113, %vm2114
    %v2116 = vsel %vm2115, %v2108, %v2112
    %v2117 = vand.u32 2147483647, %v2107
    %vm2118 = vcmp.eq.f32.partialorder %v2117, 8.507059e+37
    %v2119 = vand.u32 %v2107, 2147483648
    %v2120 = vor.u32 1.1754944e-38, %v2119
    %v2121 = vsel %vm2118, %v2120, %v2116
    %v2122 = vmul.f32 1.0, %v2121
    %v2123 = vadd.f32 %v2038, %v2081
    %v2124 = vxor.u32 %v2123, 2147483648
    %v2125 = vmul.f32 %v2124, 1.442695
    %v2126 = vpow.pop %v2125
    %v2127 = vadd.f32 %v2126, 1.0
    %v2128 = vrcp.pop %v2127
    %v2129 = vmul.f32 %v2127, %v2128
    %v2130 = vsub.f32 1.0, %v2129
    %v2131 = vmul.f32 %v2128, %v2130
    %v2132 = vadd.f32 %v2128, %v2131
    %vm2133 = vweird.f32 %v2127
    %vm2134 = vweird.f32 %v2128
    %vm2135 = vmor %vm2133, %vm2134
    %v2136 = vsel %vm2135, %v2128, %v2132
    %v2137 = vand.u32 2147483647, %v2127
    %vm2138 = vcmp.eq.f32.partialorder %v2137, 8.507059e+37
    %v2139 = vand.u32 %v2127, 2147483648
    %v2140 = vor.u32 1.1754944e-38, %v2139
    %v2141 = vsel %vm2138, %v2140, %v2136
    %v2142 = vmul.f32 1.0, %v2141
    %v2143 = vmul.f32 %v2122, %v2101
    %v2144 = vadd.f32 %v2039, %v2143
    %v2145 = vtanh.pop %v2144
    %v2146 = vsub.f32 1.0, %v2142
    %v2147 = vmul.f32 %v2146, %v2145
    %v2148 = vmul.f32 %v2142, %v2030
    %v2149 = vadd.f32 %v2147, %v2148
    %v2150 = vld [vmem:[%s904] sm:$0xff]
    %v2151 = vmul.f32 %v2150, %v2149
    %s2152 = scalar_lea.vmem [#allocation4], 24
    %2153 = vst.msk [vmem:[%s2152] sm:$0xff] %vm501, %v2151
    %s2154 = scalar_lea.vmem [#allocation4], 32
    %2155 = vst.msk [vmem:[%s2154] sm:$0xff] %vm504, %v2151
    %v2156 = vsub.f32 %v2149, %v2030
    %v2157 = vmul.f32 %v2150, %v2156
    %v2158 = vadd.f32 %v2030, %v2157
    %v2159 = vld [vmem:[%s787] sm:$0xff]
    %v2160 = vld [vmem:[%s787 + $0x8] sm:$0xff]
    %v2161 = vld [vmem:[%s787 + $0x10] sm:$0xff]
    %v2162 = vld [vmem:[%s781] sm:$0xff]
    %v2163 = vld [vmem:[%s781 + $0x8] sm:$0xff]
    %v2164 = vld [vmem:[%s781 + $0x10] sm:$0xff]
    %v2165 = vsel %vm41, %v2159, %v2162
    %v2166 = vsel %vm42, %v2160, %v2163
    %v2167 = vsel %vm43, %v2161, %v2164
    %v2169 = vsel %vm96, %v2158, 0
    %2171 = vmatpush.msra.mxu0 0.0
    %2172 = vmatpush.msra.mxu0 0.0
    %2173 = vmatpush.msra.mxu0 0.0
    %2174 = vmatpush.msra.mxu0 0.0
    %2175 = vmatpush.msra.mxu0 0.0
    %2176 = vmatpush.msra.mxu0 0.0
    %2177 = vmatpush.msra.mxu0 0.0
    %2178 = vmatpush.msra.mxu0 0.0
    %2179 = vmatpush.msra.mxu0 0.0
    %2180 = vmatpush.msra.mxu0 0.0
    %2181 = vmatpush.msra.mxu0 0.0
    %2182 = vmatpush.msra.mxu0 0.0
    %2183 = vmatpush.msra.mxu0 %v1634
    %2184 = vmatpush.msra.mxu0 %v1631
    %2185 = vmatpush.msra.mxu0 %v1628
    %2186 = vmatpush.msra.mxu0 %v1625
    %2187 = vmatmul.f32.gmra.mxu0 %v2169
    %v2188 = vpop.f32.mrf.mxu0
    %v2189 = vadd.f32 %v1640, %v2188
    %2190 = vdwg.mxu0
    %2191 = vmatpush.msra.mxu0 0.0
    %2192 = vmatpush.msra.mxu0 0.0
    %2193 = vmatpush.msra.mxu0 0.0
    %2194 = vmatpush.msra.mxu0 0.0
    %2195 = vmatpush.msra.mxu0 0.0
    %2196 = vmatpush.msra.mxu0 0.0
    %2197 = vmatpush.msra.mxu0 0.0
    %2198 = vmatpush.msra.mxu0 0.0
    %2199 = vmatpush.msra.mxu0 0.0
    %2200 = vmatpush.msra.mxu0 0.0
    %2201 = vmatpush.msra.mxu0 0.0
    %2202 = vmatpush.msra.mxu0 0.0
    %2203 = vmatpush.msra.mxu0 %v1635
    %2204 = vmatpush.msra.mxu0 %v1632
    %2205 = vmatpush.msra.mxu0 %v1629
    %2206 = vmatpush.msra.mxu0 %v1626
    %2207 = vmatmul.f32.gmra.mxu0 %v2169
    %v2208 = vpop.f32.mrf.mxu0
    %v2209 = vadd.f32 %v1641, %v2208
    %2210 = vdwg.mxu0
    %2211 = vmatpush.msra.mxu0 0.0
    %2212 = vmatpush.msra.mxu0 0.0
    %2213 = vmatpush.msra.mxu0 0.0
    %2214 = vmatpush.msra.mxu0 0.0
    %2215 = vmatpush.msra.mxu0 0.0
    %2216 = vmatpush.msra.mxu0 0.0
    %2217 = vmatpush.msra.mxu0 0.0
    %2218 = vmatpush.msra.mxu0 0.0
    %2219 = vmatpush.msra.mxu0 0.0
    %2220 = vmatpush.msra.mxu0 0.0
    %2221 = vmatpush.msra.mxu0 0.0
    %2222 = vmatpush.msra.mxu0 0.0
    %2223 = vmatpush.msra.mxu0 %v1636
    %2224 = vmatpush.msra.mxu0 %v1633
    %2225 = vmatpush.msra.mxu0 %v1630
    %2226 = vmatpush.msra.mxu0 %v1627
    %2227 = vmatmul.f32.gmra.mxu0 %v2169
    %v2228 = vpop.f32.mrf.mxu0
    %v2229 = vadd.f32 %v1642, %v2228
    %2230 = vdwg.mxu0
    %v2231 = vadd.f32 %v2165, %v2189
    %v2232 = vxor.u32 %v2231, 2147483648
    %v2233 = vmul.f32 %v2232, 1.442695
    %v2234 = vpow.pop %v2233
    %v2235 = vadd.f32 %v2234, 1.0
    %v2236 = vrcp.pop %v2235
    %v2237 = vmul.f32 %v2235, %v2236
    %v2238 = vsub.f32 1.0, %v2237
    %v2239 = vmul.f32 %v2236, %v2238
    %v2240 = vadd.f32 %v2236, %v2239
    %vm2241 = vweird.f32 %v2235
    %vm2242 = vweird.f32 %v2236
    %vm2243 = vmor %vm2241, %vm2242
    %v2244 = vsel %vm2243, %v2236, %v2240
    %v2245 = vand.u32 2147483647, %v2235
    %vm2246 = vcmp.eq.f32.partialorder %v2245, 8.507059e+37
    %v2247 = vand.u32 %v2235, 2147483648
    %v2248 = vor.u32 1.1754944e-38, %v2247
    %v2249 = vsel %vm2246, %v2248, %v2244
    %v2250 = vmul.f32 1.0, %v2249
    %v2251 = vadd.f32 %v2166, %v2209
    %v2252 = vxor.u32 %v2251, 2147483648
    %v2253 = vmul.f32 %v2252, 1.442695
    %v2254 = vpow.pop %v2253
    %v2255 = vadd.f32 %v2254, 1.0
    %v2256 = vrcp.pop %v2255
    %v2257 = vmul.f32 %v2255, %v2256
    %v2258 = vsub.f32 1.0, %v2257
    %v2259 = vmul.f32 %v2256, %v2258
    %v2260 = vadd.f32 %v2256, %v2259
    %vm2261 = vweird.f32 %v2255
    %vm2262 = vweird.f32 %v2256
    %vm2263 = vmor %vm2261, %vm2262
    %v2264 = vsel %vm2263, %v2256, %v2260
    %v2265 = vand.u32 2147483647, %v2255
    %vm2266 = vcmp.eq.f32.partialorder %v2265, 8.507059e+37
    %v2267 = vand.u32 %v2255, 2147483648
    %v2268 = vor.u32 1.1754944e-38, %v2267
    %v2269 = vsel %vm2266, %v2268, %v2264
    %v2270 = vmul.f32 1.0, %v2269
    %v2271 = vmul.f32 %v2250, %v2229
    %v2272 = vadd.f32 %v2167, %v2271
    %v2273 = vtanh.pop %v2272
    %v2274 = vsub.f32 1.0, %v2270
    %v2275 = vmul.f32 %v2274, %v2273
    %v2276 = vmul.f32 %v2270, %v2158
    %v2277 = vadd.f32 %v2275, %v2276
    %v2278 = vld [vmem:[%s1033] sm:$0xff]
    %v2279 = vmul.f32 %v2278, %v2277
    %2280 = vst.msk [vmem:[%s2154] sm:$0xff] %vm501, %v2279
    %2281 = vst.msk [vmem:[%s2152] sm:$0xff] %vm504, %v2279
    %v2282 = vsub.f32 %v2277, %v2158
    %v2283 = vmul.f32 %v2278, %v2282
    %v2284 = vadd.f32 %v2158, %v2283
    %v2285 = vld [vmem:[%s652] sm:$0xff]
    %v2286 = vld [vmem:[%s652 + $0x8] sm:$0xff]
    %v2287 = vld [vmem:[%s652 + $0x10] sm:$0xff]
    %v2288 = vld [vmem:[%s646] sm:$0xff]
    %v2289 = vld [vmem:[%s646 + $0x8] sm:$0xff]
    %v2290 = vld [vmem:[%s646 + $0x10] sm:$0xff]
    %v2291 = vsel %vm41, %v2285, %v2288
    %v2292 = vsel %vm42, %v2286, %v2289
    %v2293 = vsel %vm43, %v2287, %v2290
    %v2295 = vsel %vm96, %v2284, 0
    %2297 = vmatpush.msra.mxu0 0.0
    %2298 = vmatpush.msra.mxu0 0.0
    %2299 = vmatpush.msra.mxu0 0.0
    %2300 = vmatpush.msra.mxu0 0.0
    %2301 = vmatpush.msra.mxu0 0.0
    %2302 = vmatpush.msra.mxu0 0.0
    %2303 = vmatpush.msra.mxu0 0.0
    %2304 = vmatpush.msra.mxu0 0.0
    %2305 = vmatpush.msra.mxu0 0.0
    %2306 = vmatpush.msra.mxu0 0.0
    %2307 = vmatpush.msra.mxu0 0.0
    %2308 = vmatpush.msra.mxu0 0.0
    %2309 = vmatpush.msra.mxu0 %v1634
    %2310 = vmatpush.msra.mxu0 %v1631
    %2311 = vmatpush.msra.mxu0 %v1628
    %2312 = vmatpush.msra.mxu0 %v1625
    %2313 = vmatmul.f32.gmra.mxu0 %v2295
    %v2314 = vpop.f32.mrf.mxu0
    %v2315 = vadd.f32 %v1640, %v2314
    %2316 = vdwg.mxu0
    %2317 = vmatpush.msra.mxu0 0.0
    %2318 = vmatpush.msra.mxu0 0.0
    %2319 = vmatpush.msra.mxu0 0.0
    %2320 = vmatpush.msra.mxu0 0.0
    %2321 = vmatpush.msra.mxu0 0.0
    %2322 = vmatpush.msra.mxu0 0.0
    %2323 = vmatpush.msra.mxu0 0.0
    %2324 = vmatpush.msra.mxu0 0.0
    %2325 = vmatpush.msra.mxu0 0.0
    %2326 = vmatpush.msra.mxu0 0.0
    %2327 = vmatpush.msra.mxu0 0.0
    %2328 = vmatpush.msra.mxu0 0.0
    %2329 = vmatpush.msra.mxu0 %v1635
    %2330 = vmatpush.msra.mxu0 %v1632
    %2331 = vmatpush.msra.mxu0 %v1629
    %2332 = vmatpush.msra.mxu0 %v1626
    %2333 = vmatmul.f32.gmra.mxu0 %v2295
    %v2334 = vpop.f32.mrf.mxu0
    %v2335 = vadd.f32 %v1641, %v2334
    %2336 = vdwg.mxu0
    %2337 = vmatpush.msra.mxu0 0.0
    %2338 = vmatpush.msra.mxu0 0.0
    %2339 = vmatpush.msra.mxu0 0.0
    %2340 = vmatpush.msra.mxu0 0.0
    %2341 = vmatpush.msra.mxu0 0.0
    %2342 = vmatpush.msra.mxu0 0.0
    %2343 = vmatpush.msra.mxu0 0.0
    %2344 = vmatpush.msra.mxu0 0.0
    %2345 = vmatpush.msra.mxu0 0.0
    %2346 = vmatpush.msra.mxu0 0.0
    %2347 = vmatpush.msra.mxu0 0.0
    %2348 = vmatpush.msra.mxu0 0.0
    %2349 = vmatpush.msra.mxu0 %v1636
    %2350 = vmatpush.msra.mxu0 %v1633
    %2351 = vmatpush.msra.mxu0 %v1630
    %2352 = vmatpush.msra.mxu0 %v1627
    %2353 = vmatmul.f32.gmra.mxu0 %v2295
    %v2354 = vpop.f32.mrf.mxu0
    %v2355 = vadd.f32 %v1642, %v2354
    %2356 = vdwg.mxu0
    %v2357 = vadd.f32 %v2291, %v2315
    %v2358 = vxor.u32 %v2357, 2147483648
    %v2359 = vmul.f32 %v2358, 1.442695
    %v2360 = vpow.pop %v2359
    %v2361 = vadd.f32 %v2360, 1.0
    %v2362 = vrcp.pop %v2361
    %v2363 = vmul.f32 %v2361, %v2362
    %v2364 = vsub.f32 1.0, %v2363
    %v2365 = vmul.f32 %v2362, %v2364
    %v2366 = vadd.f32 %v2362, %v2365
    %vm2367 = vweird.f32 %v2361
    %vm2368 = vweird.f32 %v2362
    %vm2369 = vmor %vm2367, %vm2368
    %v2370 = vsel %vm2369, %v2362, %v2366
    %v2371 = vand.u32 2147483647, %v2361
    %vm2372 = vcmp.eq.f32.partialorder %v2371, 8.507059e+37
    %v2373 = vand.u32 %v2361, 2147483648
    %v2374 = vor.u32 1.1754944e-38, %v2373
    %v2375 = vsel %vm2372, %v2374, %v2370
    %v2376 = vmul.f32 1.0, %v2375
    %v2377 = vadd.f32 %v2292, %v2335
    %v2378 = vxor.u32 %v2377, 2147483648
    %v2379 = vmul.f32 %v2378, 1.442695
    %v2380 = vpow.pop %v2379
    %v2381 = vadd.f32 %v2380, 1.0
    %v2382 = vrcp.pop %v2381
    %v2383 = vmul.f32 %v2381, %v2382
    %v2384 = vsub.f32 1.0, %v2383
    %v2385 = vmul.f32 %v2382, %v2384
    %v2386 = vadd.f32 %v2382, %v2385
    %vm2387 = vweird.f32 %v2381
    %vm2388 = vweird.f32 %v2382
    %vm2389 = vmor %vm2387, %vm2388
    %v2390 = vsel %vm2389, %v2382, %v2386
    %v2391 = vand.u32 2147483647, %v2381
    %vm2392 = vcmp.eq.f32.partialorder %v2391, 8.507059e+37
    %v2393 = vand.u32 %v2381, 2147483648
    %v2394 = vor.u32 1.1754944e-38, %v2393
    %v2395 = vsel %vm2392, %v2394, %v2390
    %v2396 = vmul.f32 1.0, %v2395
    %v2397 = vmul.f32 %v2376, %v2355
    %v2398 = vadd.f32 %v2293, %v2397
    %v2399 = vtanh.pop %v2398
    %v2400 = vsub.f32 1.0, %v2396
    %v2401 = vmul.f32 %v2400, %v2399
    %v2402 = vmul.f32 %v2396, %v2284
    %v2403 = vadd.f32 %v2401, %v2402
    %v2404 = vld [vmem:[%s1160] sm:$0xff]
    %v2405 = vmul.f32 %v2404, %v2403
    %2406 = vst.msk [vmem:[%s2026] sm:$0xff] %vm501, %v2405
    %2407 = vst.msk [vmem:[%s2024] sm:$0xff] %vm504, %v2405
    %v2408 = vsub.f32 %v2403, %v2284
    %v2409 = vmul.f32 %v2404, %v2408
    %v2410 = vadd.f32 %v2284, %v2409
    %v2411 = vld [vmem:[%s517] sm:$0xff]
    %v2412 = vld [vmem:[%s517 + $0x8] sm:$0xff]
    %v2413 = vld [vmem:[%s517 + $0x10] sm:$0xff]
    %v2414 = vld [vmem:[%s511] sm:$0xff]
    %v2415 = vld [vmem:[%s511 + $0x8] sm:$0xff]
    %v2416 = vld [vmem:[%s511 + $0x10] sm:$0xff]
    %v2417 = vsel %vm41, %v2411, %v2414
    %v2418 = vsel %vm42, %v2412, %v2415
    %v2419 = vsel %vm43, %v2413, %v2416
    %v2421 = vsel %vm96, %v2410, 0
    %2423 = vmatpush.msra.mxu0 0.0
    %2424 = vmatpush.msra.mxu0 0.0
    %2425 = vmatpush.msra.mxu0 0.0
    %2426 = vmatpush.msra.mxu0 0.0
    %2427 = vmatpush.msra.mxu0 0.0
    %2428 = vmatpush.msra.mxu0 0.0
    %2429 = vmatpush.msra.mxu0 0.0
    %2430 = vmatpush.msra.mxu0 0.0
    %2431 = vmatpush.msra.mxu0 0.0
    %2432 = vmatpush.msra.mxu0 0.0
    %2433 = vmatpush.msra.mxu0 0.0
    %2434 = vmatpush.msra.mxu0 0.0
    %2435 = vmatpush.msra.mxu0 %v1634
    %2436 = vmatpush.msra.mxu0 %v1631
    %2437 = vmatpush.msra.mxu0 %v1628
    %2438 = vmatpush.msra.mxu0 %v1625
    %2439 = vmatmul.f32.gmra.mxu0 %v2421
    %v2440 = vpop.f32.mrf.mxu0
    %v2441 = vadd.f32 %v1640, %v2440
    %2442 = vdwg.mxu0
    %2443 = vmatpush.msra.mxu0 0.0
    %2444 = vmatpush.msra.mxu0 0.0
    %2445 = vmatpush.msra.mxu0 0.0
    %2446 = vmatpush.msra.mxu0 0.0
    %2447 = vmatpush.msra.mxu0 0.0
    %2448 = vmatpush.msra.mxu0 0.0
    %2449 = vmatpush.msra.mxu0 0.0
    %2450 = vmatpush.msra.mxu0 0.0
    %2451 = vmatpush.msra.mxu0 0.0
    %2452 = vmatpush.msra.mxu0 0.0
    %2453 = vmatpush.msra.mxu0 0.0
    %2454 = vmatpush.msra.mxu0 0.0
    %2455 = vmatpush.msra.mxu0 %v1635
    %2456 = vmatpush.msra.mxu0 %v1632
    %2457 = vmatpush.msra.mxu0 %v1629
    %2458 = vmatpush.msra.mxu0 %v1626
    %2459 = vmatmul.f32.gmra.mxu0 %v2421
    %v2460 = vpop.f32.mrf.mxu0
    %v2461 = vadd.f32 %v1641, %v2460
    %2462 = vdwg.mxu0
    %2463 = vmatpush.msra.mxu0 0.0
    %2464 = vmatpush.msra.mxu0 0.0
    %2465 = vmatpush.msra.mxu0 0.0
    %2466 = vmatpush.msra.mxu0 0.0
    %2467 = vmatpush.msra.mxu0 0.0
    %2468 = vmatpush.msra.mxu0 0.0
    %2469 = vmatpush.msra.mxu0 0.0
    %2470 = vmatpush.msra.mxu0 0.0
    %2471 = vmatpush.msra.mxu0 0.0
    %2472 = vmatpush.msra.mxu0 0.0
    %2473 = vmatpush.msra.mxu0 0.0
    %2474 = vmatpush.msra.mxu0 0.0
    %2475 = vmatpush.msra.mxu0 %v1636
    %2476 = vmatpush.msra.mxu0 %v1633
    %2477 = vmatpush.msra.mxu0 %v1630
    %2478 = vmatpush.msra.mxu0 %v1627
    %2479 = vmatmul.f32.gmra.mxu0 %v2421
    %v2480 = vpop.f32.mrf.mxu0
    %v2481 = vadd.f32 %v1642, %v2480
    %2482 = vdwg.mxu0
    %v2483 = vadd.f32 %v2417, %v2441
    %v2484 = vxor.u32 %v2483, 2147483648
    %v2485 = vmul.f32 %v2484, 1.442695
    %v2486 = vpow.pop %v2485
    %v2487 = vadd.f32 %v2486, 1.0
    %v2488 = vrcp.pop %v2487
    %v2489 = vmul.f32 %v2487, %v2488
    %v2490 = vsub.f32 1.0, %v2489
    %v2491 = vmul.f32 %v2488, %v2490
    %v2492 = vadd.f32 %v2488, %v2491
    %vm2493 = vweird.f32 %v2487
    %vm2494 = vweird.f32 %v2488
    %vm2495 = vmor %vm2493, %vm2494
    %v2496 = vsel %vm2495, %v2488, %v2492
    %v2497 = vand.u32 2147483647, %v2487
    %vm2498 = vcmp.eq.f32.partialorder %v2497, 8.507059e+37
    %v2499 = vand.u32 %v2487, 2147483648
    %v2500 = vor.u32 1.1754944e-38, %v2499
    %v2501 = vsel %vm2498, %v2500, %v2496
    %v2502 = vmul.f32 1.0, %v2501
    %v2503 = vadd.f32 %v2418, %v2461
    %v2504 = vxor.u32 %v2503, 2147483648
    %v2505 = vmul.f32 %v2504, 1.442695
    %v2506 = vpow.pop %v2505
    %v2507 = vadd.f32 %v2506, 1.0
    %v2508 = vrcp.pop %v2507
    %v2509 = vmul.f32 %v2507, %v2508
    %v2510 = vsub.f32 1.0, %v2509
    %v2511 = vmul.f32 %v2508, %v2510
    %v2512 = vadd.f32 %v2508, %v2511
    %vm2513 = vweird.f32 %v2507
    %vm2514 = vweird.f32 %v2508
    %vm2515 = vmor %vm2513, %vm2514
    %v2516 = vsel %vm2515, %v2508, %v2512
    %v2517 = vand.u32 2147483647, %v2507
    %vm2518 = vcmp.eq.f32.partialorder %v2517, 8.507059e+37
    %v2519 = vand.u32 %v2507, 2147483648
    %v2520 = vor.u32 1.1754944e-38, %v2519
    %v2521 = vsel %vm2518, %v2520, %v2516
    %v2522 = vmul.f32 1.0, %v2521
    %v2523 = vmul.f32 %v2502, %v2481
    %v2524 = vadd.f32 %v2419, %v2523
    %v2525 = vtanh.pop %v2524
    %v2526 = vsub.f32 1.0, %v2522
    %v2527 = vmul.f32 %v2526, %v2525
    %v2528 = vmul.f32 %v2522, %v2410
    %v2529 = vadd.f32 %v2527, %v2528
    %v2530 = vld [vmem:[%s1287] sm:$0xff]
    %v2531 = vmul.f32 %v2530, %v2529
    %2532 = vst.msk [vmem:[%s1898] sm:$0xff] %vm501, %v2531
    %2533 = vst.msk [vmem:[%s1896] sm:$0xff] %vm504, %v2531
    %v2534 = vsub.f32 %v2529, %v2410
    %v2535 = vmul.f32 %v2530, %v2534
    %v2536 = vadd.f32 %v2410, %v2535
    %v2537 = vld [vmem:[%s382] sm:$0xff]
    %v2538 = vld [vmem:[%s382 + $0x8] sm:$0xff]
    %v2539 = vld [vmem:[%s382 + $0x10] sm:$0xff]
    %v2540 = vld [vmem:[%s376] sm:$0xff]
    %v2541 = vld [vmem:[%s376 + $0x8] sm:$0xff]
    %v2542 = vld [vmem:[%s376 + $0x10] sm:$0xff]
    %v2543 = vsel %vm41, %v2537, %v2540
    %v2544 = vsel %vm42, %v2538, %v2541
    %v2545 = vsel %vm43, %v2539, %v2542
    %v2547 = vsel %vm96, %v2536, 0
    %2549 = vmatpush.msra.mxu0 0.0
    %2550 = vmatpush.msra.mxu0 0.0
    %2551 = vmatpush.msra.mxu0 0.0
    %2552 = vmatpush.msra.mxu0 0.0
    %2553 = vmatpush.msra.mxu0 0.0
    %2554 = vmatpush.msra.mxu0 0.0
    %2555 = vmatpush.msra.mxu0 0.0
    %2556 = vmatpush.msra.mxu0 0.0
    %2557 = vmatpush.msra.mxu0 0.0
    %2558 = vmatpush.msra.mxu0 0.0
    %2559 = vmatpush.msra.mxu0 0.0
    %2560 = vmatpush.msra.mxu0 0.0
    %2561 = vmatpush.msra.mxu0 %v1634
    %2562 = vmatpush.msra.mxu0 %v1631
    %2563 = vmatpush.msra.mxu0 %v1628
    %2564 = vmatpush.msra.mxu0 %v1625
    %2565 = vmatmul.f32.gmra.mxu0 %v2547
    %v2566 = vpop.f32.mrf.mxu0
    %v2567 = vadd.f32 %v1640, %v2566
    %2568 = vdwg.mxu0
    %2569 = vmatpush.msra.mxu0 0.0
    %2570 = vmatpush.msra.mxu0 0.0
    %2571 = vmatpush.msra.mxu0 0.0
    %2572 = vmatpush.msra.mxu0 0.0
    %2573 = vmatpush.msra.mxu0 0.0
    %2574 = vmatpush.msra.mxu0 0.0
    %2575 = vmatpush.msra.mxu0 0.0
    %2576 = vmatpush.msra.mxu0 0.0
    %2577 = vmatpush.msra.mxu0 0.0
    %2578 = vmatpush.msra.mxu0 0.0
    %2579 = vmatpush.msra.mxu0 0.0
    %2580 = vmatpush.msra.mxu0 0.0
    %2581 = vmatpush.msra.mxu0 %v1635
    %2582 = vmatpush.msra.mxu0 %v1632
    %2583 = vmatpush.msra.mxu0 %v1629
    %2584 = vmatpush.msra.mxu0 %v1626
    %2585 = vmatmul.f32.gmra.mxu0 %v2547
    %v2586 = vpop.f32.mrf.mxu0
    %v2587 = vadd.f32 %v1641, %v2586
    %2588 = vdwg.mxu0
    %2589 = vmatpush.msra.mxu0 0.0
    %2590 = vmatpush.msra.mxu0 0.0
    %2591 = vmatpush.msra.mxu0 0.0
    %2592 = vmatpush.msra.mxu0 0.0
    %2593 = vmatpush.msra.mxu0 0.0
    %2594 = vmatpush.msra.mxu0 0.0
    %2595 = vmatpush.msra.mxu0 0.0
    %2596 = vmatpush.msra.mxu0 0.0
    %2597 = vmatpush.msra.mxu0 0.0
    %2598 = vmatpush.msra.mxu0 0.0
    %2599 = vmatpush.msra.mxu0 0.0
    %2600 = vmatpush.msra.mxu0 0.0
    %2601 = vmatpush.msra.mxu0 %v1636
    %2602 = vmatpush.msra.mxu0 %v1633
    %2603 = vmatpush.msra.mxu0 %v1630
    %2604 = vmatpush.msra.mxu0 %v1627
    %2605 = vmatmul.f32.gmra.mxu0 %v2547
    %v2606 = vpop.f32.mrf.mxu0
    %v2607 = vadd.f32 %v1642, %v2606
    %2608 = vdwg.mxu0
    %v2609 = vadd.f32 %v2543, %v2567
    %v2610 = vxor.u32 %v2609, 2147483648
    %v2611 = vmul.f32 %v2610, 1.442695
    %v2612 = vpow.pop %v2611
    %v2613 = vadd.f32 %v2612, 1.0
    %v2614 = vrcp.pop %v2613
    %v2615 = vmul.f32 %v2613, %v2614
    %v2616 = vsub.f32 1.0, %v2615
    %v2617 = vmul.f32 %v2614, %v2616
    %v2618 = vadd.f32 %v2614, %v2617
    %vm2619 = vweird.f32 %v2613
    %vm2620 = vweird.f32 %v2614
    %vm2621 = vmor %vm2619, %vm2620
    %v2622 = vsel %vm2621, %v2614, %v2618
    %v2623 = vand.u32 2147483647, %v2613
    %vm2624 = vcmp.eq.f32.partialorder %v2623, 8.507059e+37
    %v2625 = vand.u32 %v2613, 2147483648
    %v2626 = vor.u32 1.1754944e-38, %v2625
    %v2627 = vsel %vm2624, %v2626, %v2622
    %v2628 = vmul.f32 1.0, %v2627
    %v2629 = vadd.f32 %v2544, %v2587
    %v2630 = vxor.u32 %v2629, 2147483648
    %v2631 = vmul.f32 %v2630, 1.442695
    %v2632 = vpow.pop %v2631
    %v2633 = vadd.f32 %v2632, 1.0
    %v2634 = vrcp.pop %v2633
    %v2635 = vmul.f32 %v2633, %v2634
    %v2636 = vsub.f32 1.0, %v2635
    %v2637 = vmul.f32 %v2634, %v2636
    %v2638 = vadd.f32 %v2634, %v2637
    %vm2639 = vweird.f32 %v2633
    %vm2640 = vweird.f32 %v2634
    %vm2641 = vmor %vm2639, %vm2640
    %v2642 = vsel %vm2641, %v2634, %v2638
    %v2643 = vand.u32 2147483647, %v2633
    %vm2644 = vcmp.eq.f32.partialorder %v2643, 8.507059e+37
    %v2645 = vand.u32 %v2633, 2147483648
    %v2646 = vor.u32 1.1754944e-38, %v2645
    %v2647 = vsel %vm2644, %v2646, %v2642
    %v2648 = vmul.f32 1.0, %v2647
    %v2649 = vmul.f32 %v2628, %v2607
    %v2650 = vadd.f32 %v2545, %v2649
    %v2651 = vtanh.pop %v2650
    %v2652 = vsub.f32 1.0, %v2648
    %v2653 = vmul.f32 %v2652, %v2651
    %v2654 = vmul.f32 %v2648, %v2536
    %v2655 = vadd.f32 %v2653, %v2654
    %v2656 = vld [vmem:[%s1414] sm:$0xff]
    %v2657 = vmul.f32 %v2656, %v2655
    %2658 = vst.msk [vmem:[%s1770] sm:$0xff] %vm501, %v2657
    %2659 = vst.msk [vmem:[#allocation4] sm:$0xff] %vm504, %v2657
    %v2660 = vsub.f32 %v2655, %v2536
    %v2661 = vmul.f32 %v2656, %v2660
    %v2662 = vadd.f32 %v2536, %v2661
    %s2663 = scalar_lea.vmem %s9, 8
    %2664 = vst.msk [vmem:[%s2663] sm:$0xff] %vm96, %v2662
    // Predicated region
    $region34: #{encoder_forward.1} parent=1 // pred_check
      _
    $region35: #{encoder_forward.1} parent=1 // pred_check_branch
      %2666 = sbr.rel (0) target = $region37
    $region36: #{encoder_forward.1} parent=1 // pred_region
      %2668 = vsyncadd [#allocation5], 0
      %s2669 = sshll.u32 [#allocation4], 4
      %s2670 = int_to_ptr.vmem [resolvable:$true] %s2669
      %s2671 = sshll.u32 %s8, 4
      %s2672 = int_to_ptr.hbm [resolvable:$true] %s2671
      %2677 = dma.vmem_to_hbm [thread:$0]  %s2670, 1024, %s2672, [#allocation5], 128, 128, 8
    $region37: #{encoder_forward.1} parent=1 // pred_fallthru
      _
    // Predicated region
    $region38: #{encoder_forward.1} parent=1 // pred_check
      _
    $region39: #{encoder_forward.1} parent=1 // pred_check_branch
      %2679 = sbr.rel (0) target = $region41
    $region40: #{encoder_forward.1} parent=1 // pred_region
      _
    $region41: #{encoder_forward.1} parent=1 // pred_fallthru
      _
    // Predicated region
    $region42: #{encoder_forward.1} parent=1 // pred_check
      _
    $region43: #{encoder_forward.1} parent=1 // pred_check_branch
      %2681 = sbr.rel (0) target = $region45
    $region44: #{encoder_forward.1} parent=1 // pred_region
      %2683 = dma.done [#allocation5], 1024
    $region45: #{encoder_forward.1} parent=1 // pred_fallthru
      _
    // Predicated region
    $region46: #{encoder_forward.1} parent=1 // pred_check
      _
    $region47: #{encoder_forward.1} parent=1 // pred_check_branch
      %2685 = sbr.rel (0) target = $region49
    $region48: #{encoder_forward.1} parent=1 // pred_region
      _
    $region49: #{encoder_forward.1} parent=1 // pred_fallthru
      _
    %2686 = vsyncpa [#allocation5], 1

</llo_original>
